<compile_context>
chip_gen: v7x
topology: tpu7x:2x2x1
jax: 0.10.0
libtpu: 0.0.40
codegen_flags: <defaults>
</compile_context>

<pallas_src>
import functools

import jax
import jax.numpy as jnp
from jax.experimental import pallas as pl
from jax.experimental.pallas import tpu as pltpu

BN_EPS = 1e-5
LEAKY_SLOPE = 0.01  # torch.nn.LeakyReLU default negative_slope


# ---------------------------------------------------------------------------
# Phase 1: conv as k*k shifted matmuls + per-tile BN partial statistics.
# Output conv tile is written channels-first, HW-flat (lane-dense).
# ---------------------------------------------------------------------------
def _conv_stats_kernel(x_ref, w_ref, conv_ref, sum_ref, sq_ref, *,
                       k, stride, th, Wo):
    # x_ref:    (1, Hp, Wp, Cin)     padded NHWC input, bf16 (full-image block)
    # w_ref:    (k*k, Cin, Cout)     conv weight taps, bf16
    # conv_ref: (1, Cout, th*Wo)     f32 conv output tile (channels-first, flat)
    # sum_ref:  (1, 1, 1, Cout)      per-tile per-channel sum of conv
    # sq_ref:   (1, 1, 1, Cout)      per-tile per-channel sum of conv^2
    t = pl.program_id(1)                 # output-row tile index within image
    h0 = t * (th * stride)               # first padded input row used
    cin = w_ref.shape[1]
    cout = w_ref.shape[2]

    acc = jnp.zeros((th * Wo, cout), jnp.float32)
    for di in range(k):                  # static unroll over the k*k taps
        for dj in range(k):
            if stride == 1:
                slab = x_ref[0, pl.ds(h0 + di, th), pl.ds(dj, Wo), :]
            else:
                slab = x_ref[0, pl.ds(h0 + di, th, stride=stride),
                             pl.ds(dj, Wo, stride=stride), :]
            acc = acc + jnp.dot(slab.reshape(th * Wo, cin),
                                w_ref[di * k + dj],
                                preferred_element_type=jnp.float32)

    # BN partial stats from the natural (rows, Cout) layout (sublane reduce).
    s1 = jnp.sum(acc, axis=0, keepdims=True)          # (1, Cout)
    s2 = jnp.sum(acc * acc, axis=0, keepdims=True)    # (1, Cout)
    sum_ref[...] = s1.reshape(1, 1, 1, cout)
    sq_ref[...] = s2.reshape(1, 1, 1, cout)

    # One VMEM-local transpose per tile -> lane-dense (Cout, th*Wo) store.
    conv_ref[...] = jnp.transpose(acc).reshape(1, cout, th * Wo)


# ---------------------------------------------------------------------------
# Phase 2: folded BatchNorm affine (y = conv*scale + shift) + activation,
# operating entirely in the lane-dense channels-first layout.
# ---------------------------------------------------------------------------
def _bn_act_kernel(conv_ref, scale_ref, shift_ref, out_ref, *, leaky):
    # conv_ref: (1, Cout, th*Wo) f32;  scale/shift: (Cout, 1) f32
    y = conv_ref[...] * scale_ref[...] + shift_ref[...]
    if leaky:
        y = jnp.where(y > 0, y, LEAKY_SLOPE * y)
    out_ref[...] = y.astype(out_ref.dtype)


def _pick_row_tile(Ho, Wo, Cout):
    """Largest divisor th of Ho such that th*Wo is a multiple of 128 (lane
    dense, satisfies the (8,128) BlockSpec rule) and the f32 accumulator tile
    stays within ~2 MiB of VMEM (lane axis padded to >=128 while accumulating).
    Falls back to the full image (block == full dims, always legal)."""
    budget = 2 * 1024 * 1024
    best = None
    for th in range(1, Ho + 1):
        if Ho % th:
            continue
        if (th * Wo) % 128:
            continue
        if th * Wo * max(Cout, 128) * 4 <= budget:
            best = th
    if best is None:
        best = Ho          # full-image tile: block dims == array dims
    return best


# ---------------------------------------------------------------------------
# Wrapper: layout conversion (once), two pallas_calls, tiny stat finalize
# ---------------------------------------------------------------------------
@functools.partial(jax.jit,
                   static_argnames=("kernel_size", "stride", "activation"))
def convolution_forward(x, weight, gamma, beta, *, kernel_size, stride=1,
                        activation="leaky"):
    """Equivalent of Convolution.forward (padding='same', training-mode BN).

    x:      (N, Cin, H, W)      float32, NCHW (PyTorch layout)
    weight: (Cout, Cin, k, k)   conv weight, bias=False
    gamma:  (Cout,)             BatchNorm2d weight
    beta:   (Cout,)             BatchNorm2d bias
    returns (N, Cout, Ho, Wo)   NCHW
    """
    # NOTE: padding = k // 2 matches PyTorch padding='same' for odd k,
    # stride=1 (PyTorch rejects padding='same' with stride > 1).
    N, Cin, H, W = x.shape
    Cout = weight.shape[0]
    k = kernel_size
    pad = k // 2
    Ho = (H + 2 * pad - k) // stride + 1
    Wo = (W + 2 * pad - k) // stride + 1
    Hp, Wp = H + 2 * pad, W + 2 * pad

    # Channels-last, spatial zero-pad, bf16 MXU operands (f32 accumulation).
    # XLA fuses transpose+cast+pad into a single pass over the (small) input.
    x_nhwc = jnp.transpose(x, (0, 2, 3, 1)).astype(jnp.bfloat16)
    xp = jnp.pad(x_nhwc, ((0, 0), (pad, pad), (pad, pad), (0, 0)))
    # (Cout, Cin, k, k) -> (k, k, Cin, Cout) -> (k*k, Cin, Cout)
    w = jnp.transpose(weight, (2, 3, 1, 0)).reshape(k * k, Cin, Cout)
    w = w.astype(jnp.bfloat16)

    th = _pick_row_tile(Ho, Wo, Cout)     # output-row tile height
    T = Ho // th                          # row tiles per image

    conv_t, sums, sqs = pl.pallas_call(
        functools.partial(_conv_stats_kernel, k=k, stride=stride, th=th, Wo=Wo),
        grid=(N, T),
        in_specs=[
            pl.BlockSpec((1, Hp, Wp, Cin), lambda n, t: (n, 0, 0, 0)),
            pl.BlockSpec((k * k, Cin, Cout), lambda n, t: (0, 0, 0)),
        ],
        out_specs=(
            pl.BlockSpec((1, Cout, th * Wo), lambda n, t: (n, 0, t)),
            pl.BlockSpec((1, 1, 1, Cout), lambda n, t: (n, t, 0, 0)),
            pl.BlockSpec((1, 1, 1, Cout), lambda n, t: (n, t, 0, 0)),
        ),
        out_shape=(
            jax.ShapeDtypeStruct((N, Cout, Ho * Wo), jnp.float32),
            jax.ShapeDtypeStruct((N, T, 1, Cout), jnp.float32),
            jax.ShapeDtypeStruct((N, T, 1, Cout), jnp.float32),
        ),
        compiler_params=pltpu.CompilerParams(
            dimension_semantics=("parallel", "parallel"),
            vmem_limit_bytes=48 * 1024 * 1024),
    )(xp, w)

    # Finalize BN batch stats (tiny O(Cout) work) and fold the affine:
    #   y = conv * scale + shift   with   scale = gamma / sqrt(var + eps)
    M = N * Ho * Wo
    s1 = jnp.sum(sums, axis=(0, 1, 2))                       # (Cout,)
    s2 = jnp.sum(sqs, axis=(0, 1, 2))                        # (Cout,)
    mean = s1 / M
    var = jnp.maximum(s2 / M - mean * mean, 0.0)             # biased, f32
    inv_std = jax.lax.rsqrt(var + BN_EPS)
    g32 = gamma.astype(jnp.float32)
    b32 = beta.astype(jnp.float32)
    scale = (g32 * inv_std).reshape(Cout, 1)
    shift = (b32 - mean * g32 * inv_std).reshape(Cout, 1)

    out_dtype = x.dtype
    # Reuse the conv intermediate's HBM buffer for the output when legal.
    alias = {0: 0} if out_dtype == jnp.float32 else {}

    out_flat = pl.pallas_call(
        functools.partial(_bn_act_kernel, leaky=(activation == "leaky")),
        grid=(N, T),
        in_specs=[
            pl.BlockSpec((1, Cout, th * Wo), lambda n, t: (n, 0, t)),
            pl.BlockSpec((Cout, 1), lambda n, t: (0, 0)),
            pl.BlockSpec((Cout, 1), lambda n, t: (0, 0)),
        ],
        out_specs=pl.BlockSpec((1, Cout, th * Wo), lambda n, t: (n, 0, t)),
        out_shape=jax.ShapeDtypeStruct((N, Cout, Ho * Wo), out_dtype),
        input_output_aliases=alias,
        compiler_params=pltpu.CompilerParams(
            dimension_semantics=("parallel", "parallel"),
            vmem_limit_bytes=48 * 1024 * 1024),
    )(conv_t, scale, shift)

    # Free reshape to the external NCHW contract (no data movement).
    return out_flat.reshape(N, Cout, Ho, Wo)


# ---------------------------------------------------------------------------
# Pure-JAX reference (PyTorch training-mode forward; bf16 conv operands to
# match the kernel's MXU numerics, f32 accumulation / BN math)
# ---------------------------------------------------------------------------
def _reference(x, weight, gamma, beta, *, kernel_size, stride):
    pad = kernel_size // 2
    conv = jax.lax.conv_general_dilated(
        x.astype(jnp.bfloat16), weight.astype(jnp.bfloat16),
        window_strides=(stride, stride),
        padding=[(pad, pad), (pad, pad)],
        dimension_numbers=("NCHW", "OIHW", "NCHW"),
        preferred_element_type=jnp.float32)
    mean = conv.mean(axis=(0, 2, 3), keepdims=True)
    var = conv.var(axis=(0, 2, 3), keepdims=True)   # biased, like BN training
    y = (conv - mean) / jnp.sqrt(var + BN_EPS)
    y = y * gamma.reshape(1, -1, 1, 1) + beta.reshape(1, -1, 1, 1)
    return jnp.where(y > 0, y, LEAKY_SLOPE * y)


if __name__ == "__main__":
    # Small shapes consistent with the module: Convolution(4, 8, 3, stride=1)
    N, Cin, H, W = 2, 4, 16, 16
    Cout, ksize, stride = 8, 3, 1

    key = jax.random.PRNGKey(0)
    kx, kw, kg, kb = jax.random.split(key, 4)
    x = jax.random.normal(kx, (N, Cin, H, W), dtype=jnp.float32)
    weight = jax.random.normal(kw, (Cout, Cin, ksize, ksize),
                               dtype=jnp.float32) * 0.1
    gamma = 1.0 + 0.1 * jax.random.normal(kg, (Cout,), dtype=jnp.float32)
    beta = 0.1 * jax.random.normal(kb, (Cout,), dtype=jnp.float32)

    out = convolution_forward(x, weight, gamma, beta,
                              kernel_size=ksize, stride=stride,
                              activation="leaky")
    out = jax.block_until_ready(out)

    ref = _reference(x, weight, gamma, beta, kernel_size=ksize, stride=stride)
    assert out.shape == (N, Cout, H, W), out.shape
    err = float(jnp.max(jnp.abs(out - ref)))
    assert jnp.allclose(out, ref, atol=2e-3, rtol=2e-3), err

    # TODO(synk): BatchNorm running_mean/running_var momentum updates are a
    # training side effect of the torch module and are not produced here.
    print("KERNEL_OK")
</pallas_src>

<mosaic_0001>
module attributes {stable_mosaic.version = 11 : i64} {
  func.func @_conv_stats_kernel(%arg0: i32, %arg1: i32, %arg2: memref<1x18x18x4xbf16, #tpu.memory_space<vmem>>, %arg3: memref<9x4x8xbf16, #tpu.memory_space<vmem>>, %arg4: memref<1x8x256xf32, #tpu.memory_space<vmem>>, %arg5: memref<1x1x1x8xf32, #tpu.memory_space<vmem>>, %arg6: memref<1x1x1x8xf32, #tpu.memory_space<vmem>>) attributes {dimension_semantics = [#tpu.dimension_semantics<parallel>, #tpu.dimension_semantics<parallel>], iteration_bounds = array<i64: 2, 1>, scalar_prefetch = 0 : i64, scratch_operands = 0 : i64, tpu.core_type = #tpu.core_type<tc>, window_params = [{transform_indices = @transform_0, window_bounds = array<i64: 1, 18, 18, 4>}, {pipeline_mode = #tpu.pipeline_mode<synchronous>, transform_indices = @transform_1, window_bounds = array<i64: 9, 4, 8>}, {transform_indices = @transform_2, window_bounds = array<i64: 1, 8, 256>}, {transform_indices = @transform_3, window_bounds = array<i64: 1, 1, 1, 8>}, {transform_indices = @transform_4, window_bounds = array<i64: 1, 1, 1, 8>}]} {
    %c16_i32 = arith.constant 16 : i32
    %0 = arith.muli %arg1, %c16_i32 : i32
    %cst = arith.constant 0.000000e+00 : f32
    %1 = vector.broadcast %cst : f32 to vector<256x8xf32>
    %c0_i32 = arith.constant 0 : i32
    %2 = arith.addi %0, %c0_i32 : i32
    %c0 = arith.constant 0 : index
    %3 = arith.index_cast %2 : i32 to index
    %c0_0 = arith.constant 0 : index
    %c0_1 = arith.constant 0 : index
    %4 = vector.load %arg2[%c0, %3, %c0_0, %c0_1] : memref<1x18x18x4xbf16, #tpu.memory_space<vmem>>, vector<1x16x16x4xbf16>
    %5 = vector.shape_cast %4 : vector<1x16x16x4xbf16> to vector<16x16x4xbf16>
    %6 = vector.shape_cast %5 : vector<16x16x4xbf16> to vector<256x4xbf16>
    %c0_2 = arith.constant 0 : index
    %c0_3 = arith.constant 0 : index
    %c0_4 = arith.constant 0 : index
    %7 = vector.load %arg3[%c0_2, %c0_3, %c0_4] : memref<9x4x8xbf16, #tpu.memory_space<vmem>>, vector<1x4x8xbf16>
    %8 = vector.shape_cast %7 : vector<1x4x8xbf16> to vector<4x8xbf16>
    %cst_5 = arith.constant dense<0.000000e+00> : vector<256x8xf32>
    %9 = tpu.matmul %6, %8, %cst_5 {dimension_numbers = #tpu.dot_dimension_numbers<[1], [0], [0], [1], [0, 0, 1, 1], [], []>} : vector<256x4xbf16>, vector<4x8xbf16>, vector<256x8xf32> -> vector<256x8xf32>
    %10 = arith.addf %1, %9 : vector<256x8xf32>
    %c0_i32_6 = arith.constant 0 : i32
    %11 = arith.addi %0, %c0_i32_6 : i32
    %c0_7 = arith.constant 0 : index
    %12 = arith.index_cast %11 : i32 to index
    %c1 = arith.constant 1 : index
    %c0_8 = arith.constant 0 : index
    %13 = vector.load %arg2[%c0_7, %12, %c1, %c0_8] : memref<1x18x18x4xbf16, #tpu.memory_space<vmem>>, vector<1x16x16x4xbf16>
    %14 = vector.shape_cast %13 : vector<1x16x16x4xbf16> to vector<16x16x4xbf16>
    %15 = vector.shape_cast %14 : vector<16x16x4xbf16> to vector<256x4xbf16>
    %c1_9 = arith.constant 1 : index
    %c0_10 = arith.constant 0 : index
    %c0_11 = arith.constant 0 : index
    %16 = vector.load %arg3[%c1_9, %c0_10, %c0_11] : memref<9x4x8xbf16, #tpu.memory_space<vmem>>, vector<1x4x8xbf16>
    %17 = vector.shape_cast %16 : vector<1x4x8xbf16> to vector<4x8xbf16>
    %cst_12 = arith.constant dense<0.000000e+00> : vector<256x8xf32>
    %18 = tpu.matmul %15, %17, %cst_12 {dimension_numbers = #tpu.dot_dimension_numbers<[1], [0], [0], [1], [0, 0, 1, 1], [], []>} : vector<256x4xbf16>, vector<4x8xbf16>, vector<256x8xf32> -> vector<256x8xf32>
    %19 = arith.addf %10, %18 : vector<256x8xf32>
    %c0_i32_13 = arith.constant 0 : i32
    %20 = arith.addi %0, %c0_i32_13 : i32
    %c0_14 = arith.constant 0 : index
    %21 = arith.index_cast %20 : i32 to index
    %c2 = arith.constant 2 : index
    %c0_15 = arith.constant 0 : index
    %22 = vector.load %arg2[%c0_14, %21, %c2, %c0_15] : memref<1x18x18x4xbf16, #tpu.memory_space<vmem>>, vector<1x16x16x4xbf16>
    %23 = vector.shape_cast %22 : vector<1x16x16x4xbf16> to vector<16x16x4xbf16>
    %24 = vector.shape_cast %23 : vector<16x16x4xbf16> to vector<256x4xbf16>
    %c2_16 = arith.constant 2 : index
    %c0_17 = arith.constant 0 : index
    %c0_18 = arith.constant 0 : index
    %25 = vector.load %arg3[%c2_16, %c0_17, %c0_18] : memref<9x4x8xbf16, #tpu.memory_space<vmem>>, vector<1x4x8xbf16>
    %26 = vector.shape_cast %25 : vector<1x4x8xbf16> to vector<4x8xbf16>
    %cst_19 = arith.constant dense<0.000000e+00> : vector<256x8xf32>
    %27 = tpu.matmul %24, %26, %cst_19 {dimension_numbers = #tpu.dot_dimension_numbers<[1], [0], [0], [1], [0, 0, 1, 1], [], []>} : vector<256x4xbf16>, vector<4x8xbf16>, vector<256x8xf32> -> vector<256x8xf32>
    %28 = arith.addf %19, %27 : vector<256x8xf32>
    %c1_i32 = arith.constant 1 : i32
    %29 = arith.addi %0, %c1_i32 : i32
    %c0_20 = arith.constant 0 : index
    %30 = arith.index_cast %29 : i32 to index
    %c0_21 = arith.constant 0 : index
    %c0_22 = arith.constant 0 : index
    %31 = vector.load %arg2[%c0_20, %30, %c0_21, %c0_22] : memref<1x18x18x4xbf16, #tpu.memory_space<vmem>>, vector<1x16x16x4xbf16>
    %32 = vector.shape_cast %31 : vector<1x16x16x4xbf16> to vector<16x16x4xbf16>
    %33 = vector.shape_cast %32 : vector<16x16x4xbf16> to vector<256x4xbf16>
    %c3 = arith.constant 3 : index
    %c0_23 = arith.constant 0 : index
    %c0_24 = arith.constant 0 : index
    %34 = vector.load %arg3[%c3, %c0_23, %c0_24] : memref<9x4x8xbf16, #tpu.memory_space<vmem>>, vector<1x4x8xbf16>
    %35 = vector.shape_cast %34 : vector<1x4x8xbf16> to vector<4x8xbf16>
    %cst_25 = arith.constant dense<0.000000e+00> : vector<256x8xf32>
    %36 = tpu.matmul %33, %35, %cst_25 {dimension_numbers = #tpu.dot_dimension_numbers<[1], [0], [0], [1], [0, 0, 1, 1], [], []>} : vector<256x4xbf16>, vector<4x8xbf16>, vector<256x8xf32> -> vector<256x8xf32>
    %37 = arith.addf %28, %36 : vector<256x8xf32>
    %c1_i32_26 = arith.constant 1 : i32
    %38 = arith.addi %0, %c1_i32_26 : i32
    %c0_27 = arith.constant 0 : index
    %39 = arith.index_cast %38 : i32 to index
    %c1_28 = arith.constant 1 : index
    %c0_29 = arith.constant 0 : index
    %40 = vector.load %arg2[%c0_27, %39, %c1_28, %c0_29] : memref<1x18x18x4xbf16, #tpu.memory_space<vmem>>, vector<1x16x16x4xbf16>
    %41 = vector.shape_cast %40 : vector<1x16x16x4xbf16> to vector<16x16x4xbf16>
    %42 = vector.shape_cast %41 : vector<16x16x4xbf16> to vector<256x4xbf16>
    %c4 = arith.constant 4 : index
    %c0_30 = arith.constant 0 : index
    %c0_31 = arith.constant 0 : index
    %43 = vector.load %arg3[%c4, %c0_30, %c0_31] : memref<9x4x8xbf16, #tpu.memory_space<vmem>>, vector<1x4x8xbf16>
    %44 = vector.shape_cast %43 : vector<1x4x8xbf16> to vector<4x8xbf16>
    %cst_32 = arith.constant dense<0.000000e+00> : vector<256x8xf32>
    %45 = tpu.matmul %42, %44, %cst_32 {dimension_numbers = #tpu.dot_dimension_numbers<[1], [0], [0], [1], [0, 0, 1, 1], [], []>} : vector<256x4xbf16>, vector<4x8xbf16>, vector<256x8xf32> -> vector<256x8xf32>
    %46 = arith.addf %37, %45 : vector<256x8xf32>
    %c1_i32_33 = arith.constant 1 : i32
    %47 = arith.addi %0, %c1_i32_33 : i32
    %c0_34 = arith.constant 0 : index
    %48 = arith.index_cast %47 : i32 to index
    %c2_35 = arith.constant 2 : index
    %c0_36 = arith.constant 0 : index
    %49 = vector.load %arg2[%c0_34, %48, %c2_35, %c0_36] : memref<1x18x18x4xbf16, #tpu.memory_space<vmem>>, vector<1x16x16x4xbf16>
    %50 = vector.shape_cast %49 : vector<1x16x16x4xbf16> to vector<16x16x4xbf16>
    %51 = vector.shape_cast %50 : vector<16x16x4xbf16> to vector<256x4xbf16>
    %c5 = arith.constant 5 : index
    %c0_37 = arith.constant 0 : index
    %c0_38 = arith.constant 0 : index
    %52 = vector.load %arg3[%c5, %c0_37, %c0_38] : memref<9x4x8xbf16, #tpu.memory_space<vmem>>, vector<1x4x8xbf16>
    %53 = vector.shape_cast %52 : vector<1x4x8xbf16> to vector<4x8xbf16>
    %cst_39 = arith.constant dense<0.000000e+00> : vector<256x8xf32>
    %54 = tpu.matmul %51, %53, %cst_39 {dimension_numbers = #tpu.dot_dimension_numbers<[1], [0], [0], [1], [0, 0, 1, 1], [], []>} : vector<256x4xbf16>, vector<4x8xbf16>, vector<256x8xf32> -> vector<256x8xf32>
    %55 = arith.addf %46, %54 : vector<256x8xf32>
    %c2_i32 = arith.constant 2 : i32
    %56 = arith.addi %0, %c2_i32 : i32
    %c0_40 = arith.constant 0 : index
    %57 = arith.index_cast %56 : i32 to index
    %c0_41 = arith.constant 0 : index
    %c0_42 = arith.constant 0 : index
    %58 = vector.load %arg2[%c0_40, %57, %c0_41, %c0_42] : memref<1x18x18x4xbf16, #tpu.memory_space<vmem>>, vector<1x16x16x4xbf16>
    %59 = vector.shape_cast %58 : vector<1x16x16x4xbf16> to vector<16x16x4xbf16>
    %60 = vector.shape_cast %59 : vector<16x16x4xbf16> to vector<256x4xbf16>
    %c6 = arith.constant 6 : index
    %c0_43 = arith.constant 0 : index
    %c0_44 = arith.constant 0 : index
    %61 = vector.load %arg3[%c6, %c0_43, %c0_44] : memref<9x4x8xbf16, #tpu.memory_space<vmem>>, vector<1x4x8xbf16>
    %62 = vector.shape_cast %61 : vector<1x4x8xbf16> to vector<4x8xbf16>
    %cst_45 = arith.constant dense<0.000000e+00> : vector<256x8xf32>
    %63 = tpu.matmul %60, %62, %cst_45 {dimension_numbers = #tpu.dot_dimension_numbers<[1], [0], [0], [1], [0, 0, 1, 1], [], []>} : vector<256x4xbf16>, vector<4x8xbf16>, vector<256x8xf32> -> vector<256x8xf32>
    %64 = arith.addf %55, %63 : vector<256x8xf32>
    %c2_i32_46 = arith.constant 2 : i32
    %65 = arith.addi %0, %c2_i32_46 : i32
    %c0_47 = arith.constant 0 : index
    %66 = arith.index_cast %65 : i32 to index
    %c1_48 = arith.constant 1 : index
    %c0_49 = arith.constant 0 : index
    %67 = vector.load %arg2[%c0_47, %66, %c1_48, %c0_49] : memref<1x18x18x4xbf16, #tpu.memory_space<vmem>>, vector<1x16x16x4xbf16>
    %68 = vector.shape_cast %67 : vector<1x16x16x4xbf16> to vector<16x16x4xbf16>
    %69 = vector.shape_cast %68 : vector<16x16x4xbf16> to vector<256x4xbf16>
    %c7 = arith.constant 7 : index
    %c0_50 = arith.constant 0 : index
    %c0_51 = arith.constant 0 : index
    %70 = vector.load %arg3[%c7, %c0_50, %c0_51] : memref<9x4x8xbf16, #tpu.memory_space<vmem>>, vector<1x4x8xbf16>
    %71 = vector.shape_cast %70 : vector<1x4x8xbf16> to vector<4x8xbf16>
    %cst_52 = arith.constant dense<0.000000e+00> : vector<256x8xf32>
    %72 = tpu.matmul %69, %71, %cst_52 {dimension_numbers = #tpu.dot_dimension_numbers<[1], [0], [0], [1], [0, 0, 1, 1], [], []>} : vector<256x4xbf16>, vector<4x8xbf16>, vector<256x8xf32> -> vector<256x8xf32>
    %73 = arith.addf %64, %72 : vector<256x8xf32>
    %c2_i32_53 = arith.constant 2 : i32
    %74 = arith.addi %0, %c2_i32_53 : i32
    %c0_54 = arith.constant 0 : index
    %75 = arith.index_cast %74 : i32 to index
    %c2_55 = arith.constant 2 : index
    %c0_56 = arith.constant 0 : index
    %76 = vector.load %arg2[%c0_54, %75, %c2_55, %c0_56] : memref<1x18x18x4xbf16, #tpu.memory_space<vmem>>, vector<1x16x16x4xbf16>
    %77 = vector.shape_cast %76 : vector<1x16x16x4xbf16> to vector<16x16x4xbf16>
    %78 = vector.shape_cast %77 : vector<16x16x4xbf16> to vector<256x4xbf16>
    %c8 = arith.constant 8 : index
    %c0_57 = arith.constant 0 : index
    %c0_58 = arith.constant 0 : index
    %79 = vector.load %arg3[%c8, %c0_57, %c0_58] : memref<9x4x8xbf16, #tpu.memory_space<vmem>>, vector<1x4x8xbf16>
    %80 = vector.shape_cast %79 : vector<1x4x8xbf16> to vector<4x8xbf16>
    %cst_59 = arith.constant dense<0.000000e+00> : vector<256x8xf32>
    %81 = tpu.matmul %78, %80, %cst_59 {dimension_numbers = #tpu.dot_dimension_numbers<[1], [0], [0], [1], [0, 0, 1, 1], [], []>} : vector<256x4xbf16>, vector<4x8xbf16>, vector<256x8xf32> -> vector<256x8xf32>
    %82 = arith.addf %73, %81 : vector<256x8xf32>
    %cst_60 = arith.constant dense<0.000000e+00> : vector<8xf32>
    %83 = vector.multi_reduction <add>, %82, %cst_60 [0] : vector<256x8xf32> to vector<8xf32>
    %84 = vector.shape_cast %83 : vector<8xf32> to vector<1x8xf32>
    %85 = arith.mulf %82, %82 : vector<256x8xf32>
    %cst_61 = arith.constant dense<0.000000e+00> : vector<8xf32>
    %86 = vector.multi_reduction <add>, %85, %cst_61 [0] : vector<256x8xf32> to vector<8xf32>
    %87 = vector.shape_cast %86 : vector<8xf32> to vector<1x8xf32>
    %88 = vector.shape_cast %84 : vector<1x8xf32> to vector<1x1x1x8xf32>
    %c0_62 = arith.constant 0 : index
    %c0_63 = arith.constant 0 : index
    %c0_64 = arith.constant 0 : index
    %c0_65 = arith.constant 0 : index
    %89 = vector.load %arg5[%c0_62, %c0_63, %c0_64, %c0_65] : memref<1x1x1x8xf32, #tpu.memory_space<vmem>>, vector<1x1x1x8xf32>
    tpu.vector_store %arg5[%c0_62, %c0_63, %c0_64, %c0_65], %88 {strides = array<i32>} : memref<1x1x1x8xf32, #tpu.memory_space<vmem>>, vector<1x1x1x8xf32>,
    %90 = vector.shape_cast %87 : vector<1x8xf32> to vector<1x1x1x8xf32>
    %c0_66 = arith.constant 0 : index
    %c0_67 = arith.constant 0 : index
    %c0_68 = arith.constant 0 : index
    %c0_69 = arith.constant 0 : index
    %91 = vector.load %arg6[%c0_66, %c0_67, %c0_68, %c0_69] : memref<1x1x1x8xf32, #tpu.memory_space<vmem>>, vector<1x1x1x8xf32>
    tpu.vector_store %arg6[%c0_66, %c0_67, %c0_68, %c0_69], %90 {strides = array<i32>} : memref<1x1x1x8xf32, #tpu.memory_space<vmem>>, vector<1x1x1x8xf32>,
    %92 = tpu.transpose %82, [1, 0] : vector<256x8xf32> -> vector<8x256xf32>
    %93 = vector.shape_cast %92 : vector<8x256xf32> to vector<1x8x256xf32>
    %c0_70 = arith.constant 0 : index
    %c0_71 = arith.constant 0 : index
    %c0_72 = arith.constant 0 : index
    %94 = vector.load %arg4[%c0_70, %c0_71, %c0_72] : memref<1x8x256xf32, #tpu.memory_space<vmem>>, vector<1x8x256xf32>
    tpu.vector_store %arg4[%c0_70, %c0_71, %c0_72], %93 {strides = array<i32>} : memref<1x8x256xf32, #tpu.memory_space<vmem>>, vector<1x8x256xf32>,
    return
  }
  func.func @transform_0(%arg0: i32, %arg1: i32) -> (i32, i32, i32, i32) {
    %c0_i32 = arith.constant 0 : i32
    %c0_i32_0 = arith.constant 0 : i32
    %c0_i32_1 = arith.constant 0 : i32
    %c0_i32_2 = arith.constant 0 : i32
    return %arg0, %c0_i32, %c0_i32_0, %c0_i32_1 : i32, i32, i32, i32
  }
  func.func @transform_1(%arg0: i32, %arg1: i32) -> (i32, i32, i32) {
    %c0_i32 = arith.constant 0 : i32
    %c0_i32_0 = arith.constant 0 : i32
    %c0_i32_1 = arith.constant 0 : i32
    %c0_i32_2 = arith.constant 0 : i32
    return %c0_i32, %c0_i32_0, %c0_i32_1 : i32, i32, i32
  }
  func.func @transform_2(%arg0: i32, %arg1: i32) -> (i32, i32, i32) {
    %c0_i32 = arith.constant 0 : i32
    %c0_i32_0 = arith.constant 0 : i32
    return %arg0, %c0_i32, %arg1 : i32, i32, i32
  }
  func.func @transform_3(%arg0: i32, %arg1: i32) -> (i32, i32, i32, i32) {
    %c0_i32 = arith.constant 0 : i32
    %c0_i32_0 = arith.constant 0 : i32
    %c0_i32_1 = arith.constant 0 : i32
    return %arg0, %arg1, %c0_i32, %c0_i32_0 : i32, i32, i32, i32
  }
  func.func @transform_4(%arg0: i32, %arg1: i32) -> (i32, i32, i32, i32) {
    %c0_i32 = arith.constant 0 : i32
    %c0_i32_0 = arith.constant 0 : i32
    %c0_i32_1 = arith.constant 0 : i32
    return %arg0, %arg1, %c0_i32, %c0_i32_0 : i32, i32, i32, i32
  }
}

module attributes {stable_mosaic.version = 11 : i64} {
  func.func @_bn_act_kernel(%arg0: i32, %arg1: i32, %arg2: memref<1x8x256xf32, #tpu.memory_space<vmem>>, %arg3: memref<8x1xf32, #tpu.memory_space<vmem>>, %arg4: memref<8x1xf32, #tpu.memory_space<vmem>>, %arg5: memref<1x8x256xf32, #tpu.memory_space<vmem>>) attributes {dimension_semantics = [#tpu.dimension_semantics<parallel>, #tpu.dimension_semantics<parallel>], iteration_bounds = array<i64: 2, 1>, scalar_prefetch = 0 : i64, scratch_operands = 0 : i64, tpu.core_type = #tpu.core_type<tc>, window_params = [{transform_indices = @transform_0, window_bounds = array<i64: 1, 8, 256>}, {pipeline_mode = #tpu.pipeline_mode<synchronous>, transform_indices = @transform_1, window_bounds = array<i64: 8, 1>}, {pipeline_mode = #tpu.pipeline_mode<synchronous>, transform_indices = @transform_2, window_bounds = array<i64: 8, 1>}, {transform_indices = @transform_3, window_bounds = array<i64: 1, 8, 256>}]} {
    %c0 = arith.constant 0 : index
    %c0_0 = arith.constant 0 : index
    %c0_1 = arith.constant 0 : index
    %0 = vector.load %arg2[%c0, %c0_0, %c0_1] : memref<1x8x256xf32, #tpu.memory_space<vmem>>, vector<1x8x256xf32>
    %c0_2 = arith.constant 0 : index
    %c0_3 = arith.constant 0 : index
    %1 = vector.load %arg3[%c0_2, %c0_3] : memref<8x1xf32, #tpu.memory_space<vmem>>, vector<8x1xf32>
    %2 = vector.shape_cast %1 : vector<8x1xf32> to vector<1x8x1xf32>
    %3 = vector.broadcast %2 : vector<1x8x1xf32> to vector<1x8x256xf32>
    %4 = arith.mulf %0, %3 : vector<1x8x256xf32>
    %c0_4 = arith.constant 0 : index
    %c0_5 = arith.constant 0 : index
    %5 = vector.load %arg4[%c0_4, %c0_5] : memref<8x1xf32, #tpu.memory_space<vmem>>, vector<8x1xf32>
    %6 = vector.shape_cast %5 : vector<8x1xf32> to vector<1x8x1xf32>
    %7 = vector.broadcast %6 : vector<1x8x1xf32> to vector<1x8x256xf32>
    %8 = arith.addf %4, %7 : vector<1x8x256xf32>
    %cst = arith.constant 0.000000e+00 : f32
    %9 = vector.broadcast %cst : f32 to vector<1x8x256xf32>
    %10 = arith.cmpf ogt, %8, %9 : vector<1x8x256xf32>
    %cst_6 = arith.constant 0.00999999977 : f32
    %11 = vector.broadcast %cst_6 : f32 to vector<1x8x256xf32>
    %12 = arith.mulf %11, %8 : vector<1x8x256xf32>
    %13 = arith.select %10, %8, %12 : vector<1x8x256xi1>, vector<1x8x256xf32>
    %c0_7 = arith.constant 0 : index
    %c0_8 = arith.constant 0 : index
    %c0_9 = arith.constant 0 : index
    %14 = vector.load %arg5[%c0_7, %c0_8, %c0_9] : memref<1x8x256xf32, #tpu.memory_space<vmem>>, vector<1x8x256xf32>
    tpu.vector_store %arg5[%c0_7, %c0_8, %c0_9], %13 {strides = array<i32>} : memref<1x8x256xf32, #tpu.memory_space<vmem>>, vector<1x8x256xf32>,
    return
  }
  func.func @transform_0(%arg0: i32, %arg1: i32) -> (i32, i32, i32) {
    %c0_i32 = arith.constant 0 : i32
    %c0_i32_0 = arith.constant 0 : i32
    return %arg0, %c0_i32, %arg1 : i32, i32, i32
  }
  func.func @transform_1(%arg0: i32, %arg1: i32) -> (i32, i32) {
    %c0_i32 = arith.constant 0 : i32
    %c0_i32_0 = arith.constant 0 : i32
    %c0_i32_1 = arith.constant 0 : i32
    return %c0_i32, %c0_i32_0 : i32, i32
  }
  func.func @transform_2(%arg0: i32, %arg1: i32) -> (i32, i32) {
    %c0_i32 = arith.constant 0 : i32
    %c0_i32_0 = arith.constant 0 : i32
    %c0_i32_1 = arith.constant 0 : i32
    return %c0_i32, %c0_i32_0 : i32, i32
  }
  func.func @transform_3(%arg0: i32, %arg1: i32) -> (i32, i32, i32) {
    %c0_i32 = arith.constant 0 : i32
    %c0_i32_0 = arith.constant 0 : i32
    return %arg0, %c0_i32, %arg1 : i32, i32, i32
  }
}

</mosaic_0001>

<llo_original>
// kernel: convolution_forward.3
$region0: #{convolution_forward.3}
  #allocation0 [shape = 'u32[]', space=smem, size = 0x4, offset = 0x4, fixed_abs, tag = 'smem constant byte address 0x4 - core index']
  #allocation1 [shape = 'u32[144,128]{1,0:T(1,128)}', space=vmem, size = 0x12000, scoped, tag = 'internal scratch']
  %s0 = inlined_call_operand.vmem [shape: f32[2,8,256], index: 0, kind: input, shape index: {}, may-alias: {0,3}]
  %s1 = inlined_call_operand.vmem [shape: f32[8,1], index: 1, kind: input, shape index: {}]
  %s2 = inlined_call_operand.vmem [shape: f32[8,1], index: 2, kind: input, shape index: {}]
  %s3 = inlined_call_operand.vmem [shape: f32[2,8,256], index: 3, kind: output, shape index: {}, may-alias: {0,3}]
  %s4 = sld [smem:[#allocation0]]
  $region45: #{convolution_forward.3} parent=0
    _
  %s6 = ssub.s32 1, %s4
  %s7 = scalar_select 0, %s6, %s4
  loop: start=0, step=1, limit=4
  $region2: #{convolution_forward.3} parent=0 // loop_pre_header
    _
  $region3: #{convolution_forward.3} parent=0 // loop_header
    %s9 = sphi 0, %s13
    %p10 = scmp.ge.s32.totalorder %s9, 4
    %s16 = sphi 0, %s28
    %s17 = sphi 0, %s24
    %s18 = sphi 0, %s16
    %s19 = sphi 0, %s17
    %s20 = sphi 0, %s18
    %s21 = sphi 0, %s19
    %s33 = sphi 0, %s35
    %s36 = sphi 0, %s33
    %s37 = sphi 0, %s36
    %s53 = sphi 0, %s37
    %s57 = sphi 0, %s57
    %s59 = sphi 0, %s57
    %s60 = sphi 0, %s59
    %s74 = sphi 0, %s60
    %s78 = sphi 0, %s78
    %s80 = sphi 0, %s78
    %s81 = sphi 0, %s80
    %s95 = sphi 0, %s81
    %s103 = sphi 0, %s105
    %s106 = sphi 0, %s103
    %s107 = sphi 0, %s106
    %s123 = sphi 0, %s107
  $region4: #{convolution_forward.3} parent=0 // loop_header_branch
    %12 = sbr.rel (%p10) target = $region8
  $region5: #{convolution_forward.3} parent=0 // loop_body
    %s14 = ssub.s32 %s9, 1
    %s15 = ssub.s32 %s9, 2
    %s22 = sadd.s32 1, %s17
    %p23 = scmp.ge.s32.totalorder %s22, 1
    %s24 = scalar_select %p23, 0, %s22
    %s25 = sadd.s32 1, %s16
    %s26 = scalar_select %p23, %s25, %s16
    %p27 = scmp.ge.s32.totalorder %s26, 2
    %s28 = scalar_select %p27, 0, %s26
    %s29 = ssub.s32 %s16, %s28
    %s30 = ssub.s32 %s17, %s24
    %s31 = sor.u32 %s29, %s30
    %p32 = scmp.eq.s32.totalorder %s31, 0
    %s34 = sadd.s32 %s33, 1
    %s35 = scalar_select %p32, %s33, %s34
    %p38 = pneg %p32
    %p39 = scmp.eq.s32.totalorder %s9, 1
    %p40 = por %p38, %p39
    %p41 = scmp.ne.s32.totalorder %s33, %s36
    %p42 = scmp.eq.s32.totalorder %s9, 0
    %p43 = por %p41, %p42
    %p44 = scmp.ne.s32.totalorder %s33, %s36
    %p45 = scmp.eq.s32.totalorder %s14, 1
    %p46 = por %p44, %p45
    %p47 = scmp.ne.s32.totalorder %s36, %s37
    %p48 = scmp.eq.s32.totalorder %s14, 0
    %p49 = por %p47, %p48
    %p50 = scmp.ne.s32.totalorder %s36, %s37
    %p51 = scmp.eq.s32.totalorder %s15, 1
    %p52 = por %p50, %p51
    %p54 = scmp.ne.s32.totalorder %s37, %s53
    %p55 = scmp.eq.s32.totalorder %s15, 0
    %p56 = por %p54, %p55
    %s58 = sadd.s32 %s57, 1
    %p61 = scmp.eq.s32.totalorder %s9, 1
    %p62 = scmp.ne.s32.totalorder %s57, %s59
    %p63 = scmp.eq.s32.totalorder %s9, 0
    %p64 = por %p62, %p63
    %p65 = scmp.ne.s32.totalorder %s57, %s59
    %p66 = scmp.eq.s32.totalorder %s14, 1
    %p67 = por %p65, %p66
    %p68 = scmp.ne.s32.totalorder %s59, %s60
    %p69 = scmp.eq.s32.totalorder %s14, 0
    %p70 = por %p68, %p69
    %p71 = scmp.ne.s32.totalorder %s59, %s60
    %p72 = scmp.eq.s32.totalorder %s15, 1
    %p73 = por %p71, %p72
    %p75 = scmp.ne.s32.totalorder %s60, %s74
    %p76 = scmp.eq.s32.totalorder %s15, 0
    %p77 = por %p75, %p76
    %s79 = sadd.s32 %s78, 1
    %p82 = scmp.eq.s32.totalorder %s9, 1
    %p83 = scmp.ne.s32.totalorder %s78, %s80
    %p84 = scmp.eq.s32.totalorder %s9, 0
    %p85 = por %p83, %p84
    %p86 = scmp.ne.s32.totalorder %s78, %s80
    %p87 = scmp.eq.s32.totalorder %s14, 1
    %p88 = por %p86, %p87
    %p89 = scmp.ne.s32.totalorder %s80, %s81
    %p90 = scmp.eq.s32.totalorder %s14, 0
    %p91 = por %p89, %p90
    %p92 = scmp.ne.s32.totalorder %s80, %s81
    %p93 = scmp.eq.s32.totalorder %s15, 1
    %p94 = por %p92, %p93
    %p96 = scmp.ne.s32.totalorder %s81, %s95
    %p97 = scmp.eq.s32.totalorder %s15, 0
    %p98 = por %p96, %p97
    %s99 = ssub.s32 %s16, %s28
    %s100 = ssub.s32 %s17, %s24
    %s101 = sor.u32 %s99, %s100
    %p102 = scmp.eq.s32.totalorder %s101, 0
    %s104 = sadd.s32 %s103, 1
    %s105 = scalar_select %p102, %s103, %s104
    %p108 = pneg %p102
    %p109 = scmp.eq.s32.totalorder %s9, 1
    %p110 = por %p108, %p109
    %p111 = scmp.ne.s32.totalorder %s103, %s106
    %p112 = scmp.eq.s32.totalorder %s9, 0
    %p113 = por %p111, %p112
    %p114 = scmp.ne.s32.totalorder %s103, %s106
    %p115 = scmp.eq.s32.totalorder %s14, 1
    %p116 = por %p114, %p115
    %p117 = scmp.ne.s32.totalorder %s106, %s107
    %p118 = scmp.eq.s32.totalorder %s14, 0
    %p119 = por %p117, %p118
    %p120 = scmp.ne.s32.totalorder %s106, %s107
    %p121 = scmp.eq.s32.totalorder %s15, 1
    %p122 = por %p120, %p121
    %p124 = scmp.ne.s32.totalorder %s107, %s123
    %p125 = scmp.eq.s32.totalorder %s15, 0
    %p126 = por %p124, %p125
    %p127 = scmp.le.s32.totalorder 1, %s9
    %p128 = scmp.lt.s32.totalorder %s9, 3
    %p129 = pnand %p127, %p128
    %p130 = pneg %p129
    // Predicated region
    $region9: #{convolution_forward.3} parent=5 // pred_check
      _
    $region10: #{convolution_forward.3} parent=5 // pred_check_branch
      %132 = sbr.rel (%p129) target = $region12
    $region11: #{convolution_forward.3} parent=5 // pred_region
      %s133 = ssub.s32 %s9, 1
      // Predicated region
      $region13: #{convolution_forward.3} parent=11 // pred_check
        %p134 = pneg %p70
      $region14: #{convolution_forward.3} parent=11 // pred_check_branch
        %136 = sbr.rel (%p134) target = $region16
      $region15: #{convolution_forward.3} parent=11 // pred_region
        _
      $region16: #{convolution_forward.3} parent=11 // pred_fallthru
        _
      // Predicated region
      $region17: #{convolution_forward.3} parent=11 // pred_check
        %p137 = pneg %p91
      $region18: #{convolution_forward.3} parent=11 // pred_check_branch
        %139 = sbr.rel (%p137) target = $region20
      $region19: #{convolution_forward.3} parent=11 // pred_region
        _
      $region20: #{convolution_forward.3} parent=11 // pred_fallthru
        _
    $region12: #{convolution_forward.3} parent=5 // pred_fallthru
      _
    %p140 = scmp.lt.s32.totalorder %s9, 2
    // Predicated region
    $region21: #{convolution_forward.3} parent=5 // pred_check
      %p141 = pneg %p140
    $region22: #{convolution_forward.3} parent=5 // pred_check_branch
      %143 = sbr.rel (%p141) target = $region24
    $region23: #{convolution_forward.3} parent=5 // pred_region
      // Predicated region
      $region25: #{convolution_forward.3} parent=23 // pred_check
        %p144 = pneg %p43
      $region26: #{convolution_forward.3} parent=23 // pred_check_branch
        %146 = sbr.rel (%p144) target = $region28
      $region27: #{convolution_forward.3} parent=23 // pred_region
        %s147 = smul.u32 2, %s17
        %p148 = scmp.lt.s32.totalorder %s16, 1
        %s149 = scalar_select %p148, %s16, 1
        %p150 = scmp.lt.s32.totalorder %s147, 1
        %s151 = scalar_select %p150, %s147, 1
        %s152 = smul.addr %s149, 2
        %s153 = sadd.s32 %s151, %s152
        %s154 = smul.addr %s153, 8
        %s155 = scalar_lea.vmem %s0, %s154
        %s156 = smul.u32 2, %s17
      $region28: #{convolution_forward.3} parent=23 // pred_fallthru
        _
    $region24: #{convolution_forward.3} parent=5 // pred_fallthru
      _
    %p157 = scmp.le.s32.totalorder 1, %s9
    %p158 = scmp.lt.s32.totalorder %s9, 3
    %p159 = pnand %p157, %p158
    %p160 = pneg %p159
    // Predicated region
    $region29: #{convolution_forward.3} parent=5 // pred_check
      _
    $region30: #{convolution_forward.3} parent=5 // pred_check_branch
      %162 = sbr.rel (%p159) target = $region32
    $region31: #{convolution_forward.3} parent=5 // pred_region
      %s163 = ssub.s32 %s9, 1
      %s164 = smul.u32 2, %s19
      %p165 = scmp.lt.s32.totalorder %s18, 1
      %s166 = scalar_select %p165, %s18, 1
      %p167 = scmp.lt.s32.totalorder %s164, 1
      %s168 = scalar_select %p167, %s164, 1
      %s169 = smul.addr %s166, 2
      %s170 = sadd.s32 %s168, %s169
      %s171 = smul.addr %s170, 8
      %s172 = scalar_lea.vmem %s0, %s171
      %p173 = pneg %p49
      %p174 = pneg %p46
      %p175 = pneg %p70
      %p176 = pneg %p67
      %p177 = pneg %p91
      %p178 = pneg %p88
      %p179 = pneg %p119
      %p180 = pneg %p116
      %s181 = smul.u32 2, %s19
      %p182 = scmp.lt.s32.totalorder %s18, 1
      %s183 = scalar_select %p182, %s18, 1
      %p184 = scmp.lt.s32.totalorder %s181, 1
      %s185 = scalar_select %p184, %s181, 1
      %s186 = smul.addr %s183, 2
      %s187 = sadd.s32 %s185, %s186
      %s188 = smul.addr %s187, 8
      %s189 = scalar_lea.vmem %s3, %s188
      %s190 = smul.u32 2, %s19
      %p191 = scmp.lt.s32.totalorder %s18, 1
      %s192 = scalar_select %p191, %s18, 1
      %p193 = scmp.lt.s32.totalorder %s190, 1
      %s194 = scalar_select %p193, %s190, 1
      %s195 = smul.addr %s192, 2
      %s196 = sadd.s32 %s194, %s195
      %s197 = smul.addr %s196, 8
      %s198 = scalar_lea.vmem %s0, %s197
      %s199 = smul.u32 2, %s19
      %s200 = smul.u32 2, %s19
      %p201 = scmp.lt.s32.totalorder %s18, 1
      %s202 = scalar_select %p201, %s18, 1
      %p203 = scmp.lt.s32.totalorder %s200, 1
      %s204 = scalar_select %p203, %s200, 1
      %s205 = smul.addr %s202, 2
      %s206 = sadd.s32 %s204, %s205
      %s207 = smul.addr %s206, 8
      %s208 = scalar_lea.vmem %s3, %s207
      %s209 = smul.u32 2, %s19
      %v210 = vld [vmem:[%s198] sm:$0xff]
      %v211 = vld [vmem:[%s198 + $0x8] sm:$0xff]
      %v212 = vld [vmem:[%s1] sm:$0xff]
      %214 = vset.pattern.permute.xlu0 0
      %215 = vperm.xlu0 %214, %v212
      %v216 = vpop.permute.xlu0 %215
      %v218 = vmul.f32 %v210, %v216
      %v219 = vmul.f32 %v211, %v216
      %v220 = vld [vmem:[%s2] sm:$0xff]
      %222 = vset.pattern.permute.xlu0 0
      %223 = vperm.xlu0 %222, %v220
      %v224 = vpop.permute.xlu0 %223
      %v226 = vadd.f32 %v218, %v224
      %v227 = vadd.f32 %v219, %v224
      %vm228 = vcmp.gt.f32.partialorder %v226, 0.0
      %vm229 = vcmp.gt.f32.partialorder %v227, 0.0
      %v230 = vmul.f32 %v226, 0.01
      %v231 = vmul.f32 %v227, 0.01
      %v232 = vsel %vm228, %v226, %v230
      %v233 = vsel %vm229, %v227, %v231
      %234 = vst [vmem:[%s208] sm:$0xff] %v232
      %235 = vst [vmem:[%s208 + $0x8] sm:$0xff] %v233
      %s236 = smul.u32 2, %s19
      %p237 = scmp.lt.s32.totalorder %s18, 1
      %s238 = scalar_select %p237, %s18, 1
      %p239 = scmp.lt.s32.totalorder %s236, 1
      %s240 = scalar_select %p239, %s236, 1
      %s241 = smul.addr %s238, 2
      %s242 = sadd.s32 %s240, %s241
      %s243 = smul.addr %s242, 8
      %s244 = scalar_lea.vmem %s3, %s243
      // Predicated region
      $region33: #{convolution_forward.3} parent=31 // pred_check
        %p245 = pneg %p116
      $region34: #{convolution_forward.3} parent=31 // pred_check_branch
        %247 = sbr.rel (%p245) target = $region36
      $region35: #{convolution_forward.3} parent=31 // pred_region
        %s248 = smul.u32 2, %s19
      $region36: #{convolution_forward.3} parent=31 // pred_fallthru
        _
    $region32: #{convolution_forward.3} parent=5 // pred_fallthru
      _
    %p249 = scmp.le.s32.totalorder 2, %s9
    // Predicated region
    $region37: #{convolution_forward.3} parent=5 // pred_check
      %p250 = pneg %p249
    $region38: #{convolution_forward.3} parent=5 // pred_check_branch
      %252 = sbr.rel (%p250) target = $region40
    $region39: #{convolution_forward.3} parent=5 // pred_region
      %s253 = ssub.s32 %s9, 2
      // Predicated region
      $region41: #{convolution_forward.3} parent=39 // pred_check
        %p254 = pneg %p122
      $region42: #{convolution_forward.3} parent=39 // pred_check_branch
        %256 = sbr.rel (%p254) target = $region44
      $region43: #{convolution_forward.3} parent=39 // pred_region
        %s257 = smul.u32 2, %s21
        %p258 = scmp.lt.s32.totalorder %s20, 1
        %s259 = scalar_select %p258, %s20, 1
        %p260 = scmp.lt.s32.totalorder %s257, 1
        %s261 = scalar_select %p260, %s257, 1
        %s262 = smul.addr %s259, 2
        %s263 = sadd.s32 %s261, %s262
        %s264 = smul.addr %s263, 8
        %s265 = scalar_lea.vmem %s3, %s264
      $region44: #{convolution_forward.3} parent=39 // pred_fallthru
        _
    $region40: #{convolution_forward.3} parent=5 // pred_fallthru
      _
  $region6: #{convolution_forward.3} parent=0 // loop_footer
    %s13 = sadd.s32 1, %s9
  $region7: #{convolution_forward.3} parent=0 // loop_footer_branch
    %8 = sbr.rel target = $region3
  $region8: #{convolution_forward.3} parent=0 // loop_exit
    _

// kernel: convolution_forward.2
$region0: #{convolution_forward.2}
  #allocation0 [shape = 'u32[]', space=smem, size = 0x4, offset = 0x4, fixed_abs, tag = 'smem constant byte address 0x4 - core index']
  #allocation1 [shape = 'u32[144,128]{1,0:T(1,128)}', space=vmem, size = 0x12000, scoped, tag = 'internal scratch']
  %s0 = inlined_call_operand.vmem [shape: bf16[2,18,18,4], index: 0, kind: input, shape index: {}]
  %s1 = inlined_call_operand.vmem [shape: bf16[9,4,8], index: 1, kind: input, shape index: {}]
  %s2 = inlined_call_operand.vmem [shape: f32[2,8,256], index: 2, kind: output, shape index: {0}]
  %s3 = inlined_call_operand.vmem [shape: f32[2,1,1,8], index: 3, kind: output, shape index: {1}]
  %s4 = inlined_call_operand.vmem [shape: f32[2,1,1,8], index: 4, kind: output, shape index: {2}]
  %5 = xla_tuple %s2, %s3, %s4
  %s6 = sld [smem:[#allocation0]]
  $region57: #{convolution_forward.2} parent=0
    _
  %s8 = ssub.s32 1, %s6
  %s9 = scalar_select 0, %s8, %s6
  loop: start=0, step=1, limit=4
  $region2: #{convolution_forward.2} parent=0 // loop_pre_header
    _
  $region3: #{convolution_forward.2} parent=0 // loop_header
    %s11 = sphi 0, %s15
    %p12 = scmp.ge.s32.totalorder %s11, 4
    %s18 = sphi 0, %s30
    %s19 = sphi 0, %s26
    %s20 = sphi 0, %s18
    %s21 = sphi 0, %s19
    %s22 = sphi 0, %s20
    %s23 = sphi 0, %s21
    %s33 = sphi 0, %s35
    %s36 = sphi 0, %s33
    %s37 = sphi 0, %s36
    %s53 = sphi 0, %s37
    %s57 = sphi 0, %s57
    %s59 = sphi 0, %s57
    %s60 = sphi 0, %s59
    %s74 = sphi 0, %s60
    %s82 = sphi 0, %s84
    %s85 = sphi 0, %s82
    %s86 = sphi 0, %s85
    %s102 = sphi 0, %s86
    %s110 = sphi 0, %s112
    %s113 = sphi 0, %s110
    %s114 = sphi 0, %s113
    %s130 = sphi 0, %s114
    %s138 = sphi 0, %s140
    %s141 = sphi 0, %s138
    %s142 = sphi 0, %s141
    %s158 = sphi 0, %s142
  $region4: #{convolution_forward.2} parent=0 // loop_header_branch
    %14 = sbr.rel (%p12) target = $region8
  $region5: #{convolution_forward.2} parent=0 // loop_body
    %s16 = ssub.s32 %s11, 1
    %s17 = ssub.s32 %s11, 2
    %s24 = sadd.s32 1, %s19
    %p25 = scmp.ge.s32.totalorder %s24, 1
    %s26 = scalar_select %p25, 0, %s24
    %s27 = sadd.s32 1, %s18
    %s28 = scalar_select %p25, %s27, %s18
    %p29 = scmp.ge.s32.totalorder %s28, 2
    %s30 = scalar_select %p29, 0, %s28
    %s31 = ssub.s32 %s18, %s30
    %p32 = scmp.eq.s32.totalorder %s31, 0
    %s34 = sadd.s32 %s33, 1
    %s35 = scalar_select %p32, %s33, %s34
    %p38 = pneg %p32
    %p39 = scmp.eq.s32.totalorder %s11, 1
    %p40 = por %p38, %p39
    %p41 = scmp.ne.s32.totalorder %s33, %s36
    %p42 = scmp.eq.s32.totalorder %s11, 0
    %p43 = por %p41, %p42
    %p44 = scmp.ne.s32.totalorder %s33, %s36
    %p45 = scmp.eq.s32.totalorder %s16, 1
    %p46 = por %p44, %p45
    %p47 = scmp.ne.s32.totalorder %s36, %s37
    %p48 = scmp.eq.s32.totalorder %s16, 0
    %p49 = por %p47, %p48
    %p50 = scmp.ne.s32.totalorder %s36, %s37
    %p51 = scmp.eq.s32.totalorder %s17, 1
    %p52 = por %p50, %p51
    %p54 = scmp.ne.s32.totalorder %s37, %s53
    %p55 = scmp.eq.s32.totalorder %s17, 0
    %p56 = por %p54, %p55
    %s58 = sadd.s32 %s57, 1
    %p61 = scmp.eq.s32.totalorder %s11, 1
    %p62 = scmp.ne.s32.totalorder %s57, %s59
    %p63 = scmp.eq.s32.totalorder %s11, 0
    %p64 = por %p62, %p63
    %p65 = scmp.ne.s32.totalorder %s57, %s59
    %p66 = scmp.eq.s32.totalorder %s16, 1
    %p67 = por %p65, %p66
    %p68 = scmp.ne.s32.totalorder %s59, %s60
    %p69 = scmp.eq.s32.totalorder %s16, 0
    %p70 = por %p68, %p69
    %p71 = scmp.ne.s32.totalorder %s59, %s60
    %p72 = scmp.eq.s32.totalorder %s17, 1
    %p73 = por %p71, %p72
    %p75 = scmp.ne.s32.totalorder %s60, %s74
    %p76 = scmp.eq.s32.totalorder %s17, 0
    %p77 = por %p75, %p76
    %s78 = ssub.s32 %s18, %s30
    %s79 = ssub.s32 %s19, %s26
    %s80 = sor.u32 %s78, %s79
    %p81 = scmp.eq.s32.totalorder %s80, 0
    %s83 = sadd.s32 %s82, 1
    %s84 = scalar_select %p81, %s82, %s83
    %p87 = pneg %p81
    %p88 = scmp.eq.s32.totalorder %s11, 1
    %p89 = por %p87, %p88
    %p90 = scmp.ne.s32.totalorder %s82, %s85
    %p91 = scmp.eq.s32.totalorder %s11, 0
    %p92 = por %p90, %p91
    %p93 = scmp.ne.s32.totalorder %s82, %s85
    %p94 = scmp.eq.s32.totalorder %s16, 1
    %p95 = por %p93, %p94
    %p96 = scmp.ne.s32.totalorder %s85, %s86
    %p97 = scmp.eq.s32.totalorder %s16, 0
    %p98 = por %p96, %p97
    %p99 = scmp.ne.s32.totalorder %s85, %s86
    %p100 = scmp.eq.s32.totalorder %s17, 1
    %p101 = por %p99, %p100
    %p103 = scmp.ne.s32.totalorder %s86, %s102
    %p104 = scmp.eq.s32.totalorder %s17, 0
    %p105 = por %p103, %p104
    %s106 = ssub.s32 %s18, %s30
    %s107 = ssub.s32 %s19, %s26
    %s108 = sor.u32 %s106, %s107
    %p109 = scmp.eq.s32.totalorder %s108, 0
    %s111 = sadd.s32 %s110, 1
    %s112 = scalar_select %p109, %s110, %s111
    %p115 = pneg %p109
    %p116 = scmp.eq.s32.totalorder %s11, 1
    %p117 = por %p115, %p116
    %p118 = scmp.ne.s32.totalorder %s110, %s113
    %p119 = scmp.eq.s32.totalorder %s11, 0
    %p120 = por %p118, %p119
    %p121 = scmp.ne.s32.totalorder %s110, %s113
    %p122 = scmp.eq.s32.totalorder %s16, 1
    %p123 = por %p121, %p122
    %p124 = scmp.ne.s32.totalorder %s113, %s114
    %p125 = scmp.eq.s32.totalorder %s16, 0
    %p126 = por %p124, %p125
    %p127 = scmp.ne.s32.totalorder %s113, %s114
    %p128 = scmp.eq.s32.totalorder %s17, 1
    %p129 = por %p127, %p128
    %p131 = scmp.ne.s32.totalorder %s114, %s130
    %p132 = scmp.eq.s32.totalorder %s17, 0
    %p133 = por %p131, %p132
    %s134 = ssub.s32 %s18, %s30
    %s135 = ssub.s32 %s19, %s26
    %s136 = sor.u32 %s134, %s135
    %p137 = scmp.eq.s32.totalorder %s136, 0
    %s139 = sadd.s32 %s138, 1
    %s140 = scalar_select %p137, %s138, %s139
    %p143 = pneg %p137
    %p144 = scmp.eq.s32.totalorder %s11, 1
    %p145 = por %p143, %p144
    %p146 = scmp.ne.s32.totalorder %s138, %s141
    %p147 = scmp.eq.s32.totalorder %s11, 0
    %p148 = por %p146, %p147
    %p149 = scmp.ne.s32.totalorder %s138, %s141
    %p150 = scmp.eq.s32.totalorder %s16, 1
    %p151 = por %p149, %p150
    %p152 = scmp.ne.s32.totalorder %s141, %s142
    %p153 = scmp.eq.s32.totalorder %s16, 0
    %p154 = por %p152, %p153
    %p155 = scmp.ne.s32.totalorder %s141, %s142
    %p156 = scmp.eq.s32.totalorder %s17, 1
    %p157 = por %p155, %p156
    %p159 = scmp.ne.s32.totalorder %s142, %s158
    %p160 = scmp.eq.s32.totalorder %s17, 0
    %p161 = por %p159, %p160
    %p162 = scmp.le.s32.totalorder 1, %s11
    %p163 = scmp.lt.s32.totalorder %s11, 3
    %p164 = pnand %p162, %p163
    %p165 = pneg %p164
    // Predicated region
    $region9: #{convolution_forward.2} parent=5 // pred_check
      _
    $region10: #{convolution_forward.2} parent=5 // pred_check_branch
      %167 = sbr.rel (%p164) target = $region12
    $region11: #{convolution_forward.2} parent=5 // pred_region
      %s168 = ssub.s32 %s11, 1
      // Predicated region
      $region13: #{convolution_forward.2} parent=11 // pred_check
        %p169 = pneg %p70
      $region14: #{convolution_forward.2} parent=11 // pred_check_branch
        %171 = sbr.rel (%p169) target = $region16
      $region15: #{convolution_forward.2} parent=11 // pred_region
        _
      $region16: #{convolution_forward.2} parent=11 // pred_fallthru
        _
    $region12: #{convolution_forward.2} parent=5 // pred_fallthru
      _
    %p172 = scmp.lt.s32.totalorder %s11, 2
    // Predicated region
    $region17: #{convolution_forward.2} parent=5 // pred_check
      %p173 = pneg %p172
    $region18: #{convolution_forward.2} parent=5 // pred_check_branch
      %175 = sbr.rel (%p173) target = $region20
    $region19: #{convolution_forward.2} parent=5 // pred_region
      // Predicated region
      $region21: #{convolution_forward.2} parent=19 // pred_check
        %p176 = pneg %p43
      $region22: #{convolution_forward.2} parent=19 // pred_check_branch
        %178 = sbr.rel (%p176) target = $region24
      $region23: #{convolution_forward.2} parent=19 // pred_region
        %p179 = scmp.lt.s32.totalorder %s18, 1
        %s180 = scalar_select %p179, %s18, 1
        %s181 = smul.addr %s180, 54
        %s182 = smul.addr %s181, 4
        %s183 = scalar_lea.vmem %s0, %s182
      $region24: #{convolution_forward.2} parent=19 // pred_fallthru
        _
    $region20: #{convolution_forward.2} parent=5 // pred_fallthru
      _
    %p184 = scmp.le.s32.totalorder 1, %s11
    %p185 = scmp.lt.s32.totalorder %s11, 3
    %p186 = pnand %p184, %p185
    %p187 = pneg %p186
    // Predicated region
    $region25: #{convolution_forward.2} parent=5 // pred_check
      _
    $region26: #{convolution_forward.2} parent=5 // pred_check_branch
      %189 = sbr.rel (%p186) target = $region28
    $region27: #{convolution_forward.2} parent=5 // pred_region
      %s190 = ssub.s32 %s11, 1
      %p191 = scmp.lt.s32.totalorder %s20, 1
      %s192 = scalar_select %p191, %s20, 1
      %s193 = smul.addr %s192, 54
      %s194 = smul.addr %s193, 4
      %s195 = scalar_lea.vmem %s0, %s194
      %p196 = pneg %p49
      %p197 = pneg %p46
      %p198 = pneg %p70
      %p199 = pneg %p67
      %p200 = pneg %p98
      %p201 = pneg %p95
      %s202 = smul.u32 2, %s21
      %p203 = scmp.lt.s32.totalorder %s20, 1
      %s204 = scalar_select %p203, %s20, 1
      %p205 = scmp.lt.s32.totalorder %s202, 1
      %s206 = scalar_select %p205, %s202, 1
      %s207 = smul.addr %s204, 2
      %s208 = sadd.s32 %s206, %s207
      %s209 = smul.addr %s208, 8
      %s210 = scalar_lea.vmem %s2, %s209
      %p211 = pneg %p126
      %p212 = pneg %p123
      %p213 = scmp.lt.s32.totalorder %s20, 1
      %s214 = scalar_select %p213, %s20, 1
      %p215 = scmp.lt.s32.totalorder %s21, 0
      %s216 = scalar_select %p215, %s21, 0
      %s217 = sadd.s32 %s216, %s214
      %s218 = scalar_lea.vmem %s3, %s217
      %p219 = pneg %p154
      %p220 = pneg %p151
      %p221 = scmp.lt.s32.totalorder %s20, 1
      %s222 = scalar_select %p221, %s20, 1
      %p223 = scmp.lt.s32.totalorder %s21, 0
      %s224 = scalar_select %p223, %s21, 0
      %s225 = sadd.s32 %s224, %s222
      %s226 = scalar_lea.vmem %s4, %s225
      %p227 = scmp.lt.s32.totalorder %s20, 1
      %s228 = scalar_select %p227, %s20, 1
      %s229 = smul.addr %s228, 54
      %s230 = smul.addr %s229, 4
      %s231 = scalar_lea.vmem %s0, %s230
      %s232 = smul.u32 2, %s21
      %p233 = scmp.lt.s32.totalorder %s20, 1
      %s234 = scalar_select %p233, %s20, 1
      %p235 = scmp.lt.s32.totalorder %s232, 1
      %s236 = scalar_select %p235, %s232, 1
      %s237 = smul.addr %s234, 2
      %s238 = sadd.s32 %s236, %s237
      %s239 = smul.addr %s238, 8
      %s240 = scalar_lea.vmem %s2, %s239
      %s241 = smul.u32 2, %s21
      %p242 = scmp.lt.s32.totalorder %s20, 1
      %s243 = scalar_select %p242, %s20, 1
      %p244 = scmp.lt.s32.totalorder %s21, 0
      %s245 = scalar_select %p244, %s21, 0
      %s246 = sadd.s32 %s245, %s243
      %s247 = scalar_lea.vmem %s3, %s246
      %p248 = scmp.lt.s32.totalorder %s20, 1
      %s249 = scalar_select %p248, %s20, 1
      %p250 = scmp.lt.s32.totalorder %s21, 0
      %s251 = scalar_select %p250, %s21, 0
      %s252 = sadd.s32 %s251, %s249
      %s253 = scalar_lea.vmem %s4, %s252
      %s255 = smul.u32 %s21, 16
      %s256 = smul.u32 %s255, 3
      %s257 = smul.addr %s256, 4
      %s258 = scalar_lea.vmem %s231, %s257
      %v259 = vld [vmem:[%s258] sm:$0xf]
      %v260 = vld [vmem:[%s258 + $0x4] sm:$0xf]
      %v261 = vld [vmem:[%s258 + $0xc] sm:$0xf]
      %v262 = vld [vmem:[%s258 + $0x10] sm:$0xf]
      %v263 = vld [vmem:[%s258 + $0x18] sm:$0xf]
      %v264 = vld [vmem:[%s258 + $0x1c] sm:$0xf]
      %v265 = vld [vmem:[%s258 + $0x24] sm:$0xf]
      %v266 = vld [vmem:[%s258 + $0x28] sm:$0xf]
      %v267 = vld [vmem:[%s258 + $0x30] sm:$0xf]
      %v268 = vld [vmem:[%s258 + $0x34] sm:$0xf]
      %v269 = vld [vmem:[%s258 + $0x3c] sm:$0xf]
      %v270 = vld [vmem:[%s258 + $0x40] sm:$0xf]
      %v271 = vld [vmem:[%s258 + $0x48] sm:$0xf]
      %v272 = vld [vmem:[%s258 + $0x4c] sm:$0xf]
      %v273 = vld [vmem:[%s258 + $0x54] sm:$0xf]
      %v274 = vld [vmem:[%s258 + $0x58] sm:$0xf]
      %v275 = vld [vmem:[%s258 + $0x60] sm:$0xf]
      %v276 = vld [vmem:[%s258 + $0x64] sm:$0xf]
      %v277 = vld [vmem:[%s258 + $0x6c] sm:$0xf]
      %v278 = vld [vmem:[%s258 + $0x70] sm:$0xf]
      %v279 = vld [vmem:[%s258 + $0x78] sm:$0xf]
      %v280 = vld [vmem:[%s258 + $0x7c] sm:$0xf]
      %v281 = vld [vmem:[%s258 + $0x84] sm:$0xf]
      %v282 = vld [vmem:[%s258 + $0x88] sm:$0xf]
      %v283 = vld [vmem:[%s258 + $0x90] sm:$0xf]
      %v284 = vld [vmem:[%s258 + $0x94] sm:$0xf]
      %v285 = vld [vmem:[%s258 + $0x9c] sm:$0xf]
      %v286 = vld [vmem:[%s258 + $0xa0] sm:$0xf]
      %v287 = vld [vmem:[%s258 + $0xa8] sm:$0xf]
      %v288 = vld [vmem:[%s258 + $0xac] sm:$0xf]
      %v289 = vld [vmem:[%s258 + $0xb4] sm:$0xf]
      %v290 = vld [vmem:[%s258 + $0xb8] sm:$0xf]
      %v291 = vld [vmem:[%s1] sm:$0x3]
      %v292 = vld [vmem:[%s258 + $0x8] sm:$0x1]
      %v293 = vld [vmem:[%s258 + $0x14] sm:$0x1]
      %v294 = vld [vmem:[%s258 + $0x20] sm:$0x1]
      %v295 = vld [vmem:[%s258 + $0x2c] sm:$0x1]
      %v296 = vld [vmem:[%s258 + $0x38] sm:$0x1]
      %v297 = vld [vmem:[%s258 + $0x44] sm:$0x1]
      %v298 = vld [vmem:[%s258 + $0x50] sm:$0x1]
      %v299 = vld [vmem:[%s258 + $0x5c] sm:$0x1]
      %v300 = vld [vmem:[%s258 + $0x68] sm:$0x1]
      %v301 = vld [vmem:[%s258 + $0x74] sm:$0x1]
      %v302 = vld [vmem:[%s258 + $0x80] sm:$0x1]
      %v303 = vld [vmem:[%s258 + $0x8c] sm:$0x1]
      %v304 = vld [vmem:[%s258 + $0x98] sm:$0x1]
      %v305 = vld [vmem:[%s258 + $0xa4] sm:$0x1]
      %v306 = vld [vmem:[%s258 + $0xb0] sm:$0x1]
      %v307 = vld [vmem:[%s258 + $0xbc] sm:$0x1]
      %vm308 = vsmask.f32 3328
      %vm309 = vsmask.f32 7440
      %vm310 = vmor %vm308, %vm309
      %v312 = vshrl.u32 %v259, 16
      %v314 = vrot.slane %v312, 4
      %v315 = vshll.u32 %v259, 16
      %v317 = vrot.slane %v315, 5
      %v318 = vor.u32 %v314, %v317
      %v319 = vrot.slane %v318, 4
      %v321 = vshll.u32 %v260, 16
      %v323 = vrot.slane %v321, 5
      %v324 = vsel %vm310, %v319, %v323
      %v325 = vshrl.u32 %v260, 16
      %v327 = vrot.slane %v325, 4
      %v328 = vor.u32 %v327, %v323
      %v329 = vrot.slane %v328, 4
      %v331 = vshll.u32 %v292, 16
      %v333 = vrot.slane %v331, 5
      %v334 = vsel %vm310, %v329, %v333
      %v336 = vshrl.u32 %v261, 16
      %v338 = vrot.slane %v336, 4
      %v339 = vshll.u32 %v261, 16
      %v341 = vrot.slane %v339, 5
      %v342 = vor.u32 %v338, %v341
      %v343 = vrot.slane %v342, 4
      %v345 = vshll.u32 %v262, 16
      %v347 = vrot.slane %v345, 5
      %v348 = vsel %vm310, %v343, %v347
      %v349 = vshrl.u32 %v262, 16
      %v351 = vrot.slane %v349, 4
      %v352 = vor.u32 %v351, %v347
      %v353 = vrot.slane %v352, 4
      %v355 = vshll.u32 %v293, 16
      %v357 = vrot.slane %v355, 5
      %v358 = vsel %vm310, %v353, %v357
      %v360 = vshrl.u32 %v263, 16
      %v362 = vrot.slane %v360, 4
      %v363 = vshll.u32 %v263, 16
      %v365 = vrot.slane %v363, 5
      %v366 = vor.u32 %v362, %v365
      %v367 = vrot.slane %v366, 4
      %v369 = vshll.u32 %v264, 16
      %v371 = vrot.slane %v369, 5
      %v372 = vsel %vm310, %v367, %v371
      %v373 = vshrl.u32 %v264, 16
      %v375 = vrot.slane %v373, 4
      %v376 = vor.u32 %v375, %v371
      %v377 = vrot.slane %v376, 4
      %v379 = vshll.u32 %v294, 16
      %v381 = vrot.slane %v379, 5
      %v382 = vsel %vm310, %v377, %v381
      %v384 = vshrl.u32 %v265, 16
      %v386 = vrot.slane %v384, 4
      %v387 = vshll.u32 %v265, 16
      %v389 = vrot.slane %v387, 5
      %v390 = vor.u32 %v386, %v389
      %v391 = vrot.slane %v390, 4
      %v393 = vshll.u32 %v266, 16
      %v395 = vrot.slane %v393, 5
      %v396 = vsel %vm310, %v391, %v395
      %v397 = vshrl.u32 %v266, 16
      %v399 = vrot.slane %v397, 4
      %v400 = vor.u32 %v399, %v395
      %v401 = vrot.slane %v400, 4
      %v403 = vshll.u32 %v295, 16
      %v405 = vrot.slane %v403, 5
      %v406 = vsel %vm310, %v401, %v405
      %v408 = vshrl.u32 %v267, 16
      %v410 = vrot.slane %v408, 4
      %v411 = vshll.u32 %v267, 16
      %v413 = vrot.slane %v411, 5
      %v414 = vor.u32 %v410, %v413
      %v415 = vrot.slane %v414, 4
      %v417 = vshll.u32 %v268, 16
      %v419 = vrot.slane %v417, 5
      %v420 = vsel %vm310, %v415, %v419
      %v421 = vshrl.u32 %v268, 16
      %v423 = vrot.slane %v421, 4
      %v424 = vor.u32 %v423, %v419
      %v425 = vrot.slane %v424, 4
      %v427 = vshll.u32 %v296, 16
      %v429 = vrot.slane %v427, 5
      %v430 = vsel %vm310, %v425, %v429
      %v432 = vshrl.u32 %v269, 16
      %v434 = vrot.slane %v432, 4
      %v435 = vshll.u32 %v269, 16
      %v437 = vrot.slane %v435, 5
      %v438 = vor.u32 %v434, %v437
      %v439 = vrot.slane %v438, 4
      %v441 = vshll.u32 %v270, 16
      %v443 = vrot.slane %v441, 5
      %v444 = vsel %vm310, %v439, %v443
      %v445 = vshrl.u32 %v270, 16
      %v447 = vrot.slane %v445, 4
      %v448 = vor.u32 %v447, %v443
      %v449 = vrot.slane %v448, 4
      %v451 = vshll.u32 %v297, 16
      %v453 = vrot.slane %v451, 5
      %v454 = vsel %vm310, %v449, %v453
      %v456 = vshrl.u32 %v271, 16
      %v458 = vrot.slane %v456, 4
      %v459 = vshll.u32 %v271, 16
      %v461 = vrot.slane %v459, 5
      %v462 = vor.u32 %v458, %v461
      %v463 = vrot.slane %v462, 4
      %v465 = vshll.u32 %v272, 16
      %v467 = vrot.slane %v465, 5
      %v468 = vsel %vm310, %v463, %v467
      %v469 = vshrl.u32 %v272, 16
      %v471 = vrot.slane %v469, 4
      %v472 = vor.u32 %v471, %v467
      %v473 = vrot.slane %v472, 4
      %v475 = vshll.u32 %v298, 16
      %v477 = vrot.slane %v475, 5
      %v478 = vsel %vm310, %v473, %v477
      %v480 = vshrl.u32 %v273, 16
      %v482 = vrot.slane %v480, 4
      %v483 = vshll.u32 %v273, 16
      %v485 = vrot.slane %v483, 5
      %v486 = vor.u32 %v482, %v485
      %v487 = vrot.slane %v486, 4
      %v489 = vshll.u32 %v274, 16
      %v491 = vrot.slane %v489, 5
      %v492 = vsel %vm310, %v487, %v491
      %v493 = vshrl.u32 %v274, 16
      %v495 = vrot.slane %v493, 4
      %v496 = vor.u32 %v495, %v491
      %v497 = vrot.slane %v496, 4
      %v499 = vshll.u32 %v299, 16
      %v501 = vrot.slane %v499, 5
      %v502 = vsel %vm310, %v497, %v501
      %v504 = vshrl.u32 %v275, 16
      %v506 = vrot.slane %v504, 4
      %v507 = vshll.u32 %v275, 16
      %v509 = vrot.slane %v507, 5
      %v510 = vor.u32 %v506, %v509
      %v511 = vrot.slane %v510, 4
      %v513 = vshll.u32 %v276, 16
      %v515 = vrot.slane %v513, 5
      %v516 = vsel %vm310, %v511, %v515
      %v517 = vshrl.u32 %v276, 16
      %v519 = vrot.slane %v517, 4
      %v520 = vor.u32 %v519, %v515
      %v521 = vrot.slane %v520, 4
      %v523 = vshll.u32 %v300, 16
      %v525 = vrot.slane %v523, 5
      %v526 = vsel %vm310, %v521, %v525
      %v528 = vshrl.u32 %v277, 16
      %v530 = vrot.slane %v528, 4
      %v531 = vshll.u32 %v277, 16
      %v533 = vrot.slane %v531, 5
      %v534 = vor.u32 %v530, %v533
      %v535 = vrot.slane %v534, 4
      %v537 = vshll.u32 %v278, 16
      %v539 = vrot.slane %v537, 5
      %v540 = vsel %vm310, %v535, %v539
      %v541 = vshrl.u32 %v278, 16
      %v543 = vrot.slane %v541, 4
      %v544 = vor.u32 %v543, %v539
      %v545 = vrot.slane %v544, 4
      %v547 = vshll.u32 %v301, 16
      %v549 = vrot.slane %v547, 5
      %v550 = vsel %vm310, %v545, %v549
      %v552 = vshrl.u32 %v279, 16
      %v554 = vrot.slane %v552, 4
      %v555 = vshll.u32 %v279, 16
      %v557 = vrot.slane %v555, 5
      %v558 = vor.u32 %v554, %v557
      %v559 = vrot.slane %v558, 4
      %v561 = vshll.u32 %v280, 16
      %v563 = vrot.slane %v561, 5
      %v564 = vsel %vm310, %v559, %v563
      %v565 = vshrl.u32 %v280, 16
      %v567 = vrot.slane %v565, 4
      %v568 = vor.u32 %v567, %v563
      %v569 = vrot.slane %v568, 4
      %v571 = vshll.u32 %v302, 16
      %v573 = vrot.slane %v571, 5
      %v574 = vsel %vm310, %v569, %v573
      %v576 = vshrl.u32 %v281, 16
      %v578 = vrot.slane %v576, 4
      %v579 = vshll.u32 %v281, 16
      %v581 = vrot.slane %v579, 5
      %v582 = vor.u32 %v578, %v581
      %v583 = vrot.slane %v582, 4
      %v585 = vshll.u32 %v282, 16
      %v587 = vrot.slane %v585, 5
      %v588 = vsel %vm310, %v583, %v587
      %v589 = vshrl.u32 %v282, 16
      %v591 = vrot.slane %v589, 4
      %v592 = vor.u32 %v591, %v587
      %v593 = vrot.slane %v592, 4
      %v595 = vshll.u32 %v303, 16
      %v597 = vrot.slane %v595, 5
      %v598 = vsel %vm310, %v593, %v597
      %v600 = vshrl.u32 %v283, 16
      %v602 = vrot.slane %v600, 4
      %v603 = vshll.u32 %v283, 16
      %v605 = vrot.slane %v603, 5
      %v606 = vor.u32 %v602, %v605
      %v607 = vrot.slane %v606, 4
      %v609 = vshll.u32 %v284, 16
      %v611 = vrot.slane %v609, 5
      %v612 = vsel %vm310, %v607, %v611
      %v613 = vshrl.u32 %v284, 16
      %v615 = vrot.slane %v613, 4
      %v616 = vor.u32 %v615, %v611
      %v617 = vrot.slane %v616, 4
      %v619 = vshll.u32 %v304, 16
      %v621 = vrot.slane %v619, 5
      %v622 = vsel %vm310, %v617, %v621
      %v624 = vshrl.u32 %v285, 16
      %v626 = vrot.slane %v624, 4
      %v627 = vshll.u32 %v285, 16
      %v629 = vrot.slane %v627, 5
      %v630 = vor.u32 %v626, %v629
      %v631 = vrot.slane %v630, 4
      %v633 = vshll.u32 %v286, 16
      %v635 = vrot.slane %v633, 5
      %v636 = vsel %vm310, %v631, %v635
      %v637 = vshrl.u32 %v286, 16
      %v639 = vrot.slane %v637, 4
      %v640 = vor.u32 %v639, %v635
      %v641 = vrot.slane %v640, 4
      %v643 = vshll.u32 %v305, 16
      %v645 = vrot.slane %v643, 5
      %v646 = vsel %vm310, %v641, %v645
      %v648 = vshrl.u32 %v287, 16
      %v650 = vrot.slane %v648, 4
      %v651 = vshll.u32 %v287, 16
      %v653 = vrot.slane %v651, 5
      %v654 = vor.u32 %v650, %v653
      %v655 = vrot.slane %v654, 4
      %v657 = vshll.u32 %v288, 16
      %v659 = vrot.slane %v657, 5
      %v660 = vsel %vm310, %v655, %v659
      %v661 = vshrl.u32 %v288, 16
      %v663 = vrot.slane %v661, 4
      %v664 = vor.u32 %v663, %v659
      %v665 = vrot.slane %v664, 4
      %v667 = vshll.u32 %v306, 16
      %v669 = vrot.slane %v667, 5
      %v670 = vsel %vm310, %v665, %v669
      %v672 = vshrl.u32 %v289, 16
      %v674 = vrot.slane %v672, 4
      %v675 = vshll.u32 %v289, 16
      %v677 = vrot.slane %v675, 5
      %v678 = vor.u32 %v674, %v677
      %v679 = vrot.slane %v678, 4
      %v681 = vshll.u32 %v290, 16
      %v683 = vrot.slane %v681, 5
      %v684 = vsel %vm310, %v679, %v683
      %v685 = vshrl.u32 %v290, 16
      %v687 = vrot.slane %v685, 4
      %v688 = vor.u32 %v687, %v683
      %v689 = vrot.slane %v688, 4
      %v691 = vshll.u32 %v307, 16
      %v693 = vrot.slane %v691, 5
      %v694 = vsel %vm310, %v689, %v693
      %s695 = scalar_lea.vmem %s1, 2
      %v696 = vld [vmem:[%s695] sm:$0x3]
      %v697 = vunpack.c.l.b16 %v324
      %v698 = vunpack.c.l.b16 %v334
      %v699 = vunpack.c.l.b16 %v348
      %v700 = vunpack.c.l.b16 %v358
      %v701 = vunpack.c.l.b16 %v372
      %v702 = vunpack.c.l.b16 %v382
      %v703 = vunpack.c.l.b16 %v396
      %v704 = vunpack.c.l.b16 %v406
      %v705 = vunpack.c.l.b16 %v420
      %v706 = vunpack.c.l.b16 %v430
      %v707 = vunpack.c.l.b16 %v444
      %v708 = vunpack.c.l.b16 %v454
      %v709 = vunpack.c.l.b16 %v468
      %v710 = vunpack.c.l.b16 %v478
      %v711 = vunpack.c.l.b16 %v492
      %v712 = vunpack.c.l.b16 %v502
      %v713 = vunpack.c.l.b16 %v516
      %v714 = vunpack.c.l.b16 %v526
      %v715 = vunpack.c.l.b16 %v540
      %v716 = vunpack.c.l.b16 %v550
      %v717 = vunpack.c.l.b16 %v564
      %v718 = vunpack.c.l.b16 %v574
      %v719 = vunpack.c.l.b16 %v588
      %v720 = vunpack.c.l.b16 %v598
      %v721 = vunpack.c.l.b16 %v612
      %v722 = vunpack.c.l.b16 %v622
      %v723 = vunpack.c.l.b16 %v636
      %v724 = vunpack.c.l.b16 %v646
      %v725 = vunpack.c.l.b16 %v660
      %v726 = vunpack.c.l.b16 %v670
      %v727 = vunpack.c.l.b16 %v684
      %v728 = vunpack.c.l.b16 %v694
      %v729 = vpack.c.b16 %v698, %v697
      %v730 = vpack.c.b16 %v700, %v699
      %v731 = vpack.c.b16 %v702, %v701
      %v732 = vpack.c.b16 %v704, %v703
      %v733 = vpack.c.b16 %v706, %v705
      %v734 = vpack.c.b16 %v708, %v707
      %v735 = vpack.c.b16 %v710, %v709
      %v736 = vpack.c.b16 %v712, %v711
      %v737 = vpack.c.b16 %v714, %v713
      %v738 = vpack.c.b16 %v716, %v715
      %v739 = vpack.c.b16 %v718, %v717
      %v740 = vpack.c.b16 %v720, %v719
      %v741 = vpack.c.b16 %v722, %v721
      %v742 = vpack.c.b16 %v724, %v723
      %v743 = vpack.c.b16 %v726, %v725
      %v744 = vpack.c.b16 %v728, %v727
      %vm745 = vcmask 31744
      %v747 = vsel %vm745, %v729, 0
      %v750 = vsel %vm745, %v730, 0
      %v753 = vsel %vm745, %v731, 0
      %v756 = vsel %vm745, %v732, 0
      %v759 = vsel %vm745, %v733, 0
      %v762 = vsel %vm745, %v734, 0
      %v765 = vsel %vm745, %v735, 0
      %v768 = vsel %vm745, %v736, 0
      %v771 = vsel %vm745, %v737, 0
      %v774 = vsel %vm745, %v738, 0
      %v777 = vsel %vm745, %v739, 0
      %v780 = vsel %vm745, %v740, 0
      %v783 = vsel %vm745, %v741, 0
      %v786 = vsel %vm745, %v742, 0
      %v789 = vsel %vm745, %v743, 0
      %v792 = vsel %vm745, %v744, 0
      %vm794 = vcmask 1041408
      %v796 = vsel %vm794, %v696, 0
      %798 = vmatprep.subr.bf16.mxu0 0
      %799 = vmatpush1.bf16.msra.mxu0 %v796
      %800 = vmatprep.subr.bf16.mxu0 0
      %801 = vmatpush1.bf16.msra.mxu0 0
      %802 = vmatprep.subr.bf16.mxu0 0
      %803 = vmatpush1.bf16.msra.mxu0 0
      %804 = vmatprep.subr.bf16.mxu0 0
      %805 = vmatpush1.bf16.msra.mxu0 0
      %806 = vmatprep.subr.bf16.mxu0 0
      %807 = vmatpush1.bf16.msra.mxu0 0
      %808 = vmatprep.subr.bf16.mxu0 0
      %809 = vmatpush1.bf16.msra.mxu0 0
      %810 = vmatprep.subr.bf16.mxu0 0
      %811 = vmatpush1.bf16.msra.mxu0 0
      %812 = vmatprep.subr.bf16.mxu0 0
      %813 = vmatpush1.bf16.msra.mxu0 0
      %814 = vmatprep.subr.bf16.mxu0 0
      %815 = vmatpush1.bf16.msra.mxu0 0
      %816 = vmatprep.subr.bf16.mxu0 0
      %817 = vmatpush1.bf16.msra.mxu0 0
      %818 = vmatprep.subr.bf16.mxu0 0
      %819 = vmatpush1.bf16.msra.mxu0 0
      %820 = vmatprep.subr.bf16.mxu0 0
      %821 = vmatpush1.bf16.msra.mxu0 0
      %822 = vmatprep.subr.bf16.mxu0 0
      %823 = vmatpush1.bf16.msra.mxu0 0
      %824 = vmatprep.subr.bf16.mxu0 0
      %825 = vmatpush1.bf16.msra.mxu0 0
      %826 = vmatprep.subr.bf16.mxu0 0
      %827 = vmatpush1.bf16.msra.mxu0 0
      %828 = vmatprep.subr.bf16.mxu0 0
      %829 = vmatpush1.bf16.msra.mxu0 0
      %830 = vmatprep.mubr.bf16.mxu0 0
      %831 = vmatmul.mubr.bf16.gmra.mrb[0].mxu0 %v747
      %v832 = vpop.f32.mrb[0].mxu0
      %v833 = vadd.f32 0.0, %v832
      %v834 = vpop.f32.mrb[0].mxu0
      %v835 = vpop.f32.mrb[0].mxu0
      %v836 = vadd.f32 0.0, %v835
      %v837 = vpop.f32.mrb[0].mxu0
      %838 = vmatprep.mubr.bf16.mxu0 0
      %839 = vmatmul.mubr.bf16.gmra.mrb[0].mxu0 %v750
      %v840 = vpop.f32.mrb[0].mxu0
      %v841 = vadd.f32 0.0, %v840
      %v842 = vpop.f32.mrb[0].mxu0
      %v843 = vpop.f32.mrb[0].mxu0
      %v844 = vadd.f32 0.0, %v843
      %v845 = vpop.f32.mrb[0].mxu0
      %846 = vmatprep.mubr.bf16.mxu0 0
      %847 = vmatmul.mubr.bf16.gmra.mrb[0].mxu0 %v753
      %v848 = vpop.f32.mrb[0].mxu0
      %v849 = vadd.f32 0.0, %v848
      %v850 = vpop.f32.mrb[0].mxu0
      %v851 = vpop.f32.mrb[0].mxu0
      %v852 = vadd.f32 0.0, %v851
      %v853 = vpop.f32.mrb[0].mxu0
      %854 = vmatprep.mubr.bf16.mxu0 0
      %855 = vmatmul.mubr.bf16.gmra.mrb[0].mxu0 %v756
      %v856 = vpop.f32.mrb[0].mxu0
      %v857 = vadd.f32 0.0, %v856
      %v858 = vpop.f32.mrb[0].mxu0
      %v859 = vpop.f32.mrb[0].mxu0
      %v860 = vadd.f32 0.0, %v859
      %v861 = vpop.f32.mrb[0].mxu0
      %862 = vmatprep.mubr.bf16.mxu0 0
      %863 = vmatmul.mubr.bf16.gmra.mrb[0].mxu0 %v759
      %v864 = vpop.f32.mrb[0].mxu0
      %v865 = vadd.f32 0.0, %v864
      %v866 = vpop.f32.mrb[0].mxu0
      %v867 = vpop.f32.mrb[0].mxu0
      %v868 = vadd.f32 0.0, %v867
      %v869 = vpop.f32.mrb[0].mxu0
      %870 = vmatprep.mubr.bf16.mxu0 0
      %871 = vmatmul.mubr.bf16.gmra.mrb[0].mxu0 %v762
      %v872 = vpop.f32.mrb[0].mxu0
      %v873 = vadd.f32 0.0, %v872
      %v874 = vpop.f32.mrb[0].mxu0
      %v875 = vpop.f32.mrb[0].mxu0
      %v876 = vadd.f32 0.0, %v875
      %v877 = vpop.f32.mrb[0].mxu0
      %878 = vmatprep.mubr.bf16.mxu0 0
      %879 = vmatmul.mubr.bf16.gmra.mrb[0].mxu0 %v765
      %v880 = vpop.f32.mrb[0].mxu0
      %v881 = vadd.f32 0.0, %v880
      %v882 = vpop.f32.mrb[0].mxu0
      %v883 = vpop.f32.mrb[0].mxu0
      %v884 = vadd.f32 0.0, %v883
      %v885 = vpop.f32.mrb[0].mxu0
      %886 = vmatprep.mubr.bf16.mxu0 0
      %887 = vmatmul.mubr.bf16.gmra.mrb[0].mxu0 %v768
      %v888 = vpop.f32.mrb[0].mxu0
      %v889 = vadd.f32 0.0, %v888
      %v890 = vpop.f32.mrb[0].mxu0
      %v891 = vpop.f32.mrb[0].mxu0
      %v892 = vadd.f32 0.0, %v891
      %v893 = vpop.f32.mrb[0].mxu0
      %894 = vmatprep.mubr.bf16.mxu0 0
      %895 = vmatmul.mubr.bf16.gmra.mrb[0].mxu0 %v771
      %v896 = vpop.f32.mrb[0].mxu0
      %v897 = vadd.f32 0.0, %v896
      %v898 = vpop.f32.mrb[0].mxu0
      %v899 = vpop.f32.mrb[0].mxu0
      %v900 = vadd.f32 0.0, %v899
      %v901 = vpop.f32.mrb[0].mxu0
      %902 = vmatprep.mubr.bf16.mxu0 0
      %903 = vmatmul.mubr.bf16.gmra.mrb[0].mxu0 %v774
      %v904 = vpop.f32.mrb[0].mxu0
      %v905 = vadd.f32 0.0, %v904
      %v906 = vpop.f32.mrb[0].mxu0
      %v907 = vpop.f32.mrb[0].mxu0
      %v908 = vadd.f32 0.0, %v907
      %v909 = vpop.f32.mrb[0].mxu0
      %910 = vmatprep.mubr.bf16.mxu0 0
      %911 = vmatmul.mubr.bf16.gmra.mrb[0].mxu0 %v777
      %v912 = vpop.f32.mrb[0].mxu0
      %v913 = vadd.f32 0.0, %v912
      %v914 = vpop.f32.mrb[0].mxu0
      %v915 = vpop.f32.mrb[0].mxu0
      %v916 = vadd.f32 0.0, %v915
      %v917 = vpop.f32.mrb[0].mxu0
      %918 = vmatprep.mubr.bf16.mxu0 0
      %919 = vmatmul.mubr.bf16.gmra.mrb[0].mxu0 %v780
      %v920 = vpop.f32.mrb[0].mxu0
      %v921 = vadd.f32 0.0, %v920
      %v922 = vpop.f32.mrb[0].mxu0
      %v923 = vpop.f32.mrb[0].mxu0
      %v924 = vadd.f32 0.0, %v923
      %v925 = vpop.f32.mrb[0].mxu0
      %926 = vmatprep.mubr.bf16.mxu0 0
      %927 = vmatmul.mubr.bf16.gmra.mrb[0].mxu0 %v783
      %v928 = vpop.f32.mrb[0].mxu0
      %v929 = vadd.f32 0.0, %v928
      %v930 = vpop.f32.mrb[0].mxu0
      %v931 = vpop.f32.mrb[0].mxu0
      %v932 = vadd.f32 0.0, %v931
      %v933 = vpop.f32.mrb[0].mxu0
      %934 = vmatprep.mubr.bf16.mxu0 0
      %935 = vmatmul.mubr.bf16.gmra.mrb[0].mxu0 %v786
      %v936 = vpop.f32.mrb[0].mxu0
      %v937 = vadd.f32 0.0, %v936
      %v938 = vpop.f32.mrb[0].mxu0
      %v939 = vpop.f32.mrb[0].mxu0
      %v940 = vadd.f32 0.0, %v939
      %v941 = vpop.f32.mrb[0].mxu0
      %942 = vmatprep.mubr.bf16.mxu0 0
      %943 = vmatmul.mubr.bf16.gmra.mrb[0].mxu0 %v789
      %v944 = vpop.f32.mrb[0].mxu0
      %v945 = vadd.f32 0.0, %v944
      %v946 = vpop.f32.mrb[0].mxu0
      %v947 = vpop.f32.mrb[0].mxu0
      %v948 = vadd.f32 0.0, %v947
      %v949 = vpop.f32.mrb[0].mxu0
      %950 = vmatprep.mubr.bf16.mxu0 0
      %951 = vmatmul.mubr.bf16.gmra.mrb[0].mxu0 %v792
      %v952 = vpop.f32.mrb[0].mxu0
      %v953 = vadd.f32 0.0, %v952
      %v954 = vpop.f32.mrb[0].mxu0
      %v955 = vpop.f32.mrb[0].mxu0
      %v956 = vadd.f32 0.0, %v955
      %v957 = vpop.f32.mrb[0].mxu0
      %958 = vdwg.mxu0
      %v991 = vunpack.c.l.b16 %v259
      %v992 = vunpack.c.l.b16 %v260
      %v993 = vunpack.c.l.b16 %v261
      %v994 = vunpack.c.l.b16 %v262
      %v995 = vunpack.c.l.b16 %v263
      %v996 = vunpack.c.l.b16 %v264
      %v997 = vunpack.c.l.b16 %v265
      %v998 = vunpack.c.l.b16 %v266
      %v999 = vunpack.c.l.b16 %v267
      %v1000 = vunpack.c.l.b16 %v268
      %v1001 = vunpack.c.l.b16 %v269
      %v1002 = vunpack.c.l.b16 %v270
      %v1003 = vunpack.c.l.b16 %v271
      %v1004 = vunpack.c.l.b16 %v272
      %v1005 = vunpack.c.l.b16 %v273
      %v1006 = vunpack.c.l.b16 %v274
      %v1007 = vunpack.c.l.b16 %v275
      %v1008 = vunpack.c.l.b16 %v276
      %v1009 = vunpack.c.l.b16 %v277
      %v1010 = vunpack.c.l.b16 %v278
      %v1011 = vunpack.c.l.b16 %v279
      %v1012 = vunpack.c.l.b16 %v280
      %v1013 = vunpack.c.l.b16 %v281
      %v1014 = vunpack.c.l.b16 %v282
      %v1015 = vunpack.c.l.b16 %v283
      %v1016 = vunpack.c.l.b16 %v284
      %v1017 = vunpack.c.l.b16 %v285
      %v1018 = vunpack.c.l.b16 %v286
      %v1019 = vunpack.c.l.b16 %v287
      %v1020 = vunpack.c.l.b16 %v288
      %v1021 = vunpack.c.l.b16 %v289
      %v1022 = vunpack.c.l.b16 %v290
      %v1023 = vpack.c.b16 %v992, %v991
      %v1024 = vpack.c.b16 %v994, %v993
      %v1025 = vpack.c.b16 %v996, %v995
      %v1026 = vpack.c.b16 %v998, %v997
      %v1027 = vpack.c.b16 %v1000, %v999
      %v1028 = vpack.c.b16 %v1002, %v1001
      %v1029 = vpack.c.b16 %v1004, %v1003
      %v1030 = vpack.c.b16 %v1006, %v1005
      %v1031 = vpack.c.b16 %v1008, %v1007
      %v1032 = vpack.c.b16 %v1010, %v1009
      %v1033 = vpack.c.b16 %v1012, %v1011
      %v1034 = vpack.c.b16 %v1014, %v1013
      %v1035 = vpack.c.b16 %v1016, %v1015
      %v1036 = vpack.c.b16 %v1018, %v1017
      %v1037 = vpack.c.b16 %v1020, %v1019
      %v1038 = vpack.c.b16 %v1022, %v1021
      %v1040 = vsel %vm745, %v1023, 0
      %v1043 = vsel %vm745, %v1024, 0
      %v1046 = vsel %vm745, %v1025, 0
      %v1049 = vsel %vm745, %v1026, 0
      %v1052 = vsel %vm745, %v1027, 0
      %v1055 = vsel %vm745, %v1028, 0
      %v1058 = vsel %vm745, %v1029, 0
      %v1061 = vsel %vm745, %v1030, 0
      %v1064 = vsel %vm745, %v1031, 0
      %v1067 = vsel %vm745, %v1032, 0
      %v1070 = vsel %vm745, %v1033, 0
      %v1073 = vsel %vm745, %v1034, 0
      %v1076 = vsel %vm745, %v1035, 0
      %v1079 = vsel %vm745, %v1036, 0
      %v1082 = vsel %vm745, %v1037, 0
      %v1085 = vsel %vm745, %v1038, 0
      %v1088 = vsel %vm794, %v291, 0
      %1090 = vmatprep.subr.bf16.mxu0 0
      %1091 = vmatpush1.bf16.msra.mxu0 %v1088
      %1092 = vmatprep.subr.bf16.mxu0 0
      %1093 = vmatpush1.bf16.msra.mxu0 0
      %1094 = vmatprep.subr.bf16.mxu0 0
      %1095 = vmatpush1.bf16.msra.mxu0 0
      %1096 = vmatprep.subr.bf16.mxu0 0
      %1097 = vmatpush1.bf16.msra.mxu0 0
      %1098 = vmatprep.subr.bf16.mxu0 0
      %1099 = vmatpush1.bf16.msra.mxu0 0
      %1100 = vmatprep.subr.bf16.mxu0 0
      %1101 = vmatpush1.bf16.msra.mxu0 0
      %1102 = vmatprep.subr.bf16.mxu0 0
      %1103 = vmatpush1.bf16.msra.mxu0 0
      %1104 = vmatprep.subr.bf16.mxu0 0
      %1105 = vmatpush1.bf16.msra.mxu0 0
      %1106 = vmatprep.subr.bf16.mxu0 0
      %1107 = vmatpush1.bf16.msra.mxu0 0
      %1108 = vmatprep.subr.bf16.mxu0 0
      %1109 = vmatpush1.bf16.msra.mxu0 0
      %1110 = vmatprep.subr.bf16.mxu0 0
      %1111 = vmatpush1.bf16.msra.mxu0 0
      %1112 = vmatprep.subr.bf16.mxu0 0
      %1113 = vmatpush1.bf16.msra.mxu0 0
      %1114 = vmatprep.subr.bf16.mxu0 0
      %1115 = vmatpush1.bf16.msra.mxu0 0
      %1116 = vmatprep.subr.bf16.mxu0 0
      %1117 = vmatpush1.bf16.msra.mxu0 0
      %1118 = vmatprep.subr.bf16.mxu0 0
      %1119 = vmatpush1.bf16.msra.mxu0 0
      %1120 = vmatprep.subr.bf16.mxu0 0
      %1121 = vmatpush1.bf16.msra.mxu0 0
      %1122 = vmatprep.mubr.bf16.mxu0 0
      %1123 = vmatmul.mubr.bf16.gmra.mrb[0].mxu0 %v1040
      %v1124 = vpop.f32.mrb[0].mxu0
      %v1125 = vadd.f32 %v833, %v1124
      %v1126 = vpop.f32.mrb[0].mxu0
      %v1127 = vpop.f32.mrb[0].mxu0
      %v1128 = vadd.f32 %v836, %v1127
      %v1129 = vpop.f32.mrb[0].mxu0
      %1130 = vmatprep.mubr.bf16.mxu0 0
      %1131 = vmatmul.mubr.bf16.gmra.mrb[0].mxu0 %v1043
      %v1132 = vpop.f32.mrb[0].mxu0
      %v1133 = vadd.f32 %v841, %v1132
      %v1134 = vpop.f32.mrb[0].mxu0
      %v1135 = vpop.f32.mrb[0].mxu0
      %v1136 = vadd.f32 %v844, %v1135
      %v1137 = vpop.f32.mrb[0].mxu0
      %1138 = vmatprep.mubr.bf16.mxu0 0
      %1139 = vmatmul.mubr.bf16.gmra.mrb[0].mxu0 %v1046
      %v1140 = vpop.f32.mrb[0].mxu0
      %v1141 = vadd.f32 %v849, %v1140
      %v1142 = vpop.f32.mrb[0].mxu0
      %v1143 = vpop.f32.mrb[0].mxu0
      %v1144 = vadd.f32 %v852, %v1143
      %v1145 = vpop.f32.mrb[0].mxu0
      %1146 = vmatprep.mubr.bf16.mxu0 0
      %1147 = vmatmul.mubr.bf16.gmra.mrb[0].mxu0 %v1049
      %v1148 = vpop.f32.mrb[0].mxu0
      %v1149 = vadd.f32 %v857, %v1148
      %v1150 = vpop.f32.mrb[0].mxu0
      %v1151 = vpop.f32.mrb[0].mxu0
      %v1152 = vadd.f32 %v860, %v1151
      %v1153 = vpop.f32.mrb[0].mxu0
      %1154 = vmatprep.mubr.bf16.mxu0 0
      %1155 = vmatmul.mubr.bf16.gmra.mrb[0].mxu0 %v1052
      %v1156 = vpop.f32.mrb[0].mxu0
      %v1157 = vadd.f32 %v865, %v1156
      %v1158 = vpop.f32.mrb[0].mxu0
      %v1159 = vpop.f32.mrb[0].mxu0
      %v1160 = vadd.f32 %v868, %v1159
      %v1161 = vpop.f32.mrb[0].mxu0
      %1162 = vmatprep.mubr.bf16.mxu0 0
      %1163 = vmatmul.mubr.bf16.gmra.mrb[0].mxu0 %v1055
      %v1164 = vpop.f32.mrb[0].mxu0
      %v1165 = vadd.f32 %v873, %v1164
      %v1166 = vpop.f32.mrb[0].mxu0
      %v1167 = vpop.f32.mrb[0].mxu0
      %v1168 = vadd.f32 %v876, %v1167
      %v1169 = vpop.f32.mrb[0].mxu0
      %1170 = vmatprep.mubr.bf16.mxu0 0
      %1171 = vmatmul.mubr.bf16.gmra.mrb[0].mxu0 %v1058
      %v1172 = vpop.f32.mrb[0].mxu0
      %v1173 = vadd.f32 %v881, %v1172
      %v1174 = vpop.f32.mrb[0].mxu0
      %v1175 = vpop.f32.mrb[0].mxu0
      %v1176 = vadd.f32 %v884, %v1175
      %v1177 = vpop.f32.mrb[0].mxu0
      %1178 = vmatprep.mubr.bf16.mxu0 0
      %1179 = vmatmul.mubr.bf16.gmra.mrb[0].mxu0 %v1061
      %v1180 = vpop.f32.mrb[0].mxu0
      %v1181 = vadd.f32 %v889, %v1180
      %v1182 = vpop.f32.mrb[0].mxu0
      %v1183 = vpop.f32.mrb[0].mxu0
      %v1184 = vadd.f32 %v892, %v1183
      %v1185 = vpop.f32.mrb[0].mxu0
      %1186 = vmatprep.mubr.bf16.mxu0 0
      %1187 = vmatmul.mubr.bf16.gmra.mrb[0].mxu0 %v1064
      %v1188 = vpop.f32.mrb[0].mxu0
      %v1189 = vadd.f32 %v897, %v1188
      %v1190 = vpop.f32.mrb[0].mxu0
      %v1191 = vpop.f32.mrb[0].mxu0
      %v1192 = vadd.f32 %v900, %v1191
      %v1193 = vpop.f32.mrb[0].mxu0
      %1194 = vmatprep.mubr.bf16.mxu0 0
      %1195 = vmatmul.mubr.bf16.gmra.mrb[0].mxu0 %v1067
      %v1196 = vpop.f32.mrb[0].mxu0
      %v1197 = vadd.f32 %v905, %v1196
      %v1198 = vpop.f32.mrb[0].mxu0
      %v1199 = vpop.f32.mrb[0].mxu0
      %v1200 = vadd.f32 %v908, %v1199
      %v1201 = vpop.f32.mrb[0].mxu0
      %1202 = vmatprep.mubr.bf16.mxu0 0
      %1203 = vmatmul.mubr.bf16.gmra.mrb[0].mxu0 %v1070
      %v1204 = vpop.f32.mrb[0].mxu0
      %v1205 = vadd.f32 %v913, %v1204
      %v1206 = vpop.f32.mrb[0].mxu0
      %v1207 = vpop.f32.mrb[0].mxu0
      %v1208 = vadd.f32 %v916, %v1207
      %v1209 = vpop.f32.mrb[0].mxu0
      %1210 = vmatprep.mubr.bf16.mxu0 0
      %1211 = vmatmul.mubr.bf16.gmra.mrb[0].mxu0 %v1073
      %v1212 = vpop.f32.mrb[0].mxu0
      %v1213 = vadd.f32 %v921, %v1212
      %v1214 = vpop.f32.mrb[0].mxu0
      %v1215 = vpop.f32.mrb[0].mxu0
      %v1216 = vadd.f32 %v924, %v1215
      %v1217 = vpop.f32.mrb[0].mxu0
      %1218 = vmatprep.mubr.bf16.mxu0 0
      %1219 = vmatmul.mubr.bf16.gmra.mrb[0].mxu0 %v1076
      %v1220 = vpop.f32.mrb[0].mxu0
      %v1221 = vadd.f32 %v929, %v1220
      %v1222 = vpop.f32.mrb[0].mxu0
      %v1223 = vpop.f32.mrb[0].mxu0
      %v1224 = vadd.f32 %v932, %v1223
      %v1225 = vpop.f32.mrb[0].mxu0
      %1226 = vmatprep.mubr.bf16.mxu0 0
      %1227 = vmatmul.mubr.bf16.gmra.mrb[0].mxu0 %v1079
      %v1228 = vpop.f32.mrb[0].mxu0
      %v1229 = vadd.f32 %v937, %v1228
      %v1230 = vpop.f32.mrb[0].mxu0
      %v1231 = vpop.f32.mrb[0].mxu0
      %v1232 = vadd.f32 %v940, %v1231
      %v1233 = vpop.f32.mrb[0].mxu0
      %1234 = vmatprep.mubr.bf16.mxu0 0
      %1235 = vmatmul.mubr.bf16.gmra.mrb[0].mxu0 %v1082
      %v1236 = vpop.f32.mrb[0].mxu0
      %v1237 = vadd.f32 %v945, %v1236
      %v1238 = vpop.f32.mrb[0].mxu0
      %v1239 = vpop.f32.mrb[0].mxu0
      %v1240 = vadd.f32 %v948, %v1239
      %v1241 = vpop.f32.mrb[0].mxu0
      %1242 = vmatprep.mubr.bf16.mxu0 0
      %1243 = vmatmul.mubr.bf16.gmra.mrb[0].mxu0 %v1085
      %v1244 = vpop.f32.mrb[0].mxu0
      %v1245 = vadd.f32 %v953, %v1244
      %v1246 = vpop.f32.mrb[0].mxu0
      %v1247 = vpop.f32.mrb[0].mxu0
      %v1248 = vadd.f32 %v956, %v1247
      %v1249 = vpop.f32.mrb[0].mxu0
      %1250 = vdwg.mxu0
      %v1251 = vld [vmem:[%s258] sm:$0xe]
      %v1252 = vld [vmem:[%s258 + $0xc] sm:$0xe]
      %v1253 = vld [vmem:[%s258 + $0x18] sm:$0xe]
      %v1254 = vld [vmem:[%s258 + $0x24] sm:$0xe]
      %v1255 = vld [vmem:[%s258 + $0x30] sm:$0xe]
      %v1256 = vld [vmem:[%s258 + $0x3c] sm:$0xe]
      %v1257 = vld [vmem:[%s258 + $0x48] sm:$0xe]
      %v1258 = vld [vmem:[%s258 + $0x54] sm:$0xe]
      %v1259 = vld [vmem:[%s258 + $0x60] sm:$0xe]
      %v1260 = vld [vmem:[%s258 + $0x6c] sm:$0xe]
      %v1261 = vld [vmem:[%s258 + $0x78] sm:$0xe]
      %v1262 = vld [vmem:[%s258 + $0x84] sm:$0xe]
      %v1263 = vld [vmem:[%s258 + $0x90] sm:$0xe]
      %v1264 = vld [vmem:[%s258 + $0x9c] sm:$0xe]
      %v1265 = vld [vmem:[%s258 + $0xa8] sm:$0xe]
      %v1266 = vld [vmem:[%s258 + $0xb4] sm:$0xe]
      %vm1299 = vcmask 1042432
      %vm1300 = vcmask 1046532
      %vm1301 = vmor %vm1299, %vm1300
      %v1302 = vrot.slane %v1251, 5
      %v1303 = vrot.slane %v1302, 4
      %v1304 = vrot.slane %v260, 5
      %v1305 = vsel %vm1301, %v1303, %v1304
      %v1306 = vrot.slane %v1304, 4
      %v1307 = vrot.slane %v292, 5
      %v1308 = vsel %vm1301, %v1306, %v1307
      %v1309 = vrot.slane %v1252, 5
      %v1310 = vrot.slane %v1309, 4
      %v1311 = vrot.slane %v262, 5
      %v1312 = vsel %vm1301, %v1310, %v1311
      %v1313 = vrot.slane %v1311, 4
      %v1314 = vrot.slane %v293, 5
      %v1315 = vsel %vm1301, %v1313, %v1314
      %v1316 = vrot.slane %v1253, 5
      %v1317 = vrot.slane %v1316, 4
      %v1318 = vrot.slane %v264, 5
      %v1319 = vsel %vm1301, %v1317, %v1318
      %v1320 = vrot.slane %v1318, 4
      %v1321 = vrot.slane %v294, 5
      %v1322 = vsel %vm1301, %v1320, %v1321
      %v1323 = vrot.slane %v1254, 5
      %v1324 = vrot.slane %v1323, 4
      %v1325 = vrot.slane %v266, 5
      %v1326 = vsel %vm1301, %v1324, %v1325
      %v1327 = vrot.slane %v1325, 4
      %v1328 = vrot.slane %v295, 5
      %v1329 = vsel %vm1301, %v1327, %v1328
      %v1330 = vrot.slane %v1255, 5
      %v1331 = vrot.slane %v1330, 4
      %v1332 = vrot.slane %v268, 5
      %v1333 = vsel %vm1301, %v1331, %v1332
      %v1334 = vrot.slane %v1332, 4
      %v1335 = vrot.slane %v296, 5
      %v1336 = vsel %vm1301, %v1334, %v1335
      %v1337 = vrot.slane %v1256, 5
      %v1338 = vrot.slane %v1337, 4
      %v1339 = vrot.slane %v270, 5
      %v1340 = vsel %vm1301, %v1338, %v1339
      %v1341 = vrot.slane %v1339, 4
      %v1342 = vrot.slane %v297, 5
      %v1343 = vsel %vm1301, %v1341, %v1342
      %v1344 = vrot.slane %v1257, 5
      %v1345 = vrot.slane %v1344, 4
      %v1346 = vrot.slane %v272, 5
      %v1347 = vsel %vm1301, %v1345, %v1346
      %v1348 = vrot.slane %v1346, 4
      %v1349 = vrot.slane %v298, 5
      %v1350 = vsel %vm1301, %v1348, %v1349
      %v1351 = vrot.slane %v1258, 5
      %v1352 = vrot.slane %v1351, 4
      %v1353 = vrot.slane %v274, 5
      %v1354 = vsel %vm1301, %v1352, %v1353
      %v1355 = vrot.slane %v1353, 4
      %v1356 = vrot.slane %v299, 5
      %v1357 = vsel %vm1301, %v1355, %v1356
      %v1358 = vrot.slane %v1259, 5
      %v1359 = vrot.slane %v1358, 4
      %v1360 = vrot.slane %v276, 5
      %v1361 = vsel %vm1301, %v1359, %v1360
      %v1362 = vrot.slane %v1360, 4
      %v1363 = vrot.slane %v300, 5
      %v1364 = vsel %vm1301, %v1362, %v1363
      %v1365 = vrot.slane %v1260, 5
      %v1366 = vrot.slane %v1365, 4
      %v1367 = vrot.slane %v278, 5
      %v1368 = vsel %vm1301, %v1366, %v1367
      %v1369 = vrot.slane %v1367, 4
      %v1370 = vrot.slane %v301, 5
      %v1371 = vsel %vm1301, %v1369, %v1370
      %v1372 = vrot.slane %v1261, 5
      %v1373 = vrot.slane %v1372, 4
      %v1374 = vrot.slane %v280, 5
      %v1375 = vsel %vm1301, %v1373, %v1374
      %v1376 = vrot.slane %v1374, 4
      %v1377 = vrot.slane %v302, 5
      %v1378 = vsel %vm1301, %v1376, %v1377
      %v1379 = vrot.slane %v1262, 5
      %v1380 = vrot.slane %v1379, 4
      %v1381 = vrot.slane %v282, 5
      %v1382 = vsel %vm1301, %v1380, %v1381
      %v1383 = vrot.slane %v1381, 4
      %v1384 = vrot.slane %v303, 5
      %v1385 = vsel %vm1301, %v1383, %v1384
      %v1386 = vrot.slane %v1263, 5
      %v1387 = vrot.slane %v1386, 4
      %v1388 = vrot.slane %v284, 5
      %v1389 = vsel %vm1301, %v1387, %v1388
      %v1390 = vrot.slane %v1388, 4
      %v1391 = vrot.slane %v304, 5
      %v1392 = vsel %vm1301, %v1390, %v1391
      %v1393 = vrot.slane %v1264, 5
      %v1394 = vrot.slane %v1393, 4
      %v1395 = vrot.slane %v286, 5
      %v1396 = vsel %vm1301, %v1394, %v1395
      %v1397 = vrot.slane %v1395, 4
      %v1398 = vrot.slane %v305, 5
      %v1399 = vsel %vm1301, %v1397, %v1398
      %v1400 = vrot.slane %v1265, 5
      %v1401 = vrot.slane %v1400, 4
      %v1402 = vrot.slane %v288, 5
      %v1403 = vsel %vm1301, %v1401, %v1402
      %v1404 = vrot.slane %v1402, 4
      %v1405 = vrot.slane %v306, 5
      %v1406 = vsel %vm1301, %v1404, %v1405
      %v1407 = vrot.slane %v1266, 5
      %v1408 = vrot.slane %v1407, 4
      %v1409 = vrot.slane %v290, 5
      %v1410 = vsel %vm1301, %v1408, %v1409
      %v1411 = vrot.slane %v1409, 4
      %v1412 = vrot.slane %v307, 5
      %v1413 = vsel %vm1301, %v1411, %v1412
      %s1414 = scalar_lea.vmem %s1, 4
      %v1415 = vld [vmem:[%s1414] sm:$0x3]
      %v1416 = vunpack.c.l.b16 %v1305
      %v1417 = vunpack.c.l.b16 %v1308
      %v1418 = vunpack.c.l.b16 %v1312
      %v1419 = vunpack.c.l.b16 %v1315
      %v1420 = vunpack.c.l.b16 %v1319
      %v1421 = vunpack.c.l.b16 %v1322
      %v1422 = vunpack.c.l.b16 %v1326
      %v1423 = vunpack.c.l.b16 %v1329
      %v1424 = vunpack.c.l.b16 %v1333
      %v1425 = vunpack.c.l.b16 %v1336
      %v1426 = vunpack.c.l.b16 %v1340
      %v1427 = vunpack.c.l.b16 %v1343
      %v1428 = vunpack.c.l.b16 %v1347
      %v1429 = vunpack.c.l.b16 %v1350
      %v1430 = vunpack.c.l.b16 %v1354
      %v1431 = vunpack.c.l.b16 %v1357
      %v1432 = vunpack.c.l.b16 %v1361
      %v1433 = vunpack.c.l.b16 %v1364
      %v1434 = vunpack.c.l.b16 %v1368
      %v1435 = vunpack.c.l.b16 %v1371
      %v1436 = vunpack.c.l.b16 %v1375
      %v1437 = vunpack.c.l.b16 %v1378
      %v1438 = vunpack.c.l.b16 %v1382
      %v1439 = vunpack.c.l.b16 %v1385
      %v1440 = vunpack.c.l.b16 %v1389
      %v1441 = vunpack.c.l.b16 %v1392
      %v1442 = vunpack.c.l.b16 %v1396
      %v1443 = vunpack.c.l.b16 %v1399
      %v1444 = vunpack.c.l.b16 %v1403
      %v1445 = vunpack.c.l.b16 %v1406
      %v1446 = vunpack.c.l.b16 %v1410
      %v1447 = vunpack.c.l.b16 %v1413
      %v1448 = vpack.c.b16 %v1417, %v1416
      %v1449 = vpack.c.b16 %v1419, %v1418
      %v1450 = vpack.c.b16 %v1421, %v1420
      %v1451 = vpack.c.b16 %v1423, %v1422
      %v1452 = vpack.c.b16 %v1425, %v1424
      %v1453 = vpack.c.b16 %v1427, %v1426
      %v1454 = vpack.c.b16 %v1429, %v1428
      %v1455 = vpack.c.b16 %v1431, %v1430
      %v1456 = vpack.c.b16 %v1433, %v1432
      %v1457 = vpack.c.b16 %v1435, %v1434
      %v1458 = vpack.c.b16 %v1437, %v1436
      %v1459 = vpack.c.b16 %v1439, %v1438
      %v1460 = vpack.c.b16 %v1441, %v1440
      %v1461 = vpack.c.b16 %v1443, %v1442
      %v1462 = vpack.c.b16 %v1445, %v1444
      %v1463 = vpack.c.b16 %v1447, %v1446
      %v1465 = vsel %vm745, %v1448, 0
      %v1468 = vsel %vm745, %v1449, 0
      %v1471 = vsel %vm745, %v1450, 0
      %v1474 = vsel %vm745, %v1451, 0
      %v1477 = vsel %vm745, %v1452, 0
      %v1480 = vsel %vm745, %v1453, 0
      %v1483 = vsel %vm745, %v1454, 0
      %v1486 = vsel %vm745, %v1455, 0
      %v1489 = vsel %vm745, %v1456, 0
      %v1492 = vsel %vm745, %v1457, 0
      %v1495 = vsel %vm745, %v1458, 0
      %v1498 = vsel %vm745, %v1459, 0
      %v1501 = vsel %vm745, %v1460, 0
      %v1504 = vsel %vm745, %v1461, 0
      %v1507 = vsel %vm745, %v1462, 0
      %v1510 = vsel %vm745, %v1463, 0
      %v1513 = vsel %vm794, %v1415, 0
      %1515 = vmatprep.subr.bf16.mxu0 0
      %1516 = vmatpush1.bf16.msra.mxu0 %v1513
      %1517 = vmatprep.subr.bf16.mxu0 0
      %1518 = vmatpush1.bf16.msra.mxu0 0
      %1519 = vmatprep.subr.bf16.mxu0 0
      %1520 = vmatpush1.bf16.msra.mxu0 0
      %1521 = vmatprep.subr.bf16.mxu0 0
      %1522 = vmatpush1.bf16.msra.mxu0 0
      %1523 = vmatprep.subr.bf16.mxu0 0
      %1524 = vmatpush1.bf16.msra.mxu0 0
      %1525 = vmatprep.subr.bf16.mxu0 0
      %1526 = vmatpush1.bf16.msra.mxu0 0
      %1527 = vmatprep.subr.bf16.mxu0 0
      %1528 = vmatpush1.bf16.msra.mxu0 0
      %1529 = vmatprep.subr.bf16.mxu0 0
      %1530 = vmatpush1.bf16.msra.mxu0 0
      %1531 = vmatprep.subr.bf16.mxu0 0
      %1532 = vmatpush1.bf16.msra.mxu0 0
      %1533 = vmatprep.subr.bf16.mxu0 0
      %1534 = vmatpush1.bf16.msra.mxu0 0
      %1535 = vmatprep.subr.bf16.mxu0 0
      %1536 = vmatpush1.bf16.msra.mxu0 0
      %1537 = vmatprep.subr.bf16.mxu0 0
      %1538 = vmatpush1.bf16.msra.mxu0 0
      %1539 = vmatprep.subr.bf16.mxu0 0
      %1540 = vmatpush1.bf16.msra.mxu0 0
      %1541 = vmatprep.subr.bf16.mxu0 0
      %1542 = vmatpush1.bf16.msra.mxu0 0
      %1543 = vmatprep.subr.bf16.mxu0 0
      %1544 = vmatpush1.bf16.msra.mxu0 0
      %1545 = vmatprep.subr.bf16.mxu0 0
      %1546 = vmatpush1.bf16.msra.mxu0 0
      %1547 = vmatprep.mubr.bf16.mxu0 0
      %1548 = vmatmul.mubr.bf16.gmra.mrb[0].mxu0 %v1465
      %v1549 = vpop.f32.mrb[0].mxu0
      %v1550 = vadd.f32 0.0, %v1549
      %v1551 = vpop.f32.mrb[0].mxu0
      %v1552 = vpop.f32.mrb[0].mxu0
      %v1553 = vadd.f32 0.0, %v1552
      %v1554 = vpop.f32.mrb[0].mxu0
      %1555 = vmatprep.mubr.bf16.mxu0 0
      %1556 = vmatmul.mubr.bf16.gmra.mrb[0].mxu0 %v1468
      %v1557 = vpop.f32.mrb[0].mxu0
      %v1558 = vadd.f32 0.0, %v1557
      %v1559 = vpop.f32.mrb[0].mxu0
      %v1560 = vpop.f32.mrb[0].mxu0
      %v1561 = vadd.f32 0.0, %v1560
      %v1562 = vpop.f32.mrb[0].mxu0
      %1563 = vmatprep.mubr.bf16.mxu0 0
      %1564 = vmatmul.mubr.bf16.gmra.mrb[0].mxu0 %v1471
      %v1565 = vpop.f32.mrb[0].mxu0
      %v1566 = vadd.f32 0.0, %v1565
      %v1567 = vpop.f32.mrb[0].mxu0
      %v1568 = vpop.f32.mrb[0].mxu0
      %v1569 = vadd.f32 0.0, %v1568
      %v1570 = vpop.f32.mrb[0].mxu0
      %1571 = vmatprep.mubr.bf16.mxu0 0
      %1572 = vmatmul.mubr.bf16.gmra.mrb[0].mxu0 %v1474
      %v1573 = vpop.f32.mrb[0].mxu0
      %v1574 = vadd.f32 0.0, %v1573
      %v1575 = vpop.f32.mrb[0].mxu0
      %v1576 = vpop.f32.mrb[0].mxu0
      %v1577 = vadd.f32 0.0, %v1576
      %v1578 = vpop.f32.mrb[0].mxu0
      %1579 = vmatprep.mubr.bf16.mxu0 0
      %1580 = vmatmul.mubr.bf16.gmra.mrb[0].mxu0 %v1477
      %v1581 = vpop.f32.mrb[0].mxu0
      %v1582 = vadd.f32 0.0, %v1581
      %v1583 = vpop.f32.mrb[0].mxu0
      %v1584 = vpop.f32.mrb[0].mxu0
      %v1585 = vadd.f32 0.0, %v1584
      %v1586 = vpop.f32.mrb[0].mxu0
      %1587 = vmatprep.mubr.bf16.mxu0 0
      %1588 = vmatmul.mubr.bf16.gmra.mrb[0].mxu0 %v1480
      %v1589 = vpop.f32.mrb[0].mxu0
      %v1590 = vadd.f32 0.0, %v1589
      %v1591 = vpop.f32.mrb[0].mxu0
      %v1592 = vpop.f32.mrb[0].mxu0
      %v1593 = vadd.f32 0.0, %v1592
      %v1594 = vpop.f32.mrb[0].mxu0
      %1595 = vmatprep.mubr.bf16.mxu0 0
      %1596 = vmatmul.mubr.bf16.gmra.mrb[0].mxu0 %v1483
      %v1597 = vpop.f32.mrb[0].mxu0
      %v1598 = vadd.f32 0.0, %v1597
      %v1599 = vpop.f32.mrb[0].mxu0
      %v1600 = vpop.f32.mrb[0].mxu0
      %v1601 = vadd.f32 0.0, %v1600
      %v1602 = vpop.f32.mrb[0].mxu0
      %1603 = vmatprep.mubr.bf16.mxu0 0
      %1604 = vmatmul.mubr.bf16.gmra.mrb[0].mxu0 %v1486
      %v1605 = vpop.f32.mrb[0].mxu0
      %v1606 = vadd.f32 0.0, %v1605
      %v1607 = vpop.f32.mrb[0].mxu0
      %v1608 = vpop.f32.mrb[0].mxu0
      %v1609 = vadd.f32 0.0, %v1608
      %v1610 = vpop.f32.mrb[0].mxu0
      %1611 = vmatprep.mubr.bf16.mxu0 0
      %1612 = vmatmul.mubr.bf16.gmra.mrb[0].mxu0 %v1489
      %v1613 = vpop.f32.mrb[0].mxu0
      %v1614 = vadd.f32 0.0, %v1613
      %v1615 = vpop.f32.mrb[0].mxu0
      %v1616 = vpop.f32.mrb[0].mxu0
      %v1617 = vadd.f32 0.0, %v1616
      %v1618 = vpop.f32.mrb[0].mxu0
      %1619 = vmatprep.mubr.bf16.mxu0 0
      %1620 = vmatmul.mubr.bf16.gmra.mrb[0].mxu0 %v1492
      %v1621 = vpop.f32.mrb[0].mxu0
      %v1622 = vadd.f32 0.0, %v1621
      %v1623 = vpop.f32.mrb[0].mxu0
      %v1624 = vpop.f32.mrb[0].mxu0
      %v1625 = vadd.f32 0.0, %v1624
      %v1626 = vpop.f32.mrb[0].mxu0
      %1627 = vmatprep.mubr.bf16.mxu0 0
      %1628 = vmatmul.mubr.bf16.gmra.mrb[0].mxu0 %v1495
      %v1629 = vpop.f32.mrb[0].mxu0
      %v1630 = vadd.f32 0.0, %v1629
      %v1631 = vpop.f32.mrb[0].mxu0
      %v1632 = vpop.f32.mrb[0].mxu0
      %v1633 = vadd.f32 0.0, %v1632
      %v1634 = vpop.f32.mrb[0].mxu0
      %1635 = vmatprep.mubr.bf16.mxu0 0
      %1636 = vmatmul.mubr.bf16.gmra.mrb[0].mxu0 %v1498
      %v1637 = vpop.f32.mrb[0].mxu0
      %v1638 = vadd.f32 0.0, %v1637
      %v1639 = vpop.f32.mrb[0].mxu0
      %v1640 = vpop.f32.mrb[0].mxu0
      %v1641 = vadd.f32 0.0, %v1640
      %v1642 = vpop.f32.mrb[0].mxu0
      %1643 = vmatprep.mubr.bf16.mxu0 0
      %1644 = vmatmul.mubr.bf16.gmra.mrb[0].mxu0 %v1501
      %v1645 = vpop.f32.mrb[0].mxu0
      %v1646 = vadd.f32 0.0, %v1645
      %v1647 = vpop.f32.mrb[0].mxu0
      %v1648 = vpop.f32.mrb[0].mxu0
      %v1649 = vadd.f32 0.0, %v1648
      %v1650 = vpop.f32.mrb[0].mxu0
      %1651 = vmatprep.mubr.bf16.mxu0 0
      %1652 = vmatmul.mubr.bf16.gmra.mrb[0].mxu0 %v1504
      %v1653 = vpop.f32.mrb[0].mxu0
      %v1654 = vadd.f32 0.0, %v1653
      %v1655 = vpop.f32.mrb[0].mxu0
      %v1656 = vpop.f32.mrb[0].mxu0
      %v1657 = vadd.f32 0.0, %v1656
      %v1658 = vpop.f32.mrb[0].mxu0
      %1659 = vmatprep.mubr.bf16.mxu0 0
      %1660 = vmatmul.mubr.bf16.gmra.mrb[0].mxu0 %v1507
      %v1661 = vpop.f32.mrb[0].mxu0
      %v1662 = vadd.f32 0.0, %v1661
      %v1663 = vpop.f32.mrb[0].mxu0
      %v1664 = vpop.f32.mrb[0].mxu0
      %v1665 = vadd.f32 0.0, %v1664
      %v1666 = vpop.f32.mrb[0].mxu0
      %1667 = vmatprep.mubr.bf16.mxu0 0
      %1668 = vmatmul.mubr.bf16.gmra.mrb[0].mxu0 %v1510
      %v1669 = vpop.f32.mrb[0].mxu0
      %v1670 = vadd.f32 0.0, %v1669
      %v1671 = vpop.f32.mrb[0].mxu0
      %v1672 = vpop.f32.mrb[0].mxu0
      %v1673 = vadd.f32 0.0, %v1672
      %v1674 = vpop.f32.mrb[0].mxu0
      %1675 = vdwg.mxu0
      %v1676 = vadd.f32 %v1125, %v1550
      %v1677 = vadd.f32 %v1128, %v1553
      %v1678 = vadd.f32 %v1133, %v1558
      %v1679 = vadd.f32 %v1136, %v1561
      %v1680 = vadd.f32 %v1141, %v1566
      %v1681 = vadd.f32 %v1144, %v1569
      %v1682 = vadd.f32 %v1149, %v1574
      %v1683 = vadd.f32 %v1152, %v1577
      %v1684 = vadd.f32 %v1157, %v1582
      %v1685 = vadd.f32 %v1160, %v1585
      %v1686 = vadd.f32 %v1165, %v1590
      %v1687 = vadd.f32 %v1168, %v1593
      %v1688 = vadd.f32 %v1173, %v1598
      %v1689 = vadd.f32 %v1176, %v1601
      %v1690 = vadd.f32 %v1181, %v1606
      %v1691 = vadd.f32 %v1184, %v1609
      %v1692 = vadd.f32 %v1189, %v1614
      %v1693 = vadd.f32 %v1192, %v1617
      %v1694 = vadd.f32 %v1197, %v1622
      %v1695 = vadd.f32 %v1200, %v1625
      %v1696 = vadd.f32 %v1205, %v1630
      %v1697 = vadd.f32 %v1208, %v1633
      %v1698 = vadd.f32 %v1213, %v1638
      %v1699 = vadd.f32 %v1216, %v1641
      %v1700 = vadd.f32 %v1221, %v1646
      %v1701 = vadd.f32 %v1224, %v1649
      %v1702 = vadd.f32 %v1229, %v1654
      %v1703 = vadd.f32 %v1232, %v1657
      %v1704 = vadd.f32 %v1237, %v1662
      %v1705 = vadd.f32 %v1240, %v1665
      %v1706 = vadd.f32 %v1245, %v1670
      %v1707 = vadd.f32 %v1248, %v1673
      %s1708 = sadd.s32 %s255, 1
      %s1709 = smul.u32 %s1708, 3
      %s1710 = smul.addr %s1709, 4
      %s1711 = scalar_lea.vmem %s231, %s1710
      %v1712 = vld [vmem:[%s1711] sm:$0xf]
      %v1713 = vld [vmem:[%s1711 + $0x4] sm:$0xf]
      %v1714 = vld [vmem:[%s1711 + $0xc] sm:$0xf]
      %v1715 = vld [vmem:[%s1711 + $0x10] sm:$0xf]
      %v1716 = vld [vmem:[%s1711 + $0x18] sm:$0xf]
      %v1717 = vld [vmem:[%s1711 + $0x1c] sm:$0xf]
      %v1718 = vld [vmem:[%s1711 + $0x24] sm:$0xf]
      %v1719 = vld [vmem:[%s1711 + $0x28] sm:$0xf]
      %v1720 = vld [vmem:[%s1711 + $0x30] sm:$0xf]
      %v1721 = vld [vmem:[%s1711 + $0x34] sm:$0xf]
      %v1722 = vld [vmem:[%s1711 + $0x3c] sm:$0xf]
      %v1723 = vld [vmem:[%s1711 + $0x40] sm:$0xf]
      %v1724 = vld [vmem:[%s1711 + $0x48] sm:$0xf]
      %v1725 = vld [vmem:[%s1711 + $0x4c] sm:$0xf]
      %v1726 = vld [vmem:[%s1711 + $0x54] sm:$0xf]
      %v1727 = vld [vmem:[%s1711 + $0x58] sm:$0xf]
      %v1728 = vld [vmem:[%s1711 + $0x60] sm:$0xf]
      %v1729 = vld [vmem:[%s1711 + $0x64] sm:$0xf]
      %v1730 = vld [vmem:[%s1711 + $0x6c] sm:$0xf]
      %v1731 = vld [vmem:[%s1711 + $0x70] sm:$0xf]
      %v1732 = vld [vmem:[%s1711 + $0x78] sm:$0xf]
      %v1733 = vld [vmem:[%s1711 + $0x7c] sm:$0xf]
      %v1734 = vld [vmem:[%s1711 + $0x84] sm:$0xf]
      %v1735 = vld [vmem:[%s1711 + $0x88] sm:$0xf]
      %v1736 = vld [vmem:[%s1711 + $0x90] sm:$0xf]
      %v1737 = vld [vmem:[%s1711 + $0x94] sm:$0xf]
      %v1738 = vld [vmem:[%s1711 + $0x9c] sm:$0xf]
      %v1739 = vld [vmem:[%s1711 + $0xa0] sm:$0xf]
      %v1740 = vld [vmem:[%s1711 + $0xa8] sm:$0xf]
      %v1741 = vld [vmem:[%s1711 + $0xac] sm:$0xf]
      %v1742 = vld [vmem:[%s1711 + $0xb4] sm:$0xf]
      %v1743 = vld [vmem:[%s1711 + $0xb8] sm:$0xf]
      %s1744 = scalar_lea.vmem %s1, 6
      %v1745 = vld [vmem:[%s1744] sm:$0x3]
      %v1778 = vunpack.c.l.b16 %v1712
      %v1779 = vunpack.c.l.b16 %v1713
      %v1780 = vunpack.c.l.b16 %v1714
      %v1781 = vunpack.c.l.b16 %v1715
      %v1782 = vunpack.c.l.b16 %v1716
      %v1783 = vunpack.c.l.b16 %v1717
      %v1784 = vunpack.c.l.b16 %v1718
      %v1785 = vunpack.c.l.b16 %v1719
      %v1786 = vunpack.c.l.b16 %v1720
      %v1787 = vunpack.c.l.b16 %v1721
      %v1788 = vunpack.c.l.b16 %v1722
      %v1789 = vunpack.c.l.b16 %v1723
      %v1790 = vunpack.c.l.b16 %v1724
      %v1791 = vunpack.c.l.b16 %v1725
      %v1792 = vunpack.c.l.b16 %v1726
      %v1793 = vunpack.c.l.b16 %v1727
      %v1794 = vunpack.c.l.b16 %v1728
      %v1795 = vunpack.c.l.b16 %v1729
      %v1796 = vunpack.c.l.b16 %v1730
      %v1797 = vunpack.c.l.b16 %v1731
      %v1798 = vunpack.c.l.b16 %v1732
      %v1799 = vunpack.c.l.b16 %v1733
      %v1800 = vunpack.c.l.b16 %v1734
      %v1801 = vunpack.c.l.b16 %v1735
      %v1802 = vunpack.c.l.b16 %v1736
      %v1803 = vunpack.c.l.b16 %v1737
      %v1804 = vunpack.c.l.b16 %v1738
      %v1805 = vunpack.c.l.b16 %v1739
      %v1806 = vunpack.c.l.b16 %v1740
      %v1807 = vunpack.c.l.b16 %v1741
      %v1808 = vunpack.c.l.b16 %v1742
      %v1809 = vunpack.c.l.b16 %v1743
      %v1810 = vpack.c.b16 %v1779, %v1778
      %v1811 = vpack.c.b16 %v1781, %v1780
      %v1812 = vpack.c.b16 %v1783, %v1782
      %v1813 = vpack.c.b16 %v1785, %v1784
      %v1814 = vpack.c.b16 %v1787, %v1786
      %v1815 = vpack.c.b16 %v1789, %v1788
      %v1816 = vpack.c.b16 %v1791, %v1790
      %v1817 = vpack.c.b16 %v1793, %v1792
      %v1818 = vpack.c.b16 %v1795, %v1794
      %v1819 = vpack.c.b16 %v1797, %v1796
      %v1820 = vpack.c.b16 %v1799, %v1798
      %v1821 = vpack.c.b16 %v1801, %v1800
      %v1822 = vpack.c.b16 %v1803, %v1802
      %v1823 = vpack.c.b16 %v1805, %v1804
      %v1824 = vpack.c.b16 %v1807, %v1806
      %v1825 = vpack.c.b16 %v1809, %v1808
      %v1827 = vsel %vm745, %v1810, 0
      %v1830 = vsel %vm745, %v1811, 0
      %v1833 = vsel %vm745, %v1812, 0
      %v1836 = vsel %vm745, %v1813, 0
      %v1839 = vsel %vm745, %v1814, 0
      %v1842 = vsel %vm745, %v1815, 0
      %v1845 = vsel %vm745, %v1816, 0
      %v1848 = vsel %vm745, %v1817, 0
      %v1851 = vsel %vm745, %v1818, 0
      %v1854 = vsel %vm745, %v1819, 0
      %v1857 = vsel %vm745, %v1820, 0
      %v1860 = vsel %vm745, %v1821, 0
      %v1863 = vsel %vm745, %v1822, 0
      %v1866 = vsel %vm745, %v1823, 0
      %v1869 = vsel %vm745, %v1824, 0
      %v1872 = vsel %vm745, %v1825, 0
      %v1875 = vsel %vm794, %v1745, 0
      %1877 = vmatprep.subr.bf16.mxu0 0
      %1878 = vmatpush1.bf16.msra.mxu0 %v1875
      %1879 = vmatprep.subr.bf16.mxu0 0
      %1880 = vmatpush1.bf16.msra.mxu0 0
      %1881 = vmatprep.subr.bf16.mxu0 0
      %1882 = vmatpush1.bf16.msra.mxu0 0
      %1883 = vmatprep.subr.bf16.mxu0 0
      %1884 = vmatpush1.bf16.msra.mxu0 0
      %1885 = vmatprep.subr.bf16.mxu0 0
      %1886 = vmatpush1.bf16.msra.mxu0 0
      %1887 = vmatprep.subr.bf16.mxu0 0
      %1888 = vmatpush1.bf16.msra.mxu0 0
      %1889 = vmatprep.subr.bf16.mxu0 0
      %1890 = vmatpush1.bf16.msra.mxu0 0
      %1891 = vmatprep.subr.bf16.mxu0 0
      %1892 = vmatpush1.bf16.msra.mxu0 0
      %1893 = vmatprep.subr.bf16.mxu0 0
      %1894 = vmatpush1.bf16.msra.mxu0 0
      %1895 = vmatprep.subr.bf16.mxu0 0
      %1896 = vmatpush1.bf16.msra.mxu0 0
      %1897 = vmatprep.subr.bf16.mxu0 0
      %1898 = vmatpush1.bf16.msra.mxu0 0
      %1899 = vmatprep.subr.bf16.mxu0 0
      %1900 = vmatpush1.bf16.msra.mxu0 0
      %1901 = vmatprep.subr.bf16.mxu0 0
      %1902 = vmatpush1.bf16.msra.mxu0 0
      %1903 = vmatprep.subr.bf16.mxu0 0
      %1904 = vmatpush1.bf16.msra.mxu0 0
      %1905 = vmatprep.subr.bf16.mxu0 0
      %1906 = vmatpush1.bf16.msra.mxu0 0
      %1907 = vmatprep.subr.bf16.mxu0 0
      %1908 = vmatpush1.bf16.msra.mxu0 0
      %1909 = vmatprep.mubr.bf16.mxu0 0
      %1910 = vmatmul.mubr.bf16.gmra.mrb[0].mxu0 %v1827
      %v1911 = vpop.f32.mrb[0].mxu0
      %v1912 = vadd.f32 0.0, %v1911
      %v1913 = vpop.f32.mrb[0].mxu0
      %v1914 = vpop.f32.mrb[0].mxu0
      %v1915 = vadd.f32 0.0, %v1914
      %v1916 = vpop.f32.mrb[0].mxu0
      %1917 = vmatprep.mubr.bf16.mxu0 0
      %1918 = vmatmul.mubr.bf16.gmra.mrb[0].mxu0 %v1830
      %v1919 = vpop.f32.mrb[0].mxu0
      %v1920 = vadd.f32 0.0, %v1919
      %v1921 = vpop.f32.mrb[0].mxu0
      %v1922 = vpop.f32.mrb[0].mxu0
      %v1923 = vadd.f32 0.0, %v1922
      %v1924 = vpop.f32.mrb[0].mxu0
      %1925 = vmatprep.mubr.bf16.mxu0 0
      %1926 = vmatmul.mubr.bf16.gmra.mrb[0].mxu0 %v1833
      %v1927 = vpop.f32.mrb[0].mxu0
      %v1928 = vadd.f32 0.0, %v1927
      %v1929 = vpop.f32.mrb[0].mxu0
      %v1930 = vpop.f32.mrb[0].mxu0
      %v1931 = vadd.f32 0.0, %v1930
      %v1932 = vpop.f32.mrb[0].mxu0
      %1933 = vmatprep.mubr.bf16.mxu0 0
      %1934 = vmatmul.mubr.bf16.gmra.mrb[0].mxu0 %v1836
      %v1935 = vpop.f32.mrb[0].mxu0
      %v1936 = vadd.f32 0.0, %v1935
      %v1937 = vpop.f32.mrb[0].mxu0
      %v1938 = vpop.f32.mrb[0].mxu0
      %v1939 = vadd.f32 0.0, %v1938
      %v1940 = vpop.f32.mrb[0].mxu0
      %1941 = vmatprep.mubr.bf16.mxu0 0
      %1942 = vmatmul.mubr.bf16.gmra.mrb[0].mxu0 %v1839
      %v1943 = vpop.f32.mrb[0].mxu0
      %v1944 = vadd.f32 0.0, %v1943
      %v1945 = vpop.f32.mrb[0].mxu0
      %v1946 = vpop.f32.mrb[0].mxu0
      %v1947 = vadd.f32 0.0, %v1946
      %v1948 = vpop.f32.mrb[0].mxu0
      %1949 = vmatprep.mubr.bf16.mxu0 0
      %1950 = vmatmul.mubr.bf16.gmra.mrb[0].mxu0 %v1842
      %v1951 = vpop.f32.mrb[0].mxu0
      %v1952 = vadd.f32 0.0, %v1951
      %v1953 = vpop.f32.mrb[0].mxu0
      %v1954 = vpop.f32.mrb[0].mxu0
      %v1955 = vadd.f32 0.0, %v1954
      %v1956 = vpop.f32.mrb[0].mxu0
      %1957 = vmatprep.mubr.bf16.mxu0 0
      %1958 = vmatmul.mubr.bf16.gmra.mrb[0].mxu0 %v1845
      %v1959 = vpop.f32.mrb[0].mxu0
      %v1960 = vadd.f32 0.0, %v1959
      %v1961 = vpop.f32.mrb[0].mxu0
      %v1962 = vpop.f32.mrb[0].mxu0
      %v1963 = vadd.f32 0.0, %v1962
      %v1964 = vpop.f32.mrb[0].mxu0
      %1965 = vmatprep.mubr.bf16.mxu0 0
      %1966 = vmatmul.mubr.bf16.gmra.mrb[0].mxu0 %v1848
      %v1967 = vpop.f32.mrb[0].mxu0
      %v1968 = vadd.f32 0.0, %v1967
      %v1969 = vpop.f32.mrb[0].mxu0
      %v1970 = vpop.f32.mrb[0].mxu0
      %v1971 = vadd.f32 0.0, %v1970
      %v1972 = vpop.f32.mrb[0].mxu0
      %1973 = vmatprep.mubr.bf16.mxu0 0
      %1974 = vmatmul.mubr.bf16.gmra.mrb[0].mxu0 %v1851
      %v1975 = vpop.f32.mrb[0].mxu0
      %v1976 = vadd.f32 0.0, %v1975
      %v1977 = vpop.f32.mrb[0].mxu0
      %v1978 = vpop.f32.mrb[0].mxu0
      %v1979 = vadd.f32 0.0, %v1978
      %v1980 = vpop.f32.mrb[0].mxu0
      %1981 = vmatprep.mubr.bf16.mxu0 0
      %1982 = vmatmul.mubr.bf16.gmra.mrb[0].mxu0 %v1854
      %v1983 = vpop.f32.mrb[0].mxu0
      %v1984 = vadd.f32 0.0, %v1983
      %v1985 = vpop.f32.mrb[0].mxu0
      %v1986 = vpop.f32.mrb[0].mxu0
      %v1987 = vadd.f32 0.0, %v1986
      %v1988 = vpop.f32.mrb[0].mxu0
      %1989 = vmatprep.mubr.bf16.mxu0 0
      %1990 = vmatmul.mubr.bf16.gmra.mrb[0].mxu0 %v1857
      %v1991 = vpop.f32.mrb[0].mxu0
      %v1992 = vadd.f32 0.0, %v1991
      %v1993 = vpop.f32.mrb[0].mxu0
      %v1994 = vpop.f32.mrb[0].mxu0
      %v1995 = vadd.f32 0.0, %v1994
      %v1996 = vpop.f32.mrb[0].mxu0
      %1997 = vmatprep.mubr.bf16.mxu0 0
      %1998 = vmatmul.mubr.bf16.gmra.mrb[0].mxu0 %v1860
      %v1999 = vpop.f32.mrb[0].mxu0
      %v2000 = vadd.f32 0.0, %v1999
      %v2001 = vpop.f32.mrb[0].mxu0
      %v2002 = vpop.f32.mrb[0].mxu0
      %v2003 = vadd.f32 0.0, %v2002
      %v2004 = vpop.f32.mrb[0].mxu0
      %2005 = vmatprep.mubr.bf16.mxu0 0
      %2006 = vmatmul.mubr.bf16.gmra.mrb[0].mxu0 %v1863
      %v2007 = vpop.f32.mrb[0].mxu0
      %v2008 = vadd.f32 0.0, %v2007
      %v2009 = vpop.f32.mrb[0].mxu0
      %v2010 = vpop.f32.mrb[0].mxu0
      %v2011 = vadd.f32 0.0, %v2010
      %v2012 = vpop.f32.mrb[0].mxu0
      %2013 = vmatprep.mubr.bf16.mxu0 0
      %2014 = vmatmul.mubr.bf16.gmra.mrb[0].mxu0 %v1866
      %v2015 = vpop.f32.mrb[0].mxu0
      %v2016 = vadd.f32 0.0, %v2015
      %v2017 = vpop.f32.mrb[0].mxu0
      %v2018 = vpop.f32.mrb[0].mxu0
      %v2019 = vadd.f32 0.0, %v2018
      %v2020 = vpop.f32.mrb[0].mxu0
      %2021 = vmatprep.mubr.bf16.mxu0 0
      %2022 = vmatmul.mubr.bf16.gmra.mrb[0].mxu0 %v1869
      %v2023 = vpop.f32.mrb[0].mxu0
      %v2024 = vadd.f32 0.0, %v2023
      %v2025 = vpop.f32.mrb[0].mxu0
      %v2026 = vpop.f32.mrb[0].mxu0
      %v2027 = vadd.f32 0.0, %v2026
      %v2028 = vpop.f32.mrb[0].mxu0
      %2029 = vmatprep.mubr.bf16.mxu0 0
      %2030 = vmatmul.mubr.bf16.gmra.mrb[0].mxu0 %v1872
      %v2031 = vpop.f32.mrb[0].mxu0
      %v2032 = vadd.f32 0.0, %v2031
      %v2033 = vpop.f32.mrb[0].mxu0
      %v2034 = vpop.f32.mrb[0].mxu0
      %v2035 = vadd.f32 0.0, %v2034
      %v2036 = vpop.f32.mrb[0].mxu0
      %2037 = vdwg.mxu0
      %v2038 = vadd.f32 %v1676, %v1912
      %v2039 = vadd.f32 %v1677, %v1915
      %v2040 = vadd.f32 %v1678, %v1920
      %v2041 = vadd.f32 %v1679, %v1923
      %v2042 = vadd.f32 %v1680, %v1928
      %v2043 = vadd.f32 %v1681, %v1931
      %v2044 = vadd.f32 %v1682, %v1936
      %v2045 = vadd.f32 %v1683, %v1939
      %v2046 = vadd.f32 %v1684, %v1944
      %v2047 = vadd.f32 %v1685, %v1947
      %v2048 = vadd.f32 %v1686, %v1952
      %v2049 = vadd.f32 %v1687, %v1955
      %v2050 = vadd.f32 %v1688, %v1960
      %v2051 = vadd.f32 %v1689, %v1963
      %v2052 = vadd.f32 %v1690, %v1968
      %v2053 = vadd.f32 %v1691, %v1971
      %v2054 = vadd.f32 %v1692, %v1976
      %v2055 = vadd.f32 %v1693, %v1979
      %v2056 = vadd.f32 %v1694, %v1984
      %v2057 = vadd.f32 %v1695, %v1987
      %v2058 = vadd.f32 %v1696, %v1992
      %v2059 = vadd.f32 %v1697, %v1995
      %v2060 = vadd.f32 %v1698, %v2000
      %v2061 = vadd.f32 %v1699, %v2003
      %v2062 = vadd.f32 %v1700, %v2008
      %v2063 = vadd.f32 %v1701, %v2011
      %v2064 = vadd.f32 %v1702, %v2016
      %v2065 = vadd.f32 %v1703, %v2019
      %v2066 = vadd.f32 %v1704, %v2024
      %v2067 = vadd.f32 %v1705, %v2027
      %v2068 = vadd.f32 %v1706, %v2032
      %v2069 = vadd.f32 %v1707, %v2035
      %v2070 = vld [vmem:[%s1711] sm:$0xf]
      %v2071 = vld [vmem:[%s1711 + $0x4] sm:$0xf]
      %v2072 = vld [vmem:[%s1711 + $0x8] sm:$0x1]
      %v2073 = vld [vmem:[%s1711 + $0xc] sm:$0xf]
      %v2074 = vld [vmem:[%s1711 + $0x10] sm:$0xf]
      %v2075 = vld [vmem:[%s1711 + $0x14] sm:$0x1]
      %v2076 = vld [vmem:[%s1711 + $0x18] sm:$0xf]
      %v2077 = vld [vmem:[%s1711 + $0x1c] sm:$0xf]
      %v2078 = vld [vmem:[%s1711 + $0x20] sm:$0x1]
      %v2079 = vld [vmem:[%s1711 + $0x24] sm:$0xf]
      %v2080 = vld [vmem:[%s1711 + $0x28] sm:$0xf]
      %v2081 = vld [vmem:[%s1711 + $0x2c] sm:$0x1]
      %v2082 = vld [vmem:[%s1711 + $0x30] sm:$0xf]
      %v2083 = vld [vmem:[%s1711 + $0x34] sm:$0xf]
      %v2084 = vld [vmem:[%s1711 + $0x38] sm:$0x1]
      %v2085 = vld [vmem:[%s1711 + $0x3c] sm:$0xf]
      %v2086 = vld [vmem:[%s1711 + $0x40] sm:$0xf]
      %v2087 = vld [vmem:[%s1711 + $0x44] sm:$0x1]
      %v2088 = vld [vmem:[%s1711 + $0x48] sm:$0xf]
      %v2089 = vld [vmem:[%s1711 + $0x4c] sm:$0xf]
      %v2090 = vld [vmem:[%s1711 + $0x50] sm:$0x1]
      %v2091 = vld [vmem:[%s1711 + $0x54] sm:$0xf]
      %v2092 = vld [vmem:[%s1711 + $0x58] sm:$0xf]
      %v2093 = vld [vmem:[%s1711 + $0x5c] sm:$0x1]
      %v2094 = vld [vmem:[%s1711 + $0x60] sm:$0xf]
      %v2095 = vld [vmem:[%s1711 + $0x64] sm:$0xf]
      %v2096 = vld [vmem:[%s1711 + $0x68] sm:$0x1]
      %v2097 = vld [vmem:[%s1711 + $0x6c] sm:$0xf]
      %v2098 = vld [vmem:[%s1711 + $0x70] sm:$0xf]
      %v2099 = vld [vmem:[%s1711 + $0x74] sm:$0x1]
      %v2100 = vld [vmem:[%s1711 + $0x78] sm:$0xf]
      %v2101 = vld [vmem:[%s1711 + $0x7c] sm:$0xf]
      %v2102 = vld [vmem:[%s1711 + $0x80] sm:$0x1]
      %v2103 = vld [vmem:[%s1711 + $0x84] sm:$0xf]
      %v2104 = vld [vmem:[%s1711 + $0x88] sm:$0xf]
      %v2105 = vld [vmem:[%s1711 + $0x8c] sm:$0x1]
      %v2106 = vld [vmem:[%s1711 + $0x90] sm:$0xf]
      %v2107 = vld [vmem:[%s1711 + $0x94] sm:$0xf]
      %v2108 = vld [vmem:[%s1711 + $0x98] sm:$0x1]
      %v2109 = vld [vmem:[%s1711 + $0x9c] sm:$0xf]
      %v2110 = vld [vmem:[%s1711 + $0xa0] sm:$0xf]
      %v2111 = vld [vmem:[%s1711 + $0xa4] sm:$0x1]
      %v2112 = vld [vmem:[%s1711 + $0xa8] sm:$0xf]
      %v2113 = vld [vmem:[%s1711 + $0xac] sm:$0xf]
      %v2114 = vld [vmem:[%s1711 + $0xb0] sm:$0x1]
      %v2115 = vld [vmem:[%s1711 + $0xb4] sm:$0xf]
      %v2116 = vld [vmem:[%s1711 + $0xb8] sm:$0xf]
      %v2117 = vld [vmem:[%s1711 + $0xbc] sm:$0x1]
      %v2119 = vshrl.u32 %v2070, 16
      %v2121 = vrot.slane %v2119, 4
      %v2122 = vshll.u32 %v2070, 16
      %v2124 = vrot.slane %v2122, 5
      %v2125 = vor.u32 %v2121, %v2124
      %v2126 = vrot.slane %v2125, 4
      %v2128 = vshll.u32 %v2071, 16
      %v2130 = vrot.slane %v2128, 5
      %v2131 = vsel %vm310, %v2126, %v2130
      %v2132 = vshrl.u32 %v2071, 16
      %v2134 = vrot.slane %v2132, 4
      %v2135 = vor.u32 %v2134, %v2130
      %v2136 = vrot.slane %v2135, 4
      %v2138 = vshll.u32 %v2072, 16
      %v2140 = vrot.slane %v2138, 5
      %v2141 = vsel %vm310, %v2136, %v2140
      %v2143 = vshrl.u32 %v2073, 16
      %v2145 = vrot.slane %v2143, 4
      %v2146 = vshll.u32 %v2073, 16
      %v2148 = vrot.slane %v2146, 5
      %v2149 = vor.u32 %v2145, %v2148
      %v2150 = vrot.slane %v2149, 4
      %v2152 = vshll.u32 %v2074, 16
      %v2154 = vrot.slane %v2152, 5
      %v2155 = vsel %vm310, %v2150, %v2154
      %v2156 = vshrl.u32 %v2074, 16
      %v2158 = vrot.slane %v2156, 4
      %v2159 = vor.u32 %v2158, %v2154
      %v2160 = vrot.slane %v2159, 4
      %v2162 = vshll.u32 %v2075, 16
      %v2164 = vrot.slane %v2162, 5
      %v2165 = vsel %vm310, %v2160, %v2164
      %v2167 = vshrl.u32 %v2076, 16
      %v2169 = vrot.slane %v2167, 4
      %v2170 = vshll.u32 %v2076, 16
      %v2172 = vrot.slane %v2170, 5
      %v2173 = vor.u32 %v2169, %v2172
      %v2174 = vrot.slane %v2173, 4
      %v2176 = vshll.u32 %v2077, 16
      %v2178 = vrot.slane %v2176, 5
      %v2179 = vsel %vm310, %v2174, %v2178
      %v2180 = vshrl.u32 %v2077, 16
      %v2182 = vrot.slane %v2180, 4
      %v2183 = vor.u32 %v2182, %v2178
      %v2184 = vrot.slane %v2183, 4
      %v2186 = vshll.u32 %v2078, 16
      %v2188 = vrot.slane %v2186, 5
      %v2189 = vsel %vm310, %v2184, %v2188
      %v2191 = vshrl.u32 %v2079, 16
      %v2193 = vrot.slane %v2191, 4
      %v2194 = vshll.u32 %v2079, 16
      %v2196 = vrot.slane %v2194, 5
      %v2197 = vor.u32 %v2193, %v2196
      %v2198 = vrot.slane %v2197, 4
      %v2200 = vshll.u32 %v2080, 16
      %v2202 = vrot.slane %v2200, 5
      %v2203 = vsel %vm310, %v2198, %v2202
      %v2204 = vshrl.u32 %v2080, 16
      %v2206 = vrot.slane %v2204, 4
      %v2207 = vor.u32 %v2206, %v2202
      %v2208 = vrot.slane %v2207, 4
      %v2210 = vshll.u32 %v2081, 16
      %v2212 = vrot.slane %v2210, 5
      %v2213 = vsel %vm310, %v2208, %v2212
      %v2215 = vshrl.u32 %v2082, 16
      %v2217 = vrot.slane %v2215, 4
      %v2218 = vshll.u32 %v2082, 16
      %v2220 = vrot.slane %v2218, 5
      %v2221 = vor.u32 %v2217, %v2220
      %v2222 = vrot.slane %v2221, 4
      %v2224 = vshll.u32 %v2083, 16
      %v2226 = vrot.slane %v2224, 5
      %v2227 = vsel %vm310, %v2222, %v2226
      %v2228 = vshrl.u32 %v2083, 16
      %v2230 = vrot.slane %v2228, 4
      %v2231 = vor.u32 %v2230, %v2226
      %v2232 = vrot.slane %v2231, 4
      %v2234 = vshll.u32 %v2084, 16
      %v2236 = vrot.slane %v2234, 5
      %v2237 = vsel %vm310, %v2232, %v2236
      %v2239 = vshrl.u32 %v2085, 16
      %v2241 = vrot.slane %v2239, 4
      %v2242 = vshll.u32 %v2085, 16
      %v2244 = vrot.slane %v2242, 5
      %v2245 = vor.u32 %v2241, %v2244
      %v2246 = vrot.slane %v2245, 4
      %v2248 = vshll.u32 %v2086, 16
      %v2250 = vrot.slane %v2248, 5
      %v2251 = vsel %vm310, %v2246, %v2250
      %v2252 = vshrl.u32 %v2086, 16
      %v2254 = vrot.slane %v2252, 4
      %v2255 = vor.u32 %v2254, %v2250
      %v2256 = vrot.slane %v2255, 4
      %v2258 = vshll.u32 %v2087, 16
      %v2260 = vrot.slane %v2258, 5
      %v2261 = vsel %vm310, %v2256, %v2260
      %v2263 = vshrl.u32 %v2088, 16
      %v2265 = vrot.slane %v2263, 4
      %v2266 = vshll.u32 %v2088, 16
      %v2268 = vrot.slane %v2266, 5
      %v2269 = vor.u32 %v2265, %v2268
      %v2270 = vrot.slane %v2269, 4
      %v2272 = vshll.u32 %v2089, 16
      %v2274 = vrot.slane %v2272, 5
      %v2275 = vsel %vm310, %v2270, %v2274
      %v2276 = vshrl.u32 %v2089, 16
      %v2278 = vrot.slane %v2276, 4
      %v2279 = vor.u32 %v2278, %v2274
      %v2280 = vrot.slane %v2279, 4
      %v2282 = vshll.u32 %v2090, 16
      %v2284 = vrot.slane %v2282, 5
      %v2285 = vsel %vm310, %v2280, %v2284
      %v2287 = vshrl.u32 %v2091, 16
      %v2289 = vrot.slane %v2287, 4
      %v2290 = vshll.u32 %v2091, 16
      %v2292 = vrot.slane %v2290, 5
      %v2293 = vor.u32 %v2289, %v2292
      %v2294 = vrot.slane %v2293, 4
      %v2296 = vshll.u32 %v2092, 16
      %v2298 = vrot.slane %v2296, 5
      %v2299 = vsel %vm310, %v2294, %v2298
      %v2300 = vshrl.u32 %v2092, 16
      %v2302 = vrot.slane %v2300, 4
      %v2303 = vor.u32 %v2302, %v2298
      %v2304 = vrot.slane %v2303, 4
      %v2306 = vshll.u32 %v2093, 16
      %v2308 = vrot.slane %v2306, 5
      %v2309 = vsel %vm310, %v2304, %v2308
      %v2311 = vshrl.u32 %v2094, 16
      %v2313 = vrot.slane %v2311, 4
      %v2314 = vshll.u32 %v2094, 16
      %v2316 = vrot.slane %v2314, 5
      %v2317 = vor.u32 %v2313, %v2316
      %v2318 = vrot.slane %v2317, 4
      %v2320 = vshll.u32 %v2095, 16
      %v2322 = vrot.slane %v2320, 5
      %v2323 = vsel %vm310, %v2318, %v2322
      %v2324 = vshrl.u32 %v2095, 16
      %v2326 = vrot.slane %v2324, 4
      %v2327 = vor.u32 %v2326, %v2322
      %v2328 = vrot.slane %v2327, 4
      %v2330 = vshll.u32 %v2096, 16
      %v2332 = vrot.slane %v2330, 5
      %v2333 = vsel %vm310, %v2328, %v2332
      %v2335 = vshrl.u32 %v2097, 16
      %v2337 = vrot.slane %v2335, 4
      %v2338 = vshll.u32 %v2097, 16
      %v2340 = vrot.slane %v2338, 5
      %v2341 = vor.u32 %v2337, %v2340
      %v2342 = vrot.slane %v2341, 4
      %v2344 = vshll.u32 %v2098, 16
      %v2346 = vrot.slane %v2344, 5
      %v2347 = vsel %vm310, %v2342, %v2346
      %v2348 = vshrl.u32 %v2098, 16
      %v2350 = vrot.slane %v2348, 4
      %v2351 = vor.u32 %v2350, %v2346
      %v2352 = vrot.slane %v2351, 4
      %v2354 = vshll.u32 %v2099, 16
      %v2356 = vrot.slane %v2354, 5
      %v2357 = vsel %vm310, %v2352, %v2356
      %v2359 = vshrl.u32 %v2100, 16
      %v2361 = vrot.slane %v2359, 4
      %v2362 = vshll.u32 %v2100, 16
      %v2364 = vrot.slane %v2362, 5
      %v2365 = vor.u32 %v2361, %v2364
      %v2366 = vrot.slane %v2365, 4
      %v2368 = vshll.u32 %v2101, 16
      %v2370 = vrot.slane %v2368, 5
      %v2371 = vsel %vm310, %v2366, %v2370
      %v2372 = vshrl.u32 %v2101, 16
      %v2374 = vrot.slane %v2372, 4
      %v2375 = vor.u32 %v2374, %v2370
      %v2376 = vrot.slane %v2375, 4
      %v2378 = vshll.u32 %v2102, 16
      %v2380 = vrot.slane %v2378, 5
      %v2381 = vsel %vm310, %v2376, %v2380
      %v2383 = vshrl.u32 %v2103, 16
      %v2385 = vrot.slane %v2383, 4
      %v2386 = vshll.u32 %v2103, 16
      %v2388 = vrot.slane %v2386, 5
      %v2389 = vor.u32 %v2385, %v2388
      %v2390 = vrot.slane %v2389, 4
      %v2392 = vshll.u32 %v2104, 16
      %v2394 = vrot.slane %v2392, 5
      %v2395 = vsel %vm310, %v2390, %v2394
      %v2396 = vshrl.u32 %v2104, 16
      %v2398 = vrot.slane %v2396, 4
      %v2399 = vor.u32 %v2398, %v2394
      %v2400 = vrot.slane %v2399, 4
      %v2402 = vshll.u32 %v2105, 16
      %v2404 = vrot.slane %v2402, 5
      %v2405 = vsel %vm310, %v2400, %v2404
      %v2407 = vshrl.u32 %v2106, 16
      %v2409 = vrot.slane %v2407, 4
      %v2410 = vshll.u32 %v2106, 16
      %v2412 = vrot.slane %v2410, 5
      %v2413 = vor.u32 %v2409, %v2412
      %v2414 = vrot.slane %v2413, 4
      %v2416 = vshll.u32 %v2107, 16
      %v2418 = vrot.slane %v2416, 5
      %v2419 = vsel %vm310, %v2414, %v2418
      %v2420 = vshrl.u32 %v2107, 16
      %v2422 = vrot.slane %v2420, 4
      %v2423 = vor.u32 %v2422, %v2418
      %v2424 = vrot.slane %v2423, 4
      %v2426 = vshll.u32 %v2108, 16
      %v2428 = vrot.slane %v2426, 5
      %v2429 = vsel %vm310, %v2424, %v2428
      %v2431 = vshrl.u32 %v2109, 16
      %v2433 = vrot.slane %v2431, 4
      %v2434 = vshll.u32 %v2109, 16
      %v2436 = vrot.slane %v2434, 5
      %v2437 = vor.u32 %v2433, %v2436
      %v2438 = vrot.slane %v2437, 4
      %v2440 = vshll.u32 %v2110, 16
      %v2442 = vrot.slane %v2440, 5
      %v2443 = vsel %vm310, %v2438, %v2442
      %v2444 = vshrl.u32 %v2110, 16
      %v2446 = vrot.slane %v2444, 4
      %v2447 = vor.u32 %v2446, %v2442
      %v2448 = vrot.slane %v2447, 4
      %v2450 = vshll.u32 %v2111, 16
      %v2452 = vrot.slane %v2450, 5
      %v2453 = vsel %vm310, %v2448, %v2452
      %v2455 = vshrl.u32 %v2112, 16
      %v2457 = vrot.slane %v2455, 4
      %v2458 = vshll.u32 %v2112, 16
      %v2460 = vrot.slane %v2458, 5
      %v2461 = vor.u32 %v2457, %v2460
      %v2462 = vrot.slane %v2461, 4
      %v2464 = vshll.u32 %v2113, 16
      %v2466 = vrot.slane %v2464, 5
      %v2467 = vsel %vm310, %v2462, %v2466
      %v2468 = vshrl.u32 %v2113, 16
      %v2470 = vrot.slane %v2468, 4
      %v2471 = vor.u32 %v2470, %v2466
      %v2472 = vrot.slane %v2471, 4
      %v2474 = vshll.u32 %v2114, 16
      %v2476 = vrot.slane %v2474, 5
      %v2477 = vsel %vm310, %v2472, %v2476
      %v2479 = vshrl.u32 %v2115, 16
      %v2481 = vrot.slane %v2479, 4
      %v2482 = vshll.u32 %v2115, 16
      %v2484 = vrot.slane %v2482, 5
      %v2485 = vor.u32 %v2481, %v2484
      %v2486 = vrot.slane %v2485, 4
      %v2488 = vshll.u32 %v2116, 16
      %v2490 = vrot.slane %v2488, 5
      %v2491 = vsel %vm310, %v2486, %v2490
      %v2492 = vshrl.u32 %v2116, 16
      %v2494 = vrot.slane %v2492, 4
      %v2495 = vor.u32 %v2494, %v2490
      %v2496 = vrot.slane %v2495, 4
      %v2498 = vshll.u32 %v2117, 16
      %v2500 = vrot.slane %v2498, 5
      %v2501 = vsel %vm310, %v2496, %v2500
      %s2502 = scalar_lea.vmem %s1, 8
      %v2503 = vld [vmem:[%s2502] sm:$0x3]
      %v2504 = vunpack.c.l.b16 %v2131
      %v2505 = vunpack.c.l.b16 %v2141
      %v2506 = vunpack.c.l.b16 %v2155
      %v2507 = vunpack.c.l.b16 %v2165
      %v2508 = vunpack.c.l.b16 %v2179
      %v2509 = vunpack.c.l.b16 %v2189
      %v2510 = vunpack.c.l.b16 %v2203
      %v2511 = vunpack.c.l.b16 %v2213
      %v2512 = vunpack.c.l.b16 %v2227
      %v2513 = vunpack.c.l.b16 %v2237
      %v2514 = vunpack.c.l.b16 %v2251
      %v2515 = vunpack.c.l.b16 %v2261
      %v2516 = vunpack.c.l.b16 %v2275
      %v2517 = vunpack.c.l.b16 %v2285
      %v2518 = vunpack.c.l.b16 %v2299
      %v2519 = vunpack.c.l.b16 %v2309
      %v2520 = vunpack.c.l.b16 %v2323
      %v2521 = vunpack.c.l.b16 %v2333
      %v2522 = vunpack.c.l.b16 %v2347
      %v2523 = vunpack.c.l.b16 %v2357
      %v2524 = vunpack.c.l.b16 %v2371
      %v2525 = vunpack.c.l.b16 %v2381
      %v2526 = vunpack.c.l.b16 %v2395
      %v2527 = vunpack.c.l.b16 %v2405
      %v2528 = vunpack.c.l.b16 %v2419
      %v2529 = vunpack.c.l.b16 %v2429
      %v2530 = vunpack.c.l.b16 %v2443
      %v2531 = vunpack.c.l.b16 %v2453
      %v2532 = vunpack.c.l.b16 %v2467
      %v2533 = vunpack.c.l.b16 %v2477
      %v2534 = vunpack.c.l.b16 %v2491
      %v2535 = vunpack.c.l.b16 %v2501
      %v2536 = vpack.c.b16 %v2505, %v2504
      %v2537 = vpack.c.b16 %v2507, %v2506
      %v2538 = vpack.c.b16 %v2509, %v2508
      %v2539 = vpack.c.b16 %v2511, %v2510
      %v2540 = vpack.c.b16 %v2513, %v2512
      %v2541 = vpack.c.b16 %v2515, %v2514
      %v2542 = vpack.c.b16 %v2517, %v2516
      %v2543 = vpack.c.b16 %v2519, %v2518
      %v2544 = vpack.c.b16 %v2521, %v2520
      %v2545 = vpack.c.b16 %v2523, %v2522
      %v2546 = vpack.c.b16 %v2525, %v2524
      %v2547 = vpack.c.b16 %v2527, %v2526
      %v2548 = vpack.c.b16 %v2529, %v2528
      %v2549 = vpack.c.b16 %v2531, %v2530
      %v2550 = vpack.c.b16 %v2533, %v2532
      %v2551 = vpack.c.b16 %v2535, %v2534
      %v2553 = vsel %vm745, %v2536, 0
      %v2556 = vsel %vm745, %v2537, 0
      %v2559 = vsel %vm745, %v2538, 0
      %v2562 = vsel %vm745, %v2539, 0
      %v2565 = vsel %vm745, %v2540, 0
      %v2568 = vsel %vm745, %v2541, 0
      %v2571 = vsel %vm745, %v2542, 0
      %v2574 = vsel %vm745, %v2543, 0
      %v2577 = vsel %vm745, %v2544, 0
      %v2580 = vsel %vm745, %v2545, 0
      %v2583 = vsel %vm745, %v2546, 0
      %v2586 = vsel %vm745, %v2547, 0
      %v2589 = vsel %vm745, %v2548, 0
      %v2592 = vsel %vm745, %v2549, 0
      %v2595 = vsel %vm745, %v2550, 0
      %v2598 = vsel %vm745, %v2551, 0
      %v2601 = vsel %vm794, %v2503, 0
      %2603 = vmatprep.subr.bf16.mxu0 0
      %2604 = vmatpush1.bf16.msra.mxu0 %v2601
      %2605 = vmatprep.subr.bf16.mxu0 0
      %2606 = vmatpush1.bf16.msra.mxu0 0
      %2607 = vmatprep.subr.bf16.mxu0 0
      %2608 = vmatpush1.bf16.msra.mxu0 0
      %2609 = vmatprep.subr.bf16.mxu0 0
      %2610 = vmatpush1.bf16.msra.mxu0 0
      %2611 = vmatprep.subr.bf16.mxu0 0
      %2612 = vmatpush1.bf16.msra.mxu0 0
      %2613 = vmatprep.subr.bf16.mxu0 0
      %2614 = vmatpush1.bf16.msra.mxu0 0
      %2615 = vmatprep.subr.bf16.mxu0 0
      %2616 = vmatpush1.bf16.msra.mxu0 0
      %2617 = vmatprep.subr.bf16.mxu0 0
      %2618 = vmatpush1.bf16.msra.mxu0 0
      %2619 = vmatprep.subr.bf16.mxu0 0
      %2620 = vmatpush1.bf16.msra.mxu0 0
      %2621 = vmatprep.subr.bf16.mxu0 0
      %2622 = vmatpush1.bf16.msra.mxu0 0
      %2623 = vmatprep.subr.bf16.mxu0 0
      %2624 = vmatpush1.bf16.msra.mxu0 0
      %2625 = vmatprep.subr.bf16.mxu0 0
      %2626 = vmatpush1.bf16.msra.mxu0 0
      %2627 = vmatprep.subr.bf16.mxu0 0
      %2628 = vmatpush1.bf16.msra.mxu0 0
      %2629 = vmatprep.subr.bf16.mxu0 0
      %2630 = vmatpush1.bf16.msra.mxu0 0
      %2631 = vmatprep.subr.bf16.mxu0 0
      %2632 = vmatpush1.bf16.msra.mxu0 0
      %2633 = vmatprep.subr.bf16.mxu0 0
      %2634 = vmatpush1.bf16.msra.mxu0 0
      %2635 = vmatprep.mubr.bf16.mxu0 0
      %2636 = vmatmul.mubr.bf16.gmra.mrb[0].mxu0 %v2553
      %v2637 = vpop.f32.mrb[0].mxu0
      %v2638 = vadd.f32 0.0, %v2637
      %v2639 = vpop.f32.mrb[0].mxu0
      %v2640 = vpop.f32.mrb[0].mxu0
      %v2641 = vadd.f32 0.0, %v2640
      %v2642 = vpop.f32.mrb[0].mxu0
      %2643 = vmatprep.mubr.bf16.mxu0 0
      %2644 = vmatmul.mubr.bf16.gmra.mrb[0].mxu0 %v2556
      %v2645 = vpop.f32.mrb[0].mxu0
      %v2646 = vadd.f32 0.0, %v2645
      %v2647 = vpop.f32.mrb[0].mxu0
      %v2648 = vpop.f32.mrb[0].mxu0
      %v2649 = vadd.f32 0.0, %v2648
      %v2650 = vpop.f32.mrb[0].mxu0
      %2651 = vmatprep.mubr.bf16.mxu0 0
      %2652 = vmatmul.mubr.bf16.gmra.mrb[0].mxu0 %v2559
      %v2653 = vpop.f32.mrb[0].mxu0
      %v2654 = vadd.f32 0.0, %v2653
      %v2655 = vpop.f32.mrb[0].mxu0
      %v2656 = vpop.f32.mrb[0].mxu0
      %v2657 = vadd.f32 0.0, %v2656
      %v2658 = vpop.f32.mrb[0].mxu0
      %2659 = vmatprep.mubr.bf16.mxu0 0
      %2660 = vmatmul.mubr.bf16.gmra.mrb[0].mxu0 %v2562
      %v2661 = vpop.f32.mrb[0].mxu0
      %v2662 = vadd.f32 0.0, %v2661
      %v2663 = vpop.f32.mrb[0].mxu0
      %v2664 = vpop.f32.mrb[0].mxu0
      %v2665 = vadd.f32 0.0, %v2664
      %v2666 = vpop.f32.mrb[0].mxu0
      %2667 = vmatprep.mubr.bf16.mxu0 0
      %2668 = vmatmul.mubr.bf16.gmra.mrb[0].mxu0 %v2565
      %v2669 = vpop.f32.mrb[0].mxu0
      %v2670 = vadd.f32 0.0, %v2669
      %v2671 = vpop.f32.mrb[0].mxu0
      %v2672 = vpop.f32.mrb[0].mxu0
      %v2673 = vadd.f32 0.0, %v2672
      %v2674 = vpop.f32.mrb[0].mxu0
      %2675 = vmatprep.mubr.bf16.mxu0 0
      %2676 = vmatmul.mubr.bf16.gmra.mrb[0].mxu0 %v2568
      %v2677 = vpop.f32.mrb[0].mxu0
      %v2678 = vadd.f32 0.0, %v2677
      %v2679 = vpop.f32.mrb[0].mxu0
      %v2680 = vpop.f32.mrb[0].mxu0
      %v2681 = vadd.f32 0.0, %v2680
      %v2682 = vpop.f32.mrb[0].mxu0
      %2683 = vmatprep.mubr.bf16.mxu0 0
      %2684 = vmatmul.mubr.bf16.gmra.mrb[0].mxu0 %v2571
      %v2685 = vpop.f32.mrb[0].mxu0
      %v2686 = vadd.f32 0.0, %v2685
      %v2687 = vpop.f32.mrb[0].mxu0
      %v2688 = vpop.f32.mrb[0].mxu0
      %v2689 = vadd.f32 0.0, %v2688
      %v2690 = vpop.f32.mrb[0].mxu0
      %2691 = vmatprep.mubr.bf16.mxu0 0
      %2692 = vmatmul.mubr.bf16.gmra.mrb[0].mxu0 %v2574
      %v2693 = vpop.f32.mrb[0].mxu0
      %v2694 = vadd.f32 0.0, %v2693
      %v2695 = vpop.f32.mrb[0].mxu0
      %v2696 = vpop.f32.mrb[0].mxu0
      %v2697 = vadd.f32 0.0, %v2696
      %v2698 = vpop.f32.mrb[0].mxu0
      %2699 = vmatprep.mubr.bf16.mxu0 0
      %2700 = vmatmul.mubr.bf16.gmra.mrb[0].mxu0 %v2577
      %v2701 = vpop.f32.mrb[0].mxu0
      %v2702 = vadd.f32 0.0, %v2701
      %v2703 = vpop.f32.mrb[0].mxu0
      %v2704 = vpop.f32.mrb[0].mxu0
      %v2705 = vadd.f32 0.0, %v2704
      %v2706 = vpop.f32.mrb[0].mxu0
      %2707 = vmatprep.mubr.bf16.mxu0 0
      %2708 = vmatmul.mubr.bf16.gmra.mrb[0].mxu0 %v2580
      %v2709 = vpop.f32.mrb[0].mxu0
      %v2710 = vadd.f32 0.0, %v2709
      %v2711 = vpop.f32.mrb[0].mxu0
      %v2712 = vpop.f32.mrb[0].mxu0
      %v2713 = vadd.f32 0.0, %v2712
      %v2714 = vpop.f32.mrb[0].mxu0
      %2715 = vmatprep.mubr.bf16.mxu0 0
      %2716 = vmatmul.mubr.bf16.gmra.mrb[0].mxu0 %v2583
      %v2717 = vpop.f32.mrb[0].mxu0
      %v2718 = vadd.f32 0.0, %v2717
      %v2719 = vpop.f32.mrb[0].mxu0
      %v2720 = vpop.f32.mrb[0].mxu0
      %v2721 = vadd.f32 0.0, %v2720
      %v2722 = vpop.f32.mrb[0].mxu0
      %2723 = vmatprep.mubr.bf16.mxu0 0
      %2724 = vmatmul.mubr.bf16.gmra.mrb[0].mxu0 %v2586
      %v2725 = vpop.f32.mrb[0].mxu0
      %v2726 = vadd.f32 0.0, %v2725
      %v2727 = vpop.f32.mrb[0].mxu0
      %v2728 = vpop.f32.mrb[0].mxu0
      %v2729 = vadd.f32 0.0, %v2728
      %v2730 = vpop.f32.mrb[0].mxu0
      %2731 = vmatprep.mubr.bf16.mxu0 0
      %2732 = vmatmul.mubr.bf16.gmra.mrb[0].mxu0 %v2589
      %v2733 = vpop.f32.mrb[0].mxu0
      %v2734 = vadd.f32 0.0, %v2733
      %v2735 = vpop.f32.mrb[0].mxu0
      %v2736 = vpop.f32.mrb[0].mxu0
      %v2737 = vadd.f32 0.0, %v2736
      %v2738 = vpop.f32.mrb[0].mxu0
      %2739 = vmatprep.mubr.bf16.mxu0 0
      %2740 = vmatmul.mubr.bf16.gmra.mrb[0].mxu0 %v2592
      %v2741 = vpop.f32.mrb[0].mxu0
      %v2742 = vadd.f32 0.0, %v2741
      %v2743 = vpop.f32.mrb[0].mxu0
      %v2744 = vpop.f32.mrb[0].mxu0
      %v2745 = vadd.f32 0.0, %v2744
      %v2746 = vpop.f32.mrb[0].mxu0
      %2747 = vmatprep.mubr.bf16.mxu0 0
      %2748 = vmatmul.mubr.bf16.gmra.mrb[0].mxu0 %v2595
      %v2749 = vpop.f32.mrb[0].mxu0
      %v2750 = vadd.f32 0.0, %v2749
      %v2751 = vpop.f32.mrb[0].mxu0
      %v2752 = vpop.f32.mrb[0].mxu0
      %v2753 = vadd.f32 0.0, %v2752
      %v2754 = vpop.f32.mrb[0].mxu0
      %2755 = vmatprep.mubr.bf16.mxu0 0
      %2756 = vmatmul.mubr.bf16.gmra.mrb[0].mxu0 %v2598
      %v2757 = vpop.f32.mrb[0].mxu0
      %v2758 = vadd.f32 0.0, %v2757
      %v2759 = vpop.f32.mrb[0].mxu0
      %v2760 = vpop.f32.mrb[0].mxu0
      %v2761 = vadd.f32 0.0, %v2760
      %v2762 = vpop.f32.mrb[0].mxu0
      %2763 = vdwg.mxu0
      %v2764 = vadd.f32 %v2038, %v2638
      %v2765 = vadd.f32 %v2039, %v2641
      %v2766 = vadd.f32 %v2040, %v2646
      %v2767 = vadd.f32 %v2041, %v2649
      %v2768 = vadd.f32 %v2042, %v2654
      %v2769 = vadd.f32 %v2043, %v2657
      %v2770 = vadd.f32 %v2044, %v2662
      %v2771 = vadd.f32 %v2045, %v2665
      %v2772 = vadd.f32 %v2046, %v2670
      %v2773 = vadd.f32 %v2047, %v2673
      %v2774 = vadd.f32 %v2048, %v2678
      %v2775 = vadd.f32 %v2049, %v2681
      %v2776 = vadd.f32 %v2050, %v2686
      %v2777 = vadd.f32 %v2051, %v2689
      %v2778 = vadd.f32 %v2052, %v2694
      %v2779 = vadd.f32 %v2053, %v2697
      %v2780 = vadd.f32 %v2054, %v2702
      %v2781 = vadd.f32 %v2055, %v2705
      %v2782 = vadd.f32 %v2056, %v2710
      %v2783 = vadd.f32 %v2057, %v2713
      %v2784 = vadd.f32 %v2058, %v2718
      %v2785 = vadd.f32 %v2059, %v2721
      %v2786 = vadd.f32 %v2060, %v2726
      %v2787 = vadd.f32 %v2061, %v2729
      %v2788 = vadd.f32 %v2062, %v2734
      %v2789 = vadd.f32 %v2063, %v2737
      %v2790 = vadd.f32 %v2064, %v2742
      %v2791 = vadd.f32 %v2065, %v2745
      %v2792 = vadd.f32 %v2066, %v2750
      %v2793 = vadd.f32 %v2067, %v2753
      %v2794 = vadd.f32 %v2068, %v2758
      %v2795 = vadd.f32 %v2069, %v2761
      %v2796 = vld [vmem:[%s1711] sm:$0xe]
      %v2797 = vld [vmem:[%s1711 + $0xc] sm:$0xe]
      %v2798 = vld [vmem:[%s1711 + $0x18] sm:$0xe]
      %v2799 = vld [vmem:[%s1711 + $0x24] sm:$0xe]
      %v2800 = vld [vmem:[%s1711 + $0x30] sm:$0xe]
      %v2801 = vld [vmem:[%s1711 + $0x3c] sm:$0xe]
      %v2802 = vld [vmem:[%s1711 + $0x48] sm:$0xe]
      %v2803 = vld [vmem:[%s1711 + $0x54] sm:$0xe]
      %v2804 = vld [vmem:[%s1711 + $0x60] sm:$0xe]
      %v2805 = vld [vmem:[%s1711 + $0x6c] sm:$0xe]
      %v2806 = vld [vmem:[%s1711 + $0x78] sm:$0xe]
      %v2807 = vld [vmem:[%s1711 + $0x84] sm:$0xe]
      %v2808 = vld [vmem:[%s1711 + $0x90] sm:$0xe]
      %v2809 = vld [vmem:[%s1711 + $0x9c] sm:$0xe]
      %v2810 = vld [vmem:[%s1711 + $0xa8] sm:$0xe]
      %v2811 = vld [vmem:[%s1711 + $0xb4] sm:$0xe]
      %v2860 = vrot.slane %v2796, 5
      %v2861 = vrot.slane %v2860, 4
      %v2862 = vrot.slane %v2071, 5
      %v2863 = vsel %vm1301, %v2861, %v2862
      %v2864 = vrot.slane %v2862, 4
      %v2865 = vrot.slane %v2072, 5
      %v2866 = vsel %vm1301, %v2864, %v2865
      %v2867 = vrot.slane %v2797, 5
      %v2868 = vrot.slane %v2867, 4
      %v2869 = vrot.slane %v2074, 5
      %v2870 = vsel %vm1301, %v2868, %v2869
      %v2871 = vrot.slane %v2869, 4
      %v2872 = vrot.slane %v2075, 5
      %v2873 = vsel %vm1301, %v2871, %v2872
      %v2874 = vrot.slane %v2798, 5
      %v2875 = vrot.slane %v2874, 4
      %v2876 = vrot.slane %v2077, 5
      %v2877 = vsel %vm1301, %v2875, %v2876
      %v2878 = vrot.slane %v2876, 4
      %v2879 = vrot.slane %v2078, 5
      %v2880 = vsel %vm1301, %v2878, %v2879
      %v2881 = vrot.slane %v2799, 5
      %v2882 = vrot.slane %v2881, 4
      %v2883 = vrot.slane %v2080, 5
      %v2884 = vsel %vm1301, %v2882, %v2883
      %v2885 = vrot.slane %v2883, 4
      %v2886 = vrot.slane %v2081, 5
      %v2887 = vsel %vm1301, %v2885, %v2886
      %v2888 = vrot.slane %v2800, 5
      %v2889 = vrot.slane %v2888, 4
      %v2890 = vrot.slane %v2083, 5
      %v2891 = vsel %vm1301, %v2889, %v2890
      %v2892 = vrot.slane %v2890, 4
      %v2893 = vrot.slane %v2084, 5
      %v2894 = vsel %vm1301, %v2892, %v2893
      %v2895 = vrot.slane %v2801, 5
      %v2896 = vrot.slane %v2895, 4
      %v2897 = vrot.slane %v2086, 5
      %v2898 = vsel %vm1301, %v2896, %v2897
      %v2899 = vrot.slane %v2897, 4
      %v2900 = vrot.slane %v2087, 5
      %v2901 = vsel %vm1301, %v2899, %v2900
      %v2902 = vrot.slane %v2802, 5
      %v2903 = vrot.slane %v2902, 4
      %v2904 = vrot.slane %v2089, 5
      %v2905 = vsel %vm1301, %v2903, %v2904
      %v2906 = vrot.slane %v2904, 4
      %v2907 = vrot.slane %v2090, 5
      %v2908 = vsel %vm1301, %v2906, %v2907
      %v2909 = vrot.slane %v2803, 5
      %v2910 = vrot.slane %v2909, 4
      %v2911 = vrot.slane %v2092, 5
      %v2912 = vsel %vm1301, %v2910, %v2911
      %v2913 = vrot.slane %v2911, 4
      %v2914 = vrot.slane %v2093, 5
      %v2915 = vsel %vm1301, %v2913, %v2914
      %v2916 = vrot.slane %v2804, 5
      %v2917 = vrot.slane %v2916, 4
      %v2918 = vrot.slane %v2095, 5
      %v2919 = vsel %vm1301, %v2917, %v2918
      %v2920 = vrot.slane %v2918, 4
      %v2921 = vrot.slane %v2096, 5
      %v2922 = vsel %vm1301, %v2920, %v2921
      %v2923 = vrot.slane %v2805, 5
      %v2924 = vrot.slane %v2923, 4
      %v2925 = vrot.slane %v2098, 5
      %v2926 = vsel %vm1301, %v2924, %v2925
      %v2927 = vrot.slane %v2925, 4
      %v2928 = vrot.slane %v2099, 5
      %v2929 = vsel %vm1301, %v2927, %v2928
      %v2930 = vrot.slane %v2806, 5
      %v2931 = vrot.slane %v2930, 4
      %v2932 = vrot.slane %v2101, 5
      %v2933 = vsel %vm1301, %v2931, %v2932
      %v2934 = vrot.slane %v2932, 4
      %v2935 = vrot.slane %v2102, 5
      %v2936 = vsel %vm1301, %v2934, %v2935
      %v2937 = vrot.slane %v2807, 5
      %v2938 = vrot.slane %v2937, 4
      %v2939 = vrot.slane %v2104, 5
      %v2940 = vsel %vm1301, %v2938, %v2939
      %v2941 = vrot.slane %v2939, 4
      %v2942 = vrot.slane %v2105, 5
      %v2943 = vsel %vm1301, %v2941, %v2942
      %v2944 = vrot.slane %v2808, 5
      %v2945 = vrot.slane %v2944, 4
      %v2946 = vrot.slane %v2107, 5
      %v2947 = vsel %vm1301, %v2945, %v2946
      %v2948 = vrot.slane %v2946, 4
      %v2949 = vrot.slane %v2108, 5
      %v2950 = vsel %vm1301, %v2948, %v2949
      %v2951 = vrot.slane %v2809, 5
      %v2952 = vrot.slane %v2951, 4
      %v2953 = vrot.slane %v2110, 5
      %v2954 = vsel %vm1301, %v2952, %v2953
      %v2955 = vrot.slane %v2953, 4
      %v2956 = vrot.slane %v2111, 5
      %v2957 = vsel %vm1301, %v2955, %v2956
      %v2958 = vrot.slane %v2810, 5
      %v2959 = vrot.slane %v2958, 4
      %v2960 = vrot.slane %v2113, 5
      %v2961 = vsel %vm1301, %v2959, %v2960
      %v2962 = vrot.slane %v2960, 4
      %v2963 = vrot.slane %v2114, 5
      %v2964 = vsel %vm1301, %v2962, %v2963
      %v2965 = vrot.slane %v2811, 5
      %v2966 = vrot.slane %v2965, 4
      %v2967 = vrot.slane %v2116, 5
      %v2968 = vsel %vm1301, %v2966, %v2967
      %v2969 = vrot.slane %v2967, 4
      %v2970 = vrot.slane %v2117, 5
      %v2971 = vsel %vm1301, %v2969, %v2970
      %s2972 = scalar_lea.vmem %s1, 10
      %v2973 = vld [vmem:[%s2972] sm:$0x3]
      %v2974 = vunpack.c.l.b16 %v2863
      %v2975 = vunpack.c.l.b16 %v2866
      %v2976 = vunpack.c.l.b16 %v2870
      %v2977 = vunpack.c.l.b16 %v2873
      %v2978 = vunpack.c.l.b16 %v2877
      %v2979 = vunpack.c.l.b16 %v2880
      %v2980 = vunpack.c.l.b16 %v2884
      %v2981 = vunpack.c.l.b16 %v2887
      %v2982 = vunpack.c.l.b16 %v2891
      %v2983 = vunpack.c.l.b16 %v2894
      %v2984 = vunpack.c.l.b16 %v2898
      %v2985 = vunpack.c.l.b16 %v2901
      %v2986 = vunpack.c.l.b16 %v2905
      %v2987 = vunpack.c.l.b16 %v2908
      %v2988 = vunpack.c.l.b16 %v2912
      %v2989 = vunpack.c.l.b16 %v2915
      %v2990 = vunpack.c.l.b16 %v2919
      %v2991 = vunpack.c.l.b16 %v2922
      %v2992 = vunpack.c.l.b16 %v2926
      %v2993 = vunpack.c.l.b16 %v2929
      %v2994 = vunpack.c.l.b16 %v2933
      %v2995 = vunpack.c.l.b16 %v2936
      %v2996 = vunpack.c.l.b16 %v2940
      %v2997 = vunpack.c.l.b16 %v2943
      %v2998 = vunpack.c.l.b16 %v2947
      %v2999 = vunpack.c.l.b16 %v2950
      %v3000 = vunpack.c.l.b16 %v2954
      %v3001 = vunpack.c.l.b16 %v2957
      %v3002 = vunpack.c.l.b16 %v2961
      %v3003 = vunpack.c.l.b16 %v2964
      %v3004 = vunpack.c.l.b16 %v2968
      %v3005 = vunpack.c.l.b16 %v2971
      %v3006 = vpack.c.b16 %v2975, %v2974
      %v3007 = vpack.c.b16 %v2977, %v2976
      %v3008 = vpack.c.b16 %v2979, %v2978
      %v3009 = vpack.c.b16 %v2981, %v2980
      %v3010 = vpack.c.b16 %v2983, %v2982
      %v3011 = vpack.c.b16 %v2985, %v2984
      %v3012 = vpack.c.b16 %v2987, %v2986
      %v3013 = vpack.c.b16 %v2989, %v2988
      %v3014 = vpack.c.b16 %v2991, %v2990
      %v3015 = vpack.c.b16 %v2993, %v2992
      %v3016 = vpack.c.b16 %v2995, %v2994
      %v3017 = vpack.c.b16 %v2997, %v2996
      %v3018 = vpack.c.b16 %v2999, %v2998
      %v3019 = vpack.c.b16 %v3001, %v3000
      %v3020 = vpack.c.b16 %v3003, %v3002
      %v3021 = vpack.c.b16 %v3005, %v3004
      %v3023 = vsel %vm745, %v3006, 0
      %v3026 = vsel %vm745, %v3007, 0
      %v3029 = vsel %vm745, %v3008, 0
      %v3032 = vsel %vm745, %v3009, 0
      %v3035 = vsel %vm745, %v3010, 0
      %v3038 = vsel %vm745, %v3011, 0
      %v3041 = vsel %vm745, %v3012, 0
      %v3044 = vsel %vm745, %v3013, 0
      %v3047 = vsel %vm745, %v3014, 0
      %v3050 = vsel %vm745, %v3015, 0
      %v3053 = vsel %vm745, %v3016, 0
      %v3056 = vsel %vm745, %v3017, 0
      %v3059 = vsel %vm745, %v3018, 0
      %v3062 = vsel %vm745, %v3019, 0
      %v3065 = vsel %vm745, %v3020, 0
      %v3068 = vsel %vm745, %v3021, 0
      %v3071 = vsel %vm794, %v2973, 0
      %3073 = vmatprep.subr.bf16.mxu0 0
      %3074 = vmatpush1.bf16.msra.mxu0 %v3071
      %3075 = vmatprep.subr.bf16.mxu0 0
      %3076 = vmatpush1.bf16.msra.mxu0 0
      %3077 = vmatprep.subr.bf16.mxu0 0
      %3078 = vmatpush1.bf16.msra.mxu0 0
      %3079 = vmatprep.subr.bf16.mxu0 0
      %3080 = vmatpush1.bf16.msra.mxu0 0
      %3081 = vmatprep.subr.bf16.mxu0 0
      %3082 = vmatpush1.bf16.msra.mxu0 0
      %3083 = vmatprep.subr.bf16.mxu0 0
      %3084 = vmatpush1.bf16.msra.mxu0 0
      %3085 = vmatprep.subr.bf16.mxu0 0
      %3086 = vmatpush1.bf16.msra.mxu0 0
      %3087 = vmatprep.subr.bf16.mxu0 0
      %3088 = vmatpush1.bf16.msra.mxu0 0
      %3089 = vmatprep.subr.bf16.mxu0 0
      %3090 = vmatpush1.bf16.msra.mxu0 0
      %3091 = vmatprep.subr.bf16.mxu0 0
      %3092 = vmatpush1.bf16.msra.mxu0 0
      %3093 = vmatprep.subr.bf16.mxu0 0
      %3094 = vmatpush1.bf16.msra.mxu0 0
      %3095 = vmatprep.subr.bf16.mxu0 0
      %3096 = vmatpush1.bf16.msra.mxu0 0
      %3097 = vmatprep.subr.bf16.mxu0 0
      %3098 = vmatpush1.bf16.msra.mxu0 0
      %3099 = vmatprep.subr.bf16.mxu0 0
      %3100 = vmatpush1.bf16.msra.mxu0 0
      %3101 = vmatprep.subr.bf16.mxu0 0
      %3102 = vmatpush1.bf16.msra.mxu0 0
      %3103 = vmatprep.subr.bf16.mxu0 0
      %3104 = vmatpush1.bf16.msra.mxu0 0
      %3105 = vmatprep.mubr.bf16.mxu0 0
      %3106 = vmatmul.mubr.bf16.gmra.mrb[0].mxu0 %v3023
      %v3107 = vpop.f32.mrb[0].mxu0
      %v3108 = vadd.f32 0.0, %v3107
      %v3109 = vpop.f32.mrb[0].mxu0
      %v3110 = vpop.f32.mrb[0].mxu0
      %v3111 = vadd.f32 0.0, %v3110
      %v3112 = vpop.f32.mrb[0].mxu0
      %3113 = vmatprep.mubr.bf16.mxu0 0
      %3114 = vmatmul.mubr.bf16.gmra.mrb[0].mxu0 %v3026
      %v3115 = vpop.f32.mrb[0].mxu0
      %v3116 = vadd.f32 0.0, %v3115
      %v3117 = vpop.f32.mrb[0].mxu0
      %v3118 = vpop.f32.mrb[0].mxu0
      %v3119 = vadd.f32 0.0, %v3118
      %v3120 = vpop.f32.mrb[0].mxu0
      %3121 = vmatprep.mubr.bf16.mxu0 0
      %3122 = vmatmul.mubr.bf16.gmra.mrb[0].mxu0 %v3029
      %v3123 = vpop.f32.mrb[0].mxu0
      %v3124 = vadd.f32 0.0, %v3123
      %v3125 = vpop.f32.mrb[0].mxu0
      %v3126 = vpop.f32.mrb[0].mxu0
      %v3127 = vadd.f32 0.0, %v3126
      %v3128 = vpop.f32.mrb[0].mxu0
      %3129 = vmatprep.mubr.bf16.mxu0 0
      %3130 = vmatmul.mubr.bf16.gmra.mrb[0].mxu0 %v3032
      %v3131 = vpop.f32.mrb[0].mxu0
      %v3132 = vadd.f32 0.0, %v3131
      %v3133 = vpop.f32.mrb[0].mxu0
      %v3134 = vpop.f32.mrb[0].mxu0
      %v3135 = vadd.f32 0.0, %v3134
      %v3136 = vpop.f32.mrb[0].mxu0
      %3137 = vmatprep.mubr.bf16.mxu0 0
      %3138 = vmatmul.mubr.bf16.gmra.mrb[0].mxu0 %v3035
      %v3139 = vpop.f32.mrb[0].mxu0
      %v3140 = vadd.f32 0.0, %v3139
      %v3141 = vpop.f32.mrb[0].mxu0
      %v3142 = vpop.f32.mrb[0].mxu0
      %v3143 = vadd.f32 0.0, %v3142
      %v3144 = vpop.f32.mrb[0].mxu0
      %3145 = vmatprep.mubr.bf16.mxu0 0
      %3146 = vmatmul.mubr.bf16.gmra.mrb[0].mxu0 %v3038
      %v3147 = vpop.f32.mrb[0].mxu0
      %v3148 = vadd.f32 0.0, %v3147
      %v3149 = vpop.f32.mrb[0].mxu0
      %v3150 = vpop.f32.mrb[0].mxu0
      %v3151 = vadd.f32 0.0, %v3150
      %v3152 = vpop.f32.mrb[0].mxu0
      %3153 = vmatprep.mubr.bf16.mxu0 0
      %3154 = vmatmul.mubr.bf16.gmra.mrb[0].mxu0 %v3041
      %v3155 = vpop.f32.mrb[0].mxu0
      %v3156 = vadd.f32 0.0, %v3155
      %v3157 = vpop.f32.mrb[0].mxu0
      %v3158 = vpop.f32.mrb[0].mxu0
      %v3159 = vadd.f32 0.0, %v3158
      %v3160 = vpop.f32.mrb[0].mxu0
      %3161 = vmatprep.mubr.bf16.mxu0 0
      %3162 = vmatmul.mubr.bf16.gmra.mrb[0].mxu0 %v3044
      %v3163 = vpop.f32.mrb[0].mxu0
      %v3164 = vadd.f32 0.0, %v3163
      %v3165 = vpop.f32.mrb[0].mxu0
      %v3166 = vpop.f32.mrb[0].mxu0
      %v3167 = vadd.f32 0.0, %v3166
      %v3168 = vpop.f32.mrb[0].mxu0
      %3169 = vmatprep.mubr.bf16.mxu0 0
      %3170 = vmatmul.mubr.bf16.gmra.mrb[0].mxu0 %v3047
      %v3171 = vpop.f32.mrb[0].mxu0
      %v3172 = vadd.f32 0.0, %v3171
      %v3173 = vpop.f32.mrb[0].mxu0
      %v3174 = vpop.f32.mrb[0].mxu0
      %v3175 = vadd.f32 0.0, %v3174
      %v3176 = vpop.f32.mrb[0].mxu0
      %3177 = vmatprep.mubr.bf16.mxu0 0
      %3178 = vmatmul.mubr.bf16.gmra.mrb[0].mxu0 %v3050
      %v3179 = vpop.f32.mrb[0].mxu0
      %v3180 = vadd.f32 0.0, %v3179
      %v3181 = vpop.f32.mrb[0].mxu0
      %v3182 = vpop.f32.mrb[0].mxu0
      %v3183 = vadd.f32 0.0, %v3182
      %v3184 = vpop.f32.mrb[0].mxu0
      %3185 = vmatprep.mubr.bf16.mxu0 0
      %3186 = vmatmul.mubr.bf16.gmra.mrb[0].mxu0 %v3053
      %v3187 = vpop.f32.mrb[0].mxu0
      %v3188 = vadd.f32 0.0, %v3187
      %v3189 = vpop.f32.mrb[0].mxu0
      %v3190 = vpop.f32.mrb[0].mxu0
      %v3191 = vadd.f32 0.0, %v3190
      %v3192 = vpop.f32.mrb[0].mxu0
      %3193 = vmatprep.mubr.bf16.mxu0 0
      %3194 = vmatmul.mubr.bf16.gmra.mrb[0].mxu0 %v3056
      %v3195 = vpop.f32.mrb[0].mxu0
      %v3196 = vadd.f32 0.0, %v3195
      %v3197 = vpop.f32.mrb[0].mxu0
      %v3198 = vpop.f32.mrb[0].mxu0
      %v3199 = vadd.f32 0.0, %v3198
      %v3200 = vpop.f32.mrb[0].mxu0
      %3201 = vmatprep.mubr.bf16.mxu0 0
      %3202 = vmatmul.mubr.bf16.gmra.mrb[0].mxu0 %v3059
      %v3203 = vpop.f32.mrb[0].mxu0
      %v3204 = vadd.f32 0.0, %v3203
      %v3205 = vpop.f32.mrb[0].mxu0
      %v3206 = vpop.f32.mrb[0].mxu0
      %v3207 = vadd.f32 0.0, %v3206
      %v3208 = vpop.f32.mrb[0].mxu0
      %3209 = vmatprep.mubr.bf16.mxu0 0
      %3210 = vmatmul.mubr.bf16.gmra.mrb[0].mxu0 %v3062
      %v3211 = vpop.f32.mrb[0].mxu0
      %v3212 = vadd.f32 0.0, %v3211
      %v3213 = vpop.f32.mrb[0].mxu0
      %v3214 = vpop.f32.mrb[0].mxu0
      %v3215 = vadd.f32 0.0, %v3214
      %v3216 = vpop.f32.mrb[0].mxu0
      %3217 = vmatprep.mubr.bf16.mxu0 0
      %3218 = vmatmul.mubr.bf16.gmra.mrb[0].mxu0 %v3065
      %v3219 = vpop.f32.mrb[0].mxu0
      %v3220 = vadd.f32 0.0, %v3219
      %v3221 = vpop.f32.mrb[0].mxu0
      %v3222 = vpop.f32.mrb[0].mxu0
      %v3223 = vadd.f32 0.0, %v3222
      %v3224 = vpop.f32.mrb[0].mxu0
      %3225 = vmatprep.mubr.bf16.mxu0 0
      %3226 = vmatmul.mubr.bf16.gmra.mrb[0].mxu0 %v3068
      %v3227 = vpop.f32.mrb[0].mxu0
      %v3228 = vadd.f32 0.0, %v3227
      %v3229 = vpop.f32.mrb[0].mxu0
      %v3230 = vpop.f32.mrb[0].mxu0
      %v3231 = vadd.f32 0.0, %v3230
      %v3232 = vpop.f32.mrb[0].mxu0
      %3233 = vdwg.mxu0
      %v3234 = vadd.f32 %v2764, %v3108
      %v3235 = vadd.f32 %v2765, %v3111
      %v3236 = vadd.f32 %v2766, %v3116
      %v3237 = vadd.f32 %v2767, %v3119
      %v3238 = vadd.f32 %v2768, %v3124
      %v3239 = vadd.f32 %v2769, %v3127
      %v3240 = vadd.f32 %v2770, %v3132
      %v3241 = vadd.f32 %v2771, %v3135
      %v3242 = vadd.f32 %v2772, %v3140
      %v3243 = vadd.f32 %v2773, %v3143
      %v3244 = vadd.f32 %v2774, %v3148
      %v3245 = vadd.f32 %v2775, %v3151
      %v3246 = vadd.f32 %v2776, %v3156
      %v3247 = vadd.f32 %v2777, %v3159
      %v3248 = vadd.f32 %v2778, %v3164
      %v3249 = vadd.f32 %v2779, %v3167
      %v3250 = vadd.f32 %v2780, %v3172
      %v3251 = vadd.f32 %v2781, %v3175
      %v3252 = vadd.f32 %v2782, %v3180
      %v3253 = vadd.f32 %v2783, %v3183
      %v3254 = vadd.f32 %v2784, %v3188
      %v3255 = vadd.f32 %v2785, %v3191
      %v3256 = vadd.f32 %v2786, %v3196
      %v3257 = vadd.f32 %v2787, %v3199
      %v3258 = vadd.f32 %v2788, %v3204
      %v3259 = vadd.f32 %v2789, %v3207
      %v3260 = vadd.f32 %v2790, %v3212
      %v3261 = vadd.f32 %v2791, %v3215
      %v3262 = vadd.f32 %v2792, %v3220
      %v3263 = vadd.f32 %v2793, %v3223
      %v3264 = vadd.f32 %v2794, %v3228
      %v3265 = vadd.f32 %v2795, %v3231
      %s3266 = sadd.s32 %s255, 2
      %s3267 = smul.u32 %s3266, 3
      %s3268 = smul.addr %s3267, 4
      %s3269 = scalar_lea.vmem %s231, %s3268
      %v3270 = vld [vmem:[%s3269] sm:$0xf]
      %v3271 = vld [vmem:[%s3269 + $0x4] sm:$0xf]
      %v3272 = vld [vmem:[%s3269 + $0xc] sm:$0xf]
      %v3273 = vld [vmem:[%s3269 + $0x10] sm:$0xf]
      %v3274 = vld [vmem:[%s3269 + $0x18] sm:$0xf]
      %v3275 = vld [vmem:[%s3269 + $0x1c] sm:$0xf]
      %v3276 = vld [vmem:[%s3269 + $0x24] sm:$0xf]
      %v3277 = vld [vmem:[%s3269 + $0x28] sm:$0xf]
      %v3278 = vld [vmem:[%s3269 + $0x30] sm:$0xf]
      %v3279 = vld [vmem:[%s3269 + $0x34] sm:$0xf]
      %v3280 = vld [vmem:[%s3269 + $0x3c] sm:$0xf]
      %v3281 = vld [vmem:[%s3269 + $0x40] sm:$0xf]
      %v3282 = vld [vmem:[%s3269 + $0x48] sm:$0xf]
      %v3283 = vld [vmem:[%s3269 + $0x4c] sm:$0xf]
      %v3284 = vld [vmem:[%s3269 + $0x54] sm:$0xf]
      %v3285 = vld [vmem:[%s3269 + $0x58] sm:$0xf]
      %v3286 = vld [vmem:[%s3269 + $0x60] sm:$0xf]
      %v3287 = vld [vmem:[%s3269 + $0x64] sm:$0xf]
      %v3288 = vld [vmem:[%s3269 + $0x6c] sm:$0xf]
      %v3289 = vld [vmem:[%s3269 + $0x70] sm:$0xf]
      %v3290 = vld [vmem:[%s3269 + $0x78] sm:$0xf]
      %v3291 = vld [vmem:[%s3269 + $0x7c] sm:$0xf]
      %v3292 = vld [vmem:[%s3269 + $0x84] sm:$0xf]
      %v3293 = vld [vmem:[%s3269 + $0x88] sm:$0xf]
      %v3294 = vld [vmem:[%s3269 + $0x90] sm:$0xf]
      %v3295 = vld [vmem:[%s3269 + $0x94] sm:$0xf]
      %v3296 = vld [vmem:[%s3269 + $0x9c] sm:$0xf]
      %v3297 = vld [vmem:[%s3269 + $0xa0] sm:$0xf]
      %v3298 = vld [vmem:[%s3269 + $0xa8] sm:$0xf]
      %v3299 = vld [vmem:[%s3269 + $0xac] sm:$0xf]
      %v3300 = vld [vmem:[%s3269 + $0xb4] sm:$0xf]
      %v3301 = vld [vmem:[%s3269 + $0xb8] sm:$0xf]
      %s3302 = scalar_lea.vmem %s1, 12
      %v3303 = vld [vmem:[%s3302] sm:$0x3]
      %v3336 = vunpack.c.l.b16 %v3270
      %v3337 = vunpack.c.l.b16 %v3271
      %v3338 = vunpack.c.l.b16 %v3272
      %v3339 = vunpack.c.l.b16 %v3273
      %v3340 = vunpack.c.l.b16 %v3274
      %v3341 = vunpack.c.l.b16 %v3275
      %v3342 = vunpack.c.l.b16 %v3276
      %v3343 = vunpack.c.l.b16 %v3277
      %v3344 = vunpack.c.l.b16 %v3278
      %v3345 = vunpack.c.l.b16 %v3279
      %v3346 = vunpack.c.l.b16 %v3280
      %v3347 = vunpack.c.l.b16 %v3281
      %v3348 = vunpack.c.l.b16 %v3282
      %v3349 = vunpack.c.l.b16 %v3283
      %v3350 = vunpack.c.l.b16 %v3284
      %v3351 = vunpack.c.l.b16 %v3285
      %v3352 = vunpack.c.l.b16 %v3286
      %v3353 = vunpack.c.l.b16 %v3287
      %v3354 = vunpack.c.l.b16 %v3288
      %v3355 = vunpack.c.l.b16 %v3289
      %v3356 = vunpack.c.l.b16 %v3290
      %v3357 = vunpack.c.l.b16 %v3291
      %v3358 = vunpack.c.l.b16 %v3292
      %v3359 = vunpack.c.l.b16 %v3293
      %v3360 = vunpack.c.l.b16 %v3294
      %v3361 = vunpack.c.l.b16 %v3295
      %v3362 = vunpack.c.l.b16 %v3296
      %v3363 = vunpack.c.l.b16 %v3297
      %v3364 = vunpack.c.l.b16 %v3298
      %v3365 = vunpack.c.l.b16 %v3299
      %v3366 = vunpack.c.l.b16 %v3300
      %v3367 = vunpack.c.l.b16 %v3301
      %v3368 = vpack.c.b16 %v3337, %v3336
      %v3369 = vpack.c.b16 %v3339, %v3338
      %v3370 = vpack.c.b16 %v3341, %v3340
      %v3371 = vpack.c.b16 %v3343, %v3342
      %v3372 = vpack.c.b16 %v3345, %v3344
      %v3373 = vpack.c.b16 %v3347, %v3346
      %v3374 = vpack.c.b16 %v3349, %v3348
      %v3375 = vpack.c.b16 %v3351, %v3350
      %v3376 = vpack.c.b16 %v3353, %v3352
      %v3377 = vpack.c.b16 %v3355, %v3354
      %v3378 = vpack.c.b16 %v3357, %v3356
      %v3379 = vpack.c.b16 %v3359, %v3358
      %v3380 = vpack.c.b16 %v3361, %v3360
      %v3381 = vpack.c.b16 %v3363, %v3362
      %v3382 = vpack.c.b16 %v3365, %v3364
      %v3383 = vpack.c.b16 %v3367, %v3366
      %v3385 = vsel %vm745, %v3368, 0
      %v3388 = vsel %vm745, %v3369, 0
      %v3391 = vsel %vm745, %v3370, 0
      %v3394 = vsel %vm745, %v3371, 0
      %v3397 = vsel %vm745, %v3372, 0
      %v3400 = vsel %vm745, %v3373, 0
      %v3403 = vsel %vm745, %v3374, 0
      %v3406 = vsel %vm745, %v3375, 0
      %v3409 = vsel %vm745, %v3376, 0
      %v3412 = vsel %vm745, %v3377, 0
      %v3415 = vsel %vm745, %v3378, 0
      %v3418 = vsel %vm745, %v3379, 0
      %v3421 = vsel %vm745, %v3380, 0
      %v3424 = vsel %vm745, %v3381, 0
      %v3427 = vsel %vm745, %v3382, 0
      %v3430 = vsel %vm745, %v3383, 0
      %v3433 = vsel %vm794, %v3303, 0
      %3435 = vmatprep.subr.bf16.mxu0 0
      %3436 = vmatpush1.bf16.msra.mxu0 %v3433
      %3437 = vmatprep.subr.bf16.mxu0 0
      %3438 = vmatpush1.bf16.msra.mxu0 0
      %3439 = vmatprep.subr.bf16.mxu0 0
      %3440 = vmatpush1.bf16.msra.mxu0 0
      %3441 = vmatprep.subr.bf16.mxu0 0
      %3442 = vmatpush1.bf16.msra.mxu0 0
      %3443 = vmatprep.subr.bf16.mxu0 0
      %3444 = vmatpush1.bf16.msra.mxu0 0
      %3445 = vmatprep.subr.bf16.mxu0 0
      %3446 = vmatpush1.bf16.msra.mxu0 0
      %3447 = vmatprep.subr.bf16.mxu0 0
      %3448 = vmatpush1.bf16.msra.mxu0 0
      %3449 = vmatprep.subr.bf16.mxu0 0
      %3450 = vmatpush1.bf16.msra.mxu0 0
      %3451 = vmatprep.subr.bf16.mxu0 0
      %3452 = vmatpush1.bf16.msra.mxu0 0
      %3453 = vmatprep.subr.bf16.mxu0 0
      %3454 = vmatpush1.bf16.msra.mxu0 0
      %3455 = vmatprep.subr.bf16.mxu0 0
      %3456 = vmatpush1.bf16.msra.mxu0 0
      %3457 = vmatprep.subr.bf16.mxu0 0
      %3458 = vmatpush1.bf16.msra.mxu0 0
      %3459 = vmatprep.subr.bf16.mxu0 0
      %3460 = vmatpush1.bf16.msra.mxu0 0
      %3461 = vmatprep.subr.bf16.mxu0 0
      %3462 = vmatpush1.bf16.msra.mxu0 0
      %3463 = vmatprep.subr.bf16.mxu0 0
      %3464 = vmatpush1.bf16.msra.mxu0 0
      %3465 = vmatprep.subr.bf16.mxu0 0
      %3466 = vmatpush1.bf16.msra.mxu0 0
      %3467 = vmatprep.mubr.bf16.mxu0 0
      %3468 = vmatmul.mubr.bf16.gmra.mrb[0].mxu0 %v3385
      %v3469 = vpop.f32.mrb[0].mxu0
      %v3470 = vadd.f32 0.0, %v3469
      %v3471 = vpop.f32.mrb[0].mxu0
      %v3472 = vpop.f32.mrb[0].mxu0
      %v3473 = vadd.f32 0.0, %v3472
      %v3474 = vpop.f32.mrb[0].mxu0
      %3475 = vmatprep.mubr.bf16.mxu0 0
      %3476 = vmatmul.mubr.bf16.gmra.mrb[0].mxu0 %v3388
      %v3477 = vpop.f32.mrb[0].mxu0
      %v3478 = vadd.f32 0.0, %v3477
      %v3479 = vpop.f32.mrb[0].mxu0
      %v3480 = vpop.f32.mrb[0].mxu0
      %v3481 = vadd.f32 0.0, %v3480
      %v3482 = vpop.f32.mrb[0].mxu0
      %3483 = vmatprep.mubr.bf16.mxu0 0
      %3484 = vmatmul.mubr.bf16.gmra.mrb[0].mxu0 %v3391
      %v3485 = vpop.f32.mrb[0].mxu0
      %v3486 = vadd.f32 0.0, %v3485
      %v3487 = vpop.f32.mrb[0].mxu0
      %v3488 = vpop.f32.mrb[0].mxu0
      %v3489 = vadd.f32 0.0, %v3488
      %v3490 = vpop.f32.mrb[0].mxu0
      %3491 = vmatprep.mubr.bf16.mxu0 0
      %3492 = vmatmul.mubr.bf16.gmra.mrb[0].mxu0 %v3394
      %v3493 = vpop.f32.mrb[0].mxu0
      %v3494 = vadd.f32 0.0, %v3493
      %v3495 = vpop.f32.mrb[0].mxu0
      %v3496 = vpop.f32.mrb[0].mxu0
      %v3497 = vadd.f32 0.0, %v3496
      %v3498 = vpop.f32.mrb[0].mxu0
      %3499 = vmatprep.mubr.bf16.mxu0 0
      %3500 = vmatmul.mubr.bf16.gmra.mrb[0].mxu0 %v3397
      %v3501 = vpop.f32.mrb[0].mxu0
      %v3502 = vadd.f32 0.0, %v3501
      %v3503 = vpop.f32.mrb[0].mxu0
      %v3504 = vpop.f32.mrb[0].mxu0
      %v3505 = vadd.f32 0.0, %v3504
      %v3506 = vpop.f32.mrb[0].mxu0
      %3507 = vmatprep.mubr.bf16.mxu0 0
      %3508 = vmatmul.mubr.bf16.gmra.mrb[0].mxu0 %v3400
      %v3509 = vpop.f32.mrb[0].mxu0
      %v3510 = vadd.f32 0.0, %v3509
      %v3511 = vpop.f32.mrb[0].mxu0
      %v3512 = vpop.f32.mrb[0].mxu0
      %v3513 = vadd.f32 0.0, %v3512
      %v3514 = vpop.f32.mrb[0].mxu0
      %3515 = vmatprep.mubr.bf16.mxu0 0
      %3516 = vmatmul.mubr.bf16.gmra.mrb[0].mxu0 %v3403
      %v3517 = vpop.f32.mrb[0].mxu0
      %v3518 = vadd.f32 0.0, %v3517
      %v3519 = vpop.f32.mrb[0].mxu0
      %v3520 = vpop.f32.mrb[0].mxu0
      %v3521 = vadd.f32 0.0, %v3520
      %v3522 = vpop.f32.mrb[0].mxu0
      %3523 = vmatprep.mubr.bf16.mxu0 0
      %3524 = vmatmul.mubr.bf16.gmra.mrb[0].mxu0 %v3406
      %v3525 = vpop.f32.mrb[0].mxu0
      %v3526 = vadd.f32 0.0, %v3525
      %v3527 = vpop.f32.mrb[0].mxu0
      %v3528 = vpop.f32.mrb[0].mxu0
      %v3529 = vadd.f32 0.0, %v3528
      %v3530 = vpop.f32.mrb[0].mxu0
      %3531 = vmatprep.mubr.bf16.mxu0 0
      %3532 = vmatmul.mubr.bf16.gmra.mrb[0].mxu0 %v3409
      %v3533 = vpop.f32.mrb[0].mxu0
      %v3534 = vadd.f32 0.0, %v3533
      %v3535 = vpop.f32.mrb[0].mxu0
      %v3536 = vpop.f32.mrb[0].mxu0
      %v3537 = vadd.f32 0.0, %v3536
      %v3538 = vpop.f32.mrb[0].mxu0
      %3539 = vmatprep.mubr.bf16.mxu0 0
      %3540 = vmatmul.mubr.bf16.gmra.mrb[0].mxu0 %v3412
      %v3541 = vpop.f32.mrb[0].mxu0
      %v3542 = vadd.f32 0.0, %v3541
      %v3543 = vpop.f32.mrb[0].mxu0
      %v3544 = vpop.f32.mrb[0].mxu0
      %v3545 = vadd.f32 0.0, %v3544
      %v3546 = vpop.f32.mrb[0].mxu0
      %3547 = vmatprep.mubr.bf16.mxu0 0
      %3548 = vmatmul.mubr.bf16.gmra.mrb[0].mxu0 %v3415
      %v3549 = vpop.f32.mrb[0].mxu0
      %v3550 = vadd.f32 0.0, %v3549
      %v3551 = vpop.f32.mrb[0].mxu0
      %v3552 = vpop.f32.mrb[0].mxu0
      %v3553 = vadd.f32 0.0, %v3552
      %v3554 = vpop.f32.mrb[0].mxu0
      %3555 = vmatprep.mubr.bf16.mxu0 0
      %3556 = vmatmul.mubr.bf16.gmra.mrb[0].mxu0 %v3418
      %v3557 = vpop.f32.mrb[0].mxu0
      %v3558 = vadd.f32 0.0, %v3557
      %v3559 = vpop.f32.mrb[0].mxu0
      %v3560 = vpop.f32.mrb[0].mxu0
      %v3561 = vadd.f32 0.0, %v3560
      %v3562 = vpop.f32.mrb[0].mxu0
      %3563 = vmatprep.mubr.bf16.mxu0 0
      %3564 = vmatmul.mubr.bf16.gmra.mrb[0].mxu0 %v3421
      %v3565 = vpop.f32.mrb[0].mxu0
      %v3566 = vadd.f32 0.0, %v3565
      %v3567 = vpop.f32.mrb[0].mxu0
      %v3568 = vpop.f32.mrb[0].mxu0
      %v3569 = vadd.f32 0.0, %v3568
      %v3570 = vpop.f32.mrb[0].mxu0
      %3571 = vmatprep.mubr.bf16.mxu0 0
      %3572 = vmatmul.mubr.bf16.gmra.mrb[0].mxu0 %v3424
      %v3573 = vpop.f32.mrb[0].mxu0
      %v3574 = vadd.f32 0.0, %v3573
      %v3575 = vpop.f32.mrb[0].mxu0
      %v3576 = vpop.f32.mrb[0].mxu0
      %v3577 = vadd.f32 0.0, %v3576
      %v3578 = vpop.f32.mrb[0].mxu0
      %3579 = vmatprep.mubr.bf16.mxu0 0
      %3580 = vmatmul.mubr.bf16.gmra.mrb[0].mxu0 %v3427
      %v3581 = vpop.f32.mrb[0].mxu0
      %v3582 = vadd.f32 0.0, %v3581
      %v3583 = vpop.f32.mrb[0].mxu0
      %v3584 = vpop.f32.mrb[0].mxu0
      %v3585 = vadd.f32 0.0, %v3584
      %v3586 = vpop.f32.mrb[0].mxu0
      %3587 = vmatprep.mubr.bf16.mxu0 0
      %3588 = vmatmul.mubr.bf16.gmra.mrb[0].mxu0 %v3430
      %v3589 = vpop.f32.mrb[0].mxu0
      %v3590 = vadd.f32 0.0, %v3589
      %v3591 = vpop.f32.mrb[0].mxu0
      %v3592 = vpop.f32.mrb[0].mxu0
      %v3593 = vadd.f32 0.0, %v3592
      %v3594 = vpop.f32.mrb[0].mxu0
      %3595 = vdwg.mxu0
      %v3596 = vadd.f32 %v3234, %v3470
      %v3597 = vadd.f32 %v3235, %v3473
      %v3598 = vadd.f32 %v3236, %v3478
      %v3599 = vadd.f32 %v3237, %v3481
      %v3600 = vadd.f32 %v3238, %v3486
      %v3601 = vadd.f32 %v3239, %v3489
      %v3602 = vadd.f32 %v3240, %v3494
      %v3603 = vadd.f32 %v3241, %v3497
      %v3604 = vadd.f32 %v3242, %v3502
      %v3605 = vadd.f32 %v3243, %v3505
      %v3606 = vadd.f32 %v3244, %v3510
      %v3607 = vadd.f32 %v3245, %v3513
      %v3608 = vadd.f32 %v3246, %v3518
      %v3609 = vadd.f32 %v3247, %v3521
      %v3610 = vadd.f32 %v3248, %v3526
      %v3611 = vadd.f32 %v3249, %v3529
      %v3612 = vadd.f32 %v3250, %v3534
      %v3613 = vadd.f32 %v3251, %v3537
      %v3614 = vadd.f32 %v3252, %v3542
      %v3615 = vadd.f32 %v3253, %v3545
      %v3616 = vadd.f32 %v3254, %v3550
      %v3617 = vadd.f32 %v3255, %v3553
      %v3618 = vadd.f32 %v3256, %v3558
      %v3619 = vadd.f32 %v3257, %v3561
      %v3620 = vadd.f32 %v3258, %v3566
      %v3621 = vadd.f32 %v3259, %v3569
      %v3622 = vadd.f32 %v3260, %v3574
      %v3623 = vadd.f32 %v3261, %v3577
      %v3624 = vadd.f32 %v3262, %v3582
      %v3625 = vadd.f32 %v3263, %v3585
      %v3626 = vadd.f32 %v3264, %v3590
      %v3627 = vadd.f32 %v3265, %v3593
      %v3628 = vld [vmem:[%s3269] sm:$0xf]
      %v3629 = vld [vmem:[%s3269 + $0x4] sm:$0xf]
      %v3630 = vld [vmem:[%s3269 + $0x8] sm:$0x1]
      %v3631 = vld [vmem:[%s3269 + $0xc] sm:$0xf]
      %v3632 = vld [vmem:[%s3269 + $0x10] sm:$0xf]
      %v3633 = vld [vmem:[%s3269 + $0x14] sm:$0x1]
      %v3634 = vld [vmem:[%s3269 + $0x18] sm:$0xf]
      %v3635 = vld [vmem:[%s3269 + $0x1c] sm:$0xf]
      %v3636 = vld [vmem:[%s3269 + $0x20] sm:$0x1]
      %v3637 = vld [vmem:[%s3269 + $0x24] sm:$0xf]
      %v3638 = vld [vmem:[%s3269 + $0x28] sm:$0xf]
      %v3639 = vld [vmem:[%s3269 + $0x2c] sm:$0x1]
      %v3640 = vld [vmem:[%s3269 + $0x30] sm:$0xf]
      %v3641 = vld [vmem:[%s3269 + $0x34] sm:$0xf]
      %v3642 = vld [vmem:[%s3269 + $0x38] sm:$0x1]
      %v3643 = vld [vmem:[%s3269 + $0x3c] sm:$0xf]
      %v3644 = vld [vmem:[%s3269 + $0x40] sm:$0xf]
      %v3645 = vld [vmem:[%s3269 + $0x44] sm:$0x1]
      %v3646 = vld [vmem:[%s3269 + $0x48] sm:$0xf]
      %v3647 = vld [vmem:[%s3269 + $0x4c] sm:$0xf]
      %v3648 = vld [vmem:[%s3269 + $0x50] sm:$0x1]
      %v3649 = vld [vmem:[%s3269 + $0x54] sm:$0xf]
      %v3650 = vld [vmem:[%s3269 + $0x58] sm:$0xf]
      %v3651 = vld [vmem:[%s3269 + $0x5c] sm:$0x1]
      %v3652 = vld [vmem:[%s3269 + $0x60] sm:$0xf]
      %v3653 = vld [vmem:[%s3269 + $0x64] sm:$0xf]
      %v3654 = vld [vmem:[%s3269 + $0x68] sm:$0x1]
      %v3655 = vld [vmem:[%s3269 + $0x6c] sm:$0xf]
      %v3656 = vld [vmem:[%s3269 + $0x70] sm:$0xf]
      %v3657 = vld [vmem:[%s3269 + $0x74] sm:$0x1]
      %v3658 = vld [vmem:[%s3269 + $0x78] sm:$0xf]
      %v3659 = vld [vmem:[%s3269 + $0x7c] sm:$0xf]
      %v3660 = vld [vmem:[%s3269 + $0x80] sm:$0x1]
      %v3661 = vld [vmem:[%s3269 + $0x84] sm:$0xf]
      %v3662 = vld [vmem:[%s3269 + $0x88] sm:$0xf]
      %v3663 = vld [vmem:[%s3269 + $0x8c] sm:$0x1]
      %v3664 = vld [vmem:[%s3269 + $0x90] sm:$0xf]
      %v3665 = vld [vmem:[%s3269 + $0x94] sm:$0xf]
      %v3666 = vld [vmem:[%s3269 + $0x98] sm:$0x1]
      %v3667 = vld [vmem:[%s3269 + $0x9c] sm:$0xf]
      %v3668 = vld [vmem:[%s3269 + $0xa0] sm:$0xf]
      %v3669 = vld [vmem:[%s3269 + $0xa4] sm:$0x1]
      %v3670 = vld [vmem:[%s3269 + $0xa8] sm:$0xf]
      %v3671 = vld [vmem:[%s3269 + $0xac] sm:$0xf]
      %v3672 = vld [vmem:[%s3269 + $0xb0] sm:$0x1]
      %v3673 = vld [vmem:[%s3269 + $0xb4] sm:$0xf]
      %v3674 = vld [vmem:[%s3269 + $0xb8] sm:$0xf]
      %v3675 = vld [vmem:[%s3269 + $0xbc] sm:$0x1]
      %v3677 = vshrl.u32 %v3628, 16
      %v3679 = vrot.slane %v3677, 4
      %v3680 = vshll.u32 %v3628, 16
      %v3682 = vrot.slane %v3680, 5
      %v3683 = vor.u32 %v3679, %v3682
      %v3684 = vrot.slane %v3683, 4
      %v3686 = vshll.u32 %v3629, 16
      %v3688 = vrot.slane %v3686, 5
      %v3689 = vsel %vm310, %v3684, %v3688
      %v3690 = vshrl.u32 %v3629, 16
      %v3692 = vrot.slane %v3690, 4
      %v3693 = vor.u32 %v3692, %v3688
      %v3694 = vrot.slane %v3693, 4
      %v3696 = vshll.u32 %v3630, 16
      %v3698 = vrot.slane %v3696, 5
      %v3699 = vsel %vm310, %v3694, %v3698
      %v3701 = vshrl.u32 %v3631, 16
      %v3703 = vrot.slane %v3701, 4
      %v3704 = vshll.u32 %v3631, 16
      %v3706 = vrot.slane %v3704, 5
      %v3707 = vor.u32 %v3703, %v3706
      %v3708 = vrot.slane %v3707, 4
      %v3710 = vshll.u32 %v3632, 16
      %v3712 = vrot.slane %v3710, 5
      %v3713 = vsel %vm310, %v3708, %v3712
      %v3714 = vshrl.u32 %v3632, 16
      %v3716 = vrot.slane %v3714, 4
      %v3717 = vor.u32 %v3716, %v3712
      %v3718 = vrot.slane %v3717, 4
      %v3720 = vshll.u32 %v3633, 16
      %v3722 = vrot.slane %v3720, 5
      %v3723 = vsel %vm310, %v3718, %v3722
      %v3725 = vshrl.u32 %v3634, 16
      %v3727 = vrot.slane %v3725, 4
      %v3728 = vshll.u32 %v3634, 16
      %v3730 = vrot.slane %v3728, 5
      %v3731 = vor.u32 %v3727, %v3730
      %v3732 = vrot.slane %v3731, 4
      %v3734 = vshll.u32 %v3635, 16
      %v3736 = vrot.slane %v3734, 5
      %v3737 = vsel %vm310, %v3732, %v3736
      %v3738 = vshrl.u32 %v3635, 16
      %v3740 = vrot.slane %v3738, 4
      %v3741 = vor.u32 %v3740, %v3736
      %v3742 = vrot.slane %v3741, 4
      %v3744 = vshll.u32 %v3636, 16
      %v3746 = vrot.slane %v3744, 5
      %v3747 = vsel %vm310, %v3742, %v3746
      %v3749 = vshrl.u32 %v3637, 16
      %v3751 = vrot.slane %v3749, 4
      %v3752 = vshll.u32 %v3637, 16
      %v3754 = vrot.slane %v3752, 5
      %v3755 = vor.u32 %v3751, %v3754
      %v3756 = vrot.slane %v3755, 4
      %v3758 = vshll.u32 %v3638, 16
      %v3760 = vrot.slane %v3758, 5
      %v3761 = vsel %vm310, %v3756, %v3760
      %v3762 = vshrl.u32 %v3638, 16
      %v3764 = vrot.slane %v3762, 4
      %v3765 = vor.u32 %v3764, %v3760
      %v3766 = vrot.slane %v3765, 4
      %v3768 = vshll.u32 %v3639, 16
      %v3770 = vrot.slane %v3768, 5
      %v3771 = vsel %vm310, %v3766, %v3770
      %v3773 = vshrl.u32 %v3640, 16
      %v3775 = vrot.slane %v3773, 4
      %v3776 = vshll.u32 %v3640, 16
      %v3778 = vrot.slane %v3776, 5
      %v3779 = vor.u32 %v3775, %v3778
      %v3780 = vrot.slane %v3779, 4
      %v3782 = vshll.u32 %v3641, 16
      %v3784 = vrot.slane %v3782, 5
      %v3785 = vsel %vm310, %v3780, %v3784
      %v3786 = vshrl.u32 %v3641, 16
      %v3788 = vrot.slane %v3786, 4
      %v3789 = vor.u32 %v3788, %v3784
      %v3790 = vrot.slane %v3789, 4
      %v3792 = vshll.u32 %v3642, 16
      %v3794 = vrot.slane %v3792, 5
      %v3795 = vsel %vm310, %v3790, %v3794
      %v3797 = vshrl.u32 %v3643, 16
      %v3799 = vrot.slane %v3797, 4
      %v3800 = vshll.u32 %v3643, 16
      %v3802 = vrot.slane %v3800, 5
      %v3803 = vor.u32 %v3799, %v3802
      %v3804 = vrot.slane %v3803, 4
      %v3806 = vshll.u32 %v3644, 16
      %v3808 = vrot.slane %v3806, 5
      %v3809 = vsel %vm310, %v3804, %v3808
      %v3810 = vshrl.u32 %v3644, 16
      %v3812 = vrot.slane %v3810, 4
      %v3813 = vor.u32 %v3812, %v3808
      %v3814 = vrot.slane %v3813, 4
      %v3816 = vshll.u32 %v3645, 16
      %v3818 = vrot.slane %v3816, 5
      %v3819 = vsel %vm310, %v3814, %v3818
      %v3821 = vshrl.u32 %v3646, 16
      %v3823 = vrot.slane %v3821, 4
      %v3824 = vshll.u32 %v3646, 16
      %v3826 = vrot.slane %v3824, 5
      %v3827 = vor.u32 %v3823, %v3826
      %v3828 = vrot.slane %v3827, 4
      %v3830 = vshll.u32 %v3647, 16
      %v3832 = vrot.slane %v3830, 5
      %v3833 = vsel %vm310, %v3828, %v3832
      %v3834 = vshrl.u32 %v3647, 16
      %v3836 = vrot.slane %v3834, 4
      %v3837 = vor.u32 %v3836, %v3832
      %v3838 = vrot.slane %v3837, 4
      %v3840 = vshll.u32 %v3648, 16
      %v3842 = vrot.slane %v3840, 5
      %v3843 = vsel %vm310, %v3838, %v3842
      %v3845 = vshrl.u32 %v3649, 16
      %v3847 = vrot.slane %v3845, 4
      %v3848 = vshll.u32 %v3649, 16
      %v3850 = vrot.slane %v3848, 5
      %v3851 = vor.u32 %v3847, %v3850
      %v3852 = vrot.slane %v3851, 4
      %v3854 = vshll.u32 %v3650, 16
      %v3856 = vrot.slane %v3854, 5
      %v3857 = vsel %vm310, %v3852, %v3856
      %v3858 = vshrl.u32 %v3650, 16
      %v3860 = vrot.slane %v3858, 4
      %v3861 = vor.u32 %v3860, %v3856
      %v3862 = vrot.slane %v3861, 4
      %v3864 = vshll.u32 %v3651, 16
      %v3866 = vrot.slane %v3864, 5
      %v3867 = vsel %vm310, %v3862, %v3866
      %v3869 = vshrl.u32 %v3652, 16
      %v3871 = vrot.slane %v3869, 4
      %v3872 = vshll.u32 %v3652, 16
      %v3874 = vrot.slane %v3872, 5
      %v3875 = vor.u32 %v3871, %v3874
      %v3876 = vrot.slane %v3875, 4
      %v3878 = vshll.u32 %v3653, 16
      %v3880 = vrot.slane %v3878, 5
      %v3881 = vsel %vm310, %v3876, %v3880
      %v3882 = vshrl.u32 %v3653, 16
      %v3884 = vrot.slane %v3882, 4
      %v3885 = vor.u32 %v3884, %v3880
      %v3886 = vrot.slane %v3885, 4
      %v3888 = vshll.u32 %v3654, 16
      %v3890 = vrot.slane %v3888, 5
      %v3891 = vsel %vm310, %v3886, %v3890
      %v3893 = vshrl.u32 %v3655, 16
      %v3895 = vrot.slane %v3893, 4
      %v3896 = vshll.u32 %v3655, 16
      %v3898 = vrot.slane %v3896, 5
      %v3899 = vor.u32 %v3895, %v3898
      %v3900 = vrot.slane %v3899, 4
      %v3902 = vshll.u32 %v3656, 16
      %v3904 = vrot.slane %v3902, 5
      %v3905 = vsel %vm310, %v3900, %v3904
      %v3906 = vshrl.u32 %v3656, 16
      %v3908 = vrot.slane %v3906, 4
      %v3909 = vor.u32 %v3908, %v3904
      %v3910 = vrot.slane %v3909, 4
      %v3912 = vshll.u32 %v3657, 16
      %v3914 = vrot.slane %v3912, 5
      %v3915 = vsel %vm310, %v3910, %v3914
      %v3917 = vshrl.u32 %v3658, 16
      %v3919 = vrot.slane %v3917, 4
      %v3920 = vshll.u32 %v3658, 16
      %v3922 = vrot.slane %v3920, 5
      %v3923 = vor.u32 %v3919, %v3922
      %v3924 = vrot.slane %v3923, 4
      %v3926 = vshll.u32 %v3659, 16
      %v3928 = vrot.slane %v3926, 5
      %v3929 = vsel %vm310, %v3924, %v3928
      %v3930 = vshrl.u32 %v3659, 16
      %v3932 = vrot.slane %v3930, 4
      %v3933 = vor.u32 %v3932, %v3928
      %v3934 = vrot.slane %v3933, 4
      %v3936 = vshll.u32 %v3660, 16
      %v3938 = vrot.slane %v3936, 5
      %v3939 = vsel %vm310, %v3934, %v3938
      %v3941 = vshrl.u32 %v3661, 16
      %v3943 = vrot.slane %v3941, 4
      %v3944 = vshll.u32 %v3661, 16
      %v3946 = vrot.slane %v3944, 5
      %v3947 = vor.u32 %v3943, %v3946
      %v3948 = vrot.slane %v3947, 4
      %v3950 = vshll.u32 %v3662, 16
      %v3952 = vrot.slane %v3950, 5
      %v3953 = vsel %vm310, %v3948, %v3952
      %v3954 = vshrl.u32 %v3662, 16
      %v3956 = vrot.slane %v3954, 4
      %v3957 = vor.u32 %v3956, %v3952
      %v3958 = vrot.slane %v3957, 4
      %v3960 = vshll.u32 %v3663, 16
      %v3962 = vrot.slane %v3960, 5
      %v3963 = vsel %vm310, %v3958, %v3962
      %v3965 = vshrl.u32 %v3664, 16
      %v3967 = vrot.slane %v3965, 4
      %v3968 = vshll.u32 %v3664, 16
      %v3970 = vrot.slane %v3968, 5
      %v3971 = vor.u32 %v3967, %v3970
      %v3972 = vrot.slane %v3971, 4
      %v3974 = vshll.u32 %v3665, 16
      %v3976 = vrot.slane %v3974, 5
      %v3977 = vsel %vm310, %v3972, %v3976
      %v3978 = vshrl.u32 %v3665, 16
      %v3980 = vrot.slane %v3978, 4
      %v3981 = vor.u32 %v3980, %v3976
      %v3982 = vrot.slane %v3981, 4
      %v3984 = vshll.u32 %v3666, 16
      %v3986 = vrot.slane %v3984, 5
      %v3987 = vsel %vm310, %v3982, %v3986
      %v3989 = vshrl.u32 %v3667, 16
      %v3991 = vrot.slane %v3989, 4
      %v3992 = vshll.u32 %v3667, 16
      %v3994 = vrot.slane %v3992, 5
      %v3995 = vor.u32 %v3991, %v3994
      %v3996 = vrot.slane %v3995, 4
      %v3998 = vshll.u32 %v3668, 16
      %v4000 = vrot.slane %v3998, 5
      %v4001 = vsel %vm310, %v3996, %v4000
      %v4002 = vshrl.u32 %v3668, 16
      %v4004 = vrot.slane %v4002, 4
      %v4005 = vor.u32 %v4004, %v4000
      %v4006 = vrot.slane %v4005, 4
      %v4008 = vshll.u32 %v3669, 16
      %v4010 = vrot.slane %v4008, 5
      %v4011 = vsel %vm310, %v4006, %v4010
      %v4013 = vshrl.u32 %v3670, 16
      %v4015 = vrot.slane %v4013, 4
      %v4016 = vshll.u32 %v3670, 16
      %v4018 = vrot.slane %v4016, 5
      %v4019 = vor.u32 %v4015, %v4018
      %v4020 = vrot.slane %v4019, 4
      %v4022 = vshll.u32 %v3671, 16
      %v4024 = vrot.slane %v4022, 5
      %v4025 = vsel %vm310, %v4020, %v4024
      %v4026 = vshrl.u32 %v3671, 16
      %v4028 = vrot.slane %v4026, 4
      %v4029 = vor.u32 %v4028, %v4024
      %v4030 = vrot.slane %v4029, 4
      %v4032 = vshll.u32 %v3672, 16
      %v4034 = vrot.slane %v4032, 5
      %v4035 = vsel %vm310, %v4030, %v4034
      %v4037 = vshrl.u32 %v3673, 16
      %v4039 = vrot.slane %v4037, 4
      %v4040 = vshll.u32 %v3673, 16
      %v4042 = vrot.slane %v4040, 5
      %v4043 = vor.u32 %v4039, %v4042
      %v4044 = vrot.slane %v4043, 4
      %v4046 = vshll.u32 %v3674, 16
      %v4048 = vrot.slane %v4046, 5
      %v4049 = vsel %vm310, %v4044, %v4048
      %v4050 = vshrl.u32 %v3674, 16
      %v4052 = vrot.slane %v4050, 4
      %v4053 = vor.u32 %v4052, %v4048
      %v4054 = vrot.slane %v4053, 4
      %v4056 = vshll.u32 %v3675, 16
      %v4058 = vrot.slane %v4056, 5
      %v4059 = vsel %vm310, %v4054, %v4058
      %s4060 = scalar_lea.vmem %s1, 14
      %v4061 = vld [vmem:[%s4060] sm:$0x3]
      %v4062 = vunpack.c.l.b16 %v3689
      %v4063 = vunpack.c.l.b16 %v3699
      %v4064 = vunpack.c.l.b16 %v3713
      %v4065 = vunpack.c.l.b16 %v3723
      %v4066 = vunpack.c.l.b16 %v3737
      %v4067 = vunpack.c.l.b16 %v3747
      %v4068 = vunpack.c.l.b16 %v3761
      %v4069 = vunpack.c.l.b16 %v3771
      %v4070 = vunpack.c.l.b16 %v3785
      %v4071 = vunpack.c.l.b16 %v3795
      %v4072 = vunpack.c.l.b16 %v3809
      %v4073 = vunpack.c.l.b16 %v3819
      %v4074 = vunpack.c.l.b16 %v3833
      %v4075 = vunpack.c.l.b16 %v3843
      %v4076 = vunpack.c.l.b16 %v3857
      %v4077 = vunpack.c.l.b16 %v3867
      %v4078 = vunpack.c.l.b16 %v3881
      %v4079 = vunpack.c.l.b16 %v3891
      %v4080 = vunpack.c.l.b16 %v3905
      %v4081 = vunpack.c.l.b16 %v3915
      %v4082 = vunpack.c.l.b16 %v3929
      %v4083 = vunpack.c.l.b16 %v3939
      %v4084 = vunpack.c.l.b16 %v3953
      %v4085 = vunpack.c.l.b16 %v3963
      %v4086 = vunpack.c.l.b16 %v3977
      %v4087 = vunpack.c.l.b16 %v3987
      %v4088 = vunpack.c.l.b16 %v4001
      %v4089 = vunpack.c.l.b16 %v4011
      %v4090 = vunpack.c.l.b16 %v4025
      %v4091 = vunpack.c.l.b16 %v4035
      %v4092 = vunpack.c.l.b16 %v4049
      %v4093 = vunpack.c.l.b16 %v4059
      %v4094 = vpack.c.b16 %v4063, %v4062
      %v4095 = vpack.c.b16 %v4065, %v4064
      %v4096 = vpack.c.b16 %v4067, %v4066
      %v4097 = vpack.c.b16 %v4069, %v4068
      %v4098 = vpack.c.b16 %v4071, %v4070
      %v4099 = vpack.c.b16 %v4073, %v4072
      %v4100 = vpack.c.b16 %v4075, %v4074
      %v4101 = vpack.c.b16 %v4077, %v4076
      %v4102 = vpack.c.b16 %v4079, %v4078
      %v4103 = vpack.c.b16 %v4081, %v4080
      %v4104 = vpack.c.b16 %v4083, %v4082
      %v4105 = vpack.c.b16 %v4085, %v4084
      %v4106 = vpack.c.b16 %v4087, %v4086
      %v4107 = vpack.c.b16 %v4089, %v4088
      %v4108 = vpack.c.b16 %v4091, %v4090
      %v4109 = vpack.c.b16 %v4093, %v4092
      %v4111 = vsel %vm745, %v4094, 0
      %v4114 = vsel %vm745, %v4095, 0
      %v4117 = vsel %vm745, %v4096, 0
      %v4120 = vsel %vm745, %v4097, 0
      %v4123 = vsel %vm745, %v4098, 0
      %v4126 = vsel %vm745, %v4099, 0
      %v4129 = vsel %vm745, %v4100, 0
      %v4132 = vsel %vm745, %v4101, 0
      %v4135 = vsel %vm745, %v4102, 0
      %v4138 = vsel %vm745, %v4103, 0
      %v4141 = vsel %vm745, %v4104, 0
      %v4144 = vsel %vm745, %v4105, 0
      %v4147 = vsel %vm745, %v4106, 0
      %v4150 = vsel %vm745, %v4107, 0
      %v4153 = vsel %vm745, %v4108, 0
      %v4156 = vsel %vm745, %v4109, 0
      %v4159 = vsel %vm794, %v4061, 0
      %4161 = vmatprep.subr.bf16.mxu0 0
      %4162 = vmatpush1.bf16.msra.mxu0 %v4159
      %4163 = vmatprep.subr.bf16.mxu0 0
      %4164 = vmatpush1.bf16.msra.mxu0 0
      %4165 = vmatprep.subr.bf16.mxu0 0
      %4166 = vmatpush1.bf16.msra.mxu0 0
      %4167 = vmatprep.subr.bf16.mxu0 0
      %4168 = vmatpush1.bf16.msra.mxu0 0
      %4169 = vmatprep.subr.bf16.mxu0 0
      %4170 = vmatpush1.bf16.msra.mxu0 0
      %4171 = vmatprep.subr.bf16.mxu0 0
      %4172 = vmatpush1.bf16.msra.mxu0 0
      %4173 = vmatprep.subr.bf16.mxu0 0
      %4174 = vmatpush1.bf16.msra.mxu0 0
      %4175 = vmatprep.subr.bf16.mxu0 0
      %4176 = vmatpush1.bf16.msra.mxu0 0
      %4177 = vmatprep.subr.bf16.mxu0 0
      %4178 = vmatpush1.bf16.msra.mxu0 0
      %4179 = vmatprep.subr.bf16.mxu0 0
      %4180 = vmatpush1.bf16.msra.mxu0 0
      %4181 = vmatprep.subr.bf16.mxu0 0
      %4182 = vmatpush1.bf16.msra.mxu0 0
      %4183 = vmatprep.subr.bf16.mxu0 0
      %4184 = vmatpush1.bf16.msra.mxu0 0
      %4185 = vmatprep.subr.bf16.mxu0 0
      %4186 = vmatpush1.bf16.msra.mxu0 0
      %4187 = vmatprep.subr.bf16.mxu0 0
      %4188 = vmatpush1.bf16.msra.mxu0 0
      %4189 = vmatprep.subr.bf16.mxu0 0
      %4190 = vmatpush1.bf16.msra.mxu0 0
      %4191 = vmatprep.subr.bf16.mxu0 0
      %4192 = vmatpush1.bf16.msra.mxu0 0
      %4193 = vmatprep.mubr.bf16.mxu0 0
      %4194 = vmatmul.mubr.bf16.gmra.mrb[0].mxu0 %v4111
      %v4195 = vpop.f32.mrb[0].mxu0
      %v4196 = vadd.f32 0.0, %v4195
      %v4197 = vpop.f32.mrb[0].mxu0
      %v4198 = vpop.f32.mrb[0].mxu0
      %v4199 = vadd.f32 0.0, %v4198
      %v4200 = vpop.f32.mrb[0].mxu0
      %4201 = vmatprep.mubr.bf16.mxu0 0
      %4202 = vmatmul.mubr.bf16.gmra.mrb[0].mxu0 %v4114
      %v4203 = vpop.f32.mrb[0].mxu0
      %v4204 = vadd.f32 0.0, %v4203
      %v4205 = vpop.f32.mrb[0].mxu0
      %v4206 = vpop.f32.mrb[0].mxu0
      %v4207 = vadd.f32 0.0, %v4206
      %v4208 = vpop.f32.mrb[0].mxu0
      %4209 = vmatprep.mubr.bf16.mxu0 0
      %4210 = vmatmul.mubr.bf16.gmra.mrb[0].mxu0 %v4117
      %v4211 = vpop.f32.mrb[0].mxu0
      %v4212 = vadd.f32 0.0, %v4211
      %v4213 = vpop.f32.mrb[0].mxu0
      %v4214 = vpop.f32.mrb[0].mxu0
      %v4215 = vadd.f32 0.0, %v4214
      %v4216 = vpop.f32.mrb[0].mxu0
      %4217 = vmatprep.mubr.bf16.mxu0 0
      %4218 = vmatmul.mubr.bf16.gmra.mrb[0].mxu0 %v4120
      %v4219 = vpop.f32.mrb[0].mxu0
      %v4220 = vadd.f32 0.0, %v4219
      %v4221 = vpop.f32.mrb[0].mxu0
      %v4222 = vpop.f32.mrb[0].mxu0
      %v4223 = vadd.f32 0.0, %v4222
      %v4224 = vpop.f32.mrb[0].mxu0
      %4225 = vmatprep.mubr.bf16.mxu0 0
      %4226 = vmatmul.mubr.bf16.gmra.mrb[0].mxu0 %v4123
      %v4227 = vpop.f32.mrb[0].mxu0
      %v4228 = vadd.f32 0.0, %v4227
      %v4229 = vpop.f32.mrb[0].mxu0
      %v4230 = vpop.f32.mrb[0].mxu0
      %v4231 = vadd.f32 0.0, %v4230
      %v4232 = vpop.f32.mrb[0].mxu0
      %4233 = vmatprep.mubr.bf16.mxu0 0
      %4234 = vmatmul.mubr.bf16.gmra.mrb[0].mxu0 %v4126
      %v4235 = vpop.f32.mrb[0].mxu0
      %v4236 = vadd.f32 0.0, %v4235
      %v4237 = vpop.f32.mrb[0].mxu0
      %v4238 = vpop.f32.mrb[0].mxu0
      %v4239 = vadd.f32 0.0, %v4238
      %v4240 = vpop.f32.mrb[0].mxu0
      %4241 = vmatprep.mubr.bf16.mxu0 0
      %4242 = vmatmul.mubr.bf16.gmra.mrb[0].mxu0 %v4129
      %v4243 = vpop.f32.mrb[0].mxu0
      %v4244 = vadd.f32 0.0, %v4243
      %v4245 = vpop.f32.mrb[0].mxu0
      %v4246 = vpop.f32.mrb[0].mxu0
      %v4247 = vadd.f32 0.0, %v4246
      %v4248 = vpop.f32.mrb[0].mxu0
      %4249 = vmatprep.mubr.bf16.mxu0 0
      %4250 = vmatmul.mubr.bf16.gmra.mrb[0].mxu0 %v4132
      %v4251 = vpop.f32.mrb[0].mxu0
      %v4252 = vadd.f32 0.0, %v4251
      %v4253 = vpop.f32.mrb[0].mxu0
      %v4254 = vpop.f32.mrb[0].mxu0
      %v4255 = vadd.f32 0.0, %v4254
      %v4256 = vpop.f32.mrb[0].mxu0
      %4257 = vmatprep.mubr.bf16.mxu0 0
      %4258 = vmatmul.mubr.bf16.gmra.mrb[0].mxu0 %v4135
      %v4259 = vpop.f32.mrb[0].mxu0
      %v4260 = vadd.f32 0.0, %v4259
      %v4261 = vpop.f32.mrb[0].mxu0
      %v4262 = vpop.f32.mrb[0].mxu0
      %v4263 = vadd.f32 0.0, %v4262
      %v4264 = vpop.f32.mrb[0].mxu0
      %4265 = vmatprep.mubr.bf16.mxu0 0
      %4266 = vmatmul.mubr.bf16.gmra.mrb[0].mxu0 %v4138
      %v4267 = vpop.f32.mrb[0].mxu0
      %v4268 = vadd.f32 0.0, %v4267
      %v4269 = vpop.f32.mrb[0].mxu0
      %v4270 = vpop.f32.mrb[0].mxu0
      %v4271 = vadd.f32 0.0, %v4270
      %v4272 = vpop.f32.mrb[0].mxu0
      %4273 = vmatprep.mubr.bf16.mxu0 0
      %4274 = vmatmul.mubr.bf16.gmra.mrb[0].mxu0 %v4141
      %v4275 = vpop.f32.mrb[0].mxu0
      %v4276 = vadd.f32 0.0, %v4275
      %v4277 = vpop.f32.mrb[0].mxu0
      %v4278 = vpop.f32.mrb[0].mxu0
      %v4279 = vadd.f32 0.0, %v4278
      %v4280 = vpop.f32.mrb[0].mxu0
      %4281 = vmatprep.mubr.bf16.mxu0 0
      %4282 = vmatmul.mubr.bf16.gmra.mrb[0].mxu0 %v4144
      %v4283 = vpop.f32.mrb[0].mxu0
      %v4284 = vadd.f32 0.0, %v4283
      %v4285 = vpop.f32.mrb[0].mxu0
      %v4286 = vpop.f32.mrb[0].mxu0
      %v4287 = vadd.f32 0.0, %v4286
      %v4288 = vpop.f32.mrb[0].mxu0
      %4289 = vmatprep.mubr.bf16.mxu0 0
      %4290 = vmatmul.mubr.bf16.gmra.mrb[0].mxu0 %v4147
      %v4291 = vpop.f32.mrb[0].mxu0
      %v4292 = vadd.f32 0.0, %v4291
      %v4293 = vpop.f32.mrb[0].mxu0
      %v4294 = vpop.f32.mrb[0].mxu0
      %v4295 = vadd.f32 0.0, %v4294
      %v4296 = vpop.f32.mrb[0].mxu0
      %4297 = vmatprep.mubr.bf16.mxu0 0
      %4298 = vmatmul.mubr.bf16.gmra.mrb[0].mxu0 %v4150
      %v4299 = vpop.f32.mrb[0].mxu0
      %v4300 = vadd.f32 0.0, %v4299
      %v4301 = vpop.f32.mrb[0].mxu0
      %v4302 = vpop.f32.mrb[0].mxu0
      %v4303 = vadd.f32 0.0, %v4302
      %v4304 = vpop.f32.mrb[0].mxu0
      %4305 = vmatprep.mubr.bf16.mxu0 0
      %4306 = vmatmul.mubr.bf16.gmra.mrb[0].mxu0 %v4153
      %v4307 = vpop.f32.mrb[0].mxu0
      %v4308 = vadd.f32 0.0, %v4307
      %v4309 = vpop.f32.mrb[0].mxu0
      %v4310 = vpop.f32.mrb[0].mxu0
      %v4311 = vadd.f32 0.0, %v4310
      %v4312 = vpop.f32.mrb[0].mxu0
      %4313 = vmatprep.mubr.bf16.mxu0 0
      %4314 = vmatmul.mubr.bf16.gmra.mrb[0].mxu0 %v4156
      %v4315 = vpop.f32.mrb[0].mxu0
      %v4316 = vadd.f32 0.0, %v4315
      %v4317 = vpop.f32.mrb[0].mxu0
      %v4318 = vpop.f32.mrb[0].mxu0
      %v4319 = vadd.f32 0.0, %v4318
      %v4320 = vpop.f32.mrb[0].mxu0
      %4321 = vdwg.mxu0
      %v4322 = vadd.f32 %v3596, %v4196
      %v4323 = vadd.f32 %v3597, %v4199
      %v4324 = vadd.f32 %v3598, %v4204
      %v4325 = vadd.f32 %v3599, %v4207
      %v4326 = vadd.f32 %v3600, %v4212
      %v4327 = vadd.f32 %v3601, %v4215
      %v4328 = vadd.f32 %v3602, %v4220
      %v4329 = vadd.f32 %v3603, %v4223
      %v4330 = vadd.f32 %v3604, %v4228
      %v4331 = vadd.f32 %v3605, %v4231
      %v4332 = vadd.f32 %v3606, %v4236
      %v4333 = vadd.f32 %v3607, %v4239
      %v4334 = vadd.f32 %v3608, %v4244
      %v4335 = vadd.f32 %v3609, %v4247
      %v4336 = vadd.f32 %v3610, %v4252
      %v4337 = vadd.f32 %v3611, %v4255
      %v4338 = vadd.f32 %v3612, %v4260
      %v4339 = vadd.f32 %v3613, %v4263
      %v4340 = vadd.f32 %v3614, %v4268
      %v4341 = vadd.f32 %v3615, %v4271
      %v4342 = vadd.f32 %v3616, %v4276
      %v4343 = vadd.f32 %v3617, %v4279
      %v4344 = vadd.f32 %v3618, %v4284
      %v4345 = vadd.f32 %v3619, %v4287
      %v4346 = vadd.f32 %v3620, %v4292
      %v4347 = vadd.f32 %v3621, %v4295
      %v4348 = vadd.f32 %v3622, %v4300
      %v4349 = vadd.f32 %v3623, %v4303
      %v4350 = vadd.f32 %v3624, %v4308
      %v4351 = vadd.f32 %v3625, %v4311
      %v4352 = vadd.f32 %v3626, %v4316
      %v4353 = vadd.f32 %v3627, %v4319
      %v4354 = vld [vmem:[%s3269] sm:$0xe]
      %v4355 = vld [vmem:[%s3269 + $0xc] sm:$0xe]
      %v4356 = vld [vmem:[%s3269 + $0x18] sm:$0xe]
      %v4357 = vld [vmem:[%s3269 + $0x24] sm:$0xe]
      %v4358 = vld [vmem:[%s3269 + $0x30] sm:$0xe]
      %v4359 = vld [vmem:[%s3269 + $0x3c] sm:$0xe]
      %v4360 = vld [vmem:[%s3269 + $0x48] sm:$0xe]
      %v4361 = vld [vmem:[%s3269 + $0x54] sm:$0xe]
      %v4362 = vld [vmem:[%s3269 + $0x60] sm:$0xe]
      %v4363 = vld [vmem:[%s3269 + $0x6c] sm:$0xe]
      %v4364 = vld [vmem:[%s3269 + $0x78] sm:$0xe]
      %v4365 = vld [vmem:[%s3269 + $0x84] sm:$0xe]
      %v4366 = vld [vmem:[%s3269 + $0x90] sm:$0xe]
      %v4367 = vld [vmem:[%s3269 + $0x9c] sm:$0xe]
      %v4368 = vld [vmem:[%s3269 + $0xa8] sm:$0xe]
      %v4369 = vld [vmem:[%s3269 + $0xb4] sm:$0xe]
      %v4418 = vrot.slane %v4354, 5
      %v4419 = vrot.slane %v4418, 4
      %v4420 = vrot.slane %v3629, 5
      %v4421 = vsel %vm1301, %v4419, %v4420
      %v4422 = vrot.slane %v4420, 4
      %v4423 = vrot.slane %v3630, 5
      %v4424 = vsel %vm1301, %v4422, %v4423
      %v4425 = vrot.slane %v4355, 5
      %v4426 = vrot.slane %v4425, 4
      %v4427 = vrot.slane %v3632, 5
      %v4428 = vsel %vm1301, %v4426, %v4427
      %v4429 = vrot.slane %v4427, 4
      %v4430 = vrot.slane %v3633, 5
      %v4431 = vsel %vm1301, %v4429, %v4430
      %v4432 = vrot.slane %v4356, 5
      %v4433 = vrot.slane %v4432, 4
      %v4434 = vrot.slane %v3635, 5
      %v4435 = vsel %vm1301, %v4433, %v4434
      %v4436 = vrot.slane %v4434, 4
      %v4437 = vrot.slane %v3636, 5
      %v4438 = vsel %vm1301, %v4436, %v4437
      %v4439 = vrot.slane %v4357, 5
      %v4440 = vrot.slane %v4439, 4
      %v4441 = vrot.slane %v3638, 5
      %v4442 = vsel %vm1301, %v4440, %v4441
      %v4443 = vrot.slane %v4441, 4
      %v4444 = vrot.slane %v3639, 5
      %v4445 = vsel %vm1301, %v4443, %v4444
      %v4446 = vrot.slane %v4358, 5
      %v4447 = vrot.slane %v4446, 4
      %v4448 = vrot.slane %v3641, 5
      %v4449 = vsel %vm1301, %v4447, %v4448
      %v4450 = vrot.slane %v4448, 4
      %v4451 = vrot.slane %v3642, 5
      %v4452 = vsel %vm1301, %v4450, %v4451
      %v4453 = vrot.slane %v4359, 5
      %v4454 = vrot.slane %v4453, 4
      %v4455 = vrot.slane %v3644, 5
      %v4456 = vsel %vm1301, %v4454, %v4455
      %v4457 = vrot.slane %v4455, 4
      %v4458 = vrot.slane %v3645, 5
      %v4459 = vsel %vm1301, %v4457, %v4458
      %v4460 = vrot.slane %v4360, 5
      %v4461 = vrot.slane %v4460, 4
      %v4462 = vrot.slane %v3647, 5
      %v4463 = vsel %vm1301, %v4461, %v4462
      %v4464 = vrot.slane %v4462, 4
      %v4465 = vrot.slane %v3648, 5
      %v4466 = vsel %vm1301, %v4464, %v4465
      %v4467 = vrot.slane %v4361, 5
      %v4468 = vrot.slane %v4467, 4
      %v4469 = vrot.slane %v3650, 5
      %v4470 = vsel %vm1301, %v4468, %v4469
      %v4471 = vrot.slane %v4469, 4
      %v4472 = vrot.slane %v3651, 5
      %v4473 = vsel %vm1301, %v4471, %v4472
      %v4474 = vrot.slane %v4362, 5
      %v4475 = vrot.slane %v4474, 4
      %v4476 = vrot.slane %v3653, 5
      %v4477 = vsel %vm1301, %v4475, %v4476
      %v4478 = vrot.slane %v4476, 4
      %v4479 = vrot.slane %v3654, 5
      %v4480 = vsel %vm1301, %v4478, %v4479
      %v4481 = vrot.slane %v4363, 5
      %v4482 = vrot.slane %v4481, 4
      %v4483 = vrot.slane %v3656, 5
      %v4484 = vsel %vm1301, %v4482, %v4483
      %v4485 = vrot.slane %v4483, 4
      %v4486 = vrot.slane %v3657, 5
      %v4487 = vsel %vm1301, %v4485, %v4486
      %v4488 = vrot.slane %v4364, 5
      %v4489 = vrot.slane %v4488, 4
      %v4490 = vrot.slane %v3659, 5
      %v4491 = vsel %vm1301, %v4489, %v4490
      %v4492 = vrot.slane %v4490, 4
      %v4493 = vrot.slane %v3660, 5
      %v4494 = vsel %vm1301, %v4492, %v4493
      %v4495 = vrot.slane %v4365, 5
      %v4496 = vrot.slane %v4495, 4
      %v4497 = vrot.slane %v3662, 5
      %v4498 = vsel %vm1301, %v4496, %v4497
      %v4499 = vrot.slane %v4497, 4
      %v4500 = vrot.slane %v3663, 5
      %v4501 = vsel %vm1301, %v4499, %v4500
      %v4502 = vrot.slane %v4366, 5
      %v4503 = vrot.slane %v4502, 4
      %v4504 = vrot.slane %v3665, 5
      %v4505 = vsel %vm1301, %v4503, %v4504
      %v4506 = vrot.slane %v4504, 4
      %v4507 = vrot.slane %v3666, 5
      %v4508 = vsel %vm1301, %v4506, %v4507
      %v4509 = vrot.slane %v4367, 5
      %v4510 = vrot.slane %v4509, 4
      %v4511 = vrot.slane %v3668, 5
      %v4512 = vsel %vm1301, %v4510, %v4511
      %v4513 = vrot.slane %v4511, 4
      %v4514 = vrot.slane %v3669, 5
      %v4515 = vsel %vm1301, %v4513, %v4514
      %v4516 = vrot.slane %v4368, 5
      %v4517 = vrot.slane %v4516, 4
      %v4518 = vrot.slane %v3671, 5
      %v4519 = vsel %vm1301, %v4517, %v4518
      %v4520 = vrot.slane %v4518, 4
      %v4521 = vrot.slane %v3672, 5
      %v4522 = vsel %vm1301, %v4520, %v4521
      %v4523 = vrot.slane %v4369, 5
      %v4524 = vrot.slane %v4523, 4
      %v4525 = vrot.slane %v3674, 5
      %v4526 = vsel %vm1301, %v4524, %v4525
      %v4527 = vrot.slane %v4525, 4
      %v4528 = vrot.slane %v3675, 5
      %v4529 = vsel %vm1301, %v4527, %v4528
      %s4530 = scalar_lea.vmem %s1, 16
      %v4531 = vld [vmem:[%s4530] sm:$0x3]
      %v4532 = vunpack.c.l.b16 %v4421
      %v4533 = vunpack.c.l.b16 %v4424
      %v4534 = vunpack.c.l.b16 %v4428
      %v4535 = vunpack.c.l.b16 %v4431
      %v4536 = vunpack.c.l.b16 %v4435
      %v4537 = vunpack.c.l.b16 %v4438
      %v4538 = vunpack.c.l.b16 %v4442
      %v4539 = vunpack.c.l.b16 %v4445
      %v4540 = vunpack.c.l.b16 %v4449
      %v4541 = vunpack.c.l.b16 %v4452
      %v4542 = vunpack.c.l.b16 %v4456
      %v4543 = vunpack.c.l.b16 %v4459
      %v4544 = vunpack.c.l.b16 %v4463
      %v4545 = vunpack.c.l.b16 %v4466
      %v4546 = vunpack.c.l.b16 %v4470
      %v4547 = vunpack.c.l.b16 %v4473
      %v4548 = vunpack.c.l.b16 %v4477
      %v4549 = vunpack.c.l.b16 %v4480
      %v4550 = vunpack.c.l.b16 %v4484
      %v4551 = vunpack.c.l.b16 %v4487
      %v4552 = vunpack.c.l.b16 %v4491
      %v4553 = vunpack.c.l.b16 %v4494
      %v4554 = vunpack.c.l.b16 %v4498
      %v4555 = vunpack.c.l.b16 %v4501
      %v4556 = vunpack.c.l.b16 %v4505
      %v4557 = vunpack.c.l.b16 %v4508
      %v4558 = vunpack.c.l.b16 %v4512
      %v4559 = vunpack.c.l.b16 %v4515
      %v4560 = vunpack.c.l.b16 %v4519
      %v4561 = vunpack.c.l.b16 %v4522
      %v4562 = vunpack.c.l.b16 %v4526
      %v4563 = vunpack.c.l.b16 %v4529
      %v4564 = vpack.c.b16 %v4533, %v4532
      %v4565 = vpack.c.b16 %v4535, %v4534
      %v4566 = vpack.c.b16 %v4537, %v4536
      %v4567 = vpack.c.b16 %v4539, %v4538
      %v4568 = vpack.c.b16 %v4541, %v4540
      %v4569 = vpack.c.b16 %v4543, %v4542
      %v4570 = vpack.c.b16 %v4545, %v4544
      %v4571 = vpack.c.b16 %v4547, %v4546
      %v4572 = vpack.c.b16 %v4549, %v4548
      %v4573 = vpack.c.b16 %v4551, %v4550
      %v4574 = vpack.c.b16 %v4553, %v4552
      %v4575 = vpack.c.b16 %v4555, %v4554
      %v4576 = vpack.c.b16 %v4557, %v4556
      %v4577 = vpack.c.b16 %v4559, %v4558
      %v4578 = vpack.c.b16 %v4561, %v4560
      %v4579 = vpack.c.b16 %v4563, %v4562
      %v4581 = vsel %vm745, %v4564, 0
      %v4584 = vsel %vm745, %v4565, 0
      %v4587 = vsel %vm745, %v4566, 0
      %v4590 = vsel %vm745, %v4567, 0
      %v4593 = vsel %vm745, %v4568, 0
      %v4596 = vsel %vm745, %v4569, 0
      %v4599 = vsel %vm745, %v4570, 0
      %v4602 = vsel %vm745, %v4571, 0
      %v4605 = vsel %vm745, %v4572, 0
      %v4608 = vsel %vm745, %v4573, 0
      %v4611 = vsel %vm745, %v4574, 0
      %v4614 = vsel %vm745, %v4575, 0
      %v4617 = vsel %vm745, %v4576, 0
      %v4620 = vsel %vm745, %v4577, 0
      %v4623 = vsel %vm745, %v4578, 0
      %v4626 = vsel %vm745, %v4579, 0
      %v4629 = vsel %vm794, %v4531, 0
      %4631 = vmatprep.subr.bf16.mxu0 0
      %4632 = vmatpush1.bf16.msra.mxu0 %v4629
      %4633 = vmatprep.subr.bf16.mxu0 0
      %4634 = vmatpush1.bf16.msra.mxu0 0
      %4635 = vmatprep.subr.bf16.mxu0 0
      %4636 = vmatpush1.bf16.msra.mxu0 0
      %4637 = vmatprep.subr.bf16.mxu0 0
      %4638 = vmatpush1.bf16.msra.mxu0 0
      %4639 = vmatprep.subr.bf16.mxu0 0
      %4640 = vmatpush1.bf16.msra.mxu0 0
      %4641 = vmatprep.subr.bf16.mxu0 0
      %4642 = vmatpush1.bf16.msra.mxu0 0
      %4643 = vmatprep.subr.bf16.mxu0 0
      %4644 = vmatpush1.bf16.msra.mxu0 0
      %4645 = vmatprep.subr.bf16.mxu0 0
      %4646 = vmatpush1.bf16.msra.mxu0 0
      %4647 = vmatprep.subr.bf16.mxu0 0
      %4648 = vmatpush1.bf16.msra.mxu0 0
      %4649 = vmatprep.subr.bf16.mxu0 0
      %4650 = vmatpush1.bf16.msra.mxu0 0
      %4651 = vmatprep.subr.bf16.mxu0 0
      %4652 = vmatpush1.bf16.msra.mxu0 0
      %4653 = vmatprep.subr.bf16.mxu0 0
      %4654 = vmatpush1.bf16.msra.mxu0 0
      %4655 = vmatprep.subr.bf16.mxu0 0
      %4656 = vmatpush1.bf16.msra.mxu0 0
      %4657 = vmatprep.subr.bf16.mxu0 0
      %4658 = vmatpush1.bf16.msra.mxu0 0
      %4659 = vmatprep.subr.bf16.mxu0 0
      %4660 = vmatpush1.bf16.msra.mxu0 0
      %4661 = vmatprep.subr.bf16.mxu0 0
      %4662 = vmatpush1.bf16.msra.mxu0 0
      %4663 = vmatprep.mubr.bf16.mxu0 0
      %4664 = vmatmul.mubr.bf16.gmra.mrb[0].mxu0 %v4581
      %v4665 = vpop.f32.mrb[0].mxu0
      %v4666 = vadd.f32 0.0, %v4665
      %v4667 = vpop.f32.mrb[0].mxu0
      %v4668 = vpop.f32.mrb[0].mxu0
      %v4669 = vadd.f32 0.0, %v4668
      %v4670 = vpop.f32.mrb[0].mxu0
      %4671 = vmatprep.mubr.bf16.mxu0 0
      %4672 = vmatmul.mubr.bf16.gmra.mrb[0].mxu0 %v4584
      %v4673 = vpop.f32.mrb[0].mxu0
      %v4674 = vadd.f32 0.0, %v4673
      %v4675 = vpop.f32.mrb[0].mxu0
      %v4676 = vpop.f32.mrb[0].mxu0
      %v4677 = vadd.f32 0.0, %v4676
      %v4678 = vpop.f32.mrb[0].mxu0
      %4679 = vmatprep.mubr.bf16.mxu0 0
      %4680 = vmatmul.mubr.bf16.gmra.mrb[0].mxu0 %v4587
      %v4681 = vpop.f32.mrb[0].mxu0
      %v4682 = vadd.f32 0.0, %v4681
      %v4683 = vpop.f32.mrb[0].mxu0
      %v4684 = vpop.f32.mrb[0].mxu0
      %v4685 = vadd.f32 0.0, %v4684
      %v4686 = vpop.f32.mrb[0].mxu0
      %4687 = vmatprep.mubr.bf16.mxu0 0
      %4688 = vmatmul.mubr.bf16.gmra.mrb[0].mxu0 %v4590
      %v4689 = vpop.f32.mrb[0].mxu0
      %v4690 = vadd.f32 0.0, %v4689
      %v4691 = vpop.f32.mrb[0].mxu0
      %v4692 = vpop.f32.mrb[0].mxu0
      %v4693 = vadd.f32 0.0, %v4692
      %v4694 = vpop.f32.mrb[0].mxu0
      %4695 = vmatprep.mubr.bf16.mxu0 0
      %4696 = vmatmul.mubr.bf16.gmra.mrb[0].mxu0 %v4593
      %v4697 = vpop.f32.mrb[0].mxu0
      %v4698 = vadd.f32 0.0, %v4697
      %v4699 = vpop.f32.mrb[0].mxu0
      %v4700 = vpop.f32.mrb[0].mxu0
      %v4701 = vadd.f32 0.0, %v4700
      %v4702 = vpop.f32.mrb[0].mxu0
      %4703 = vmatprep.mubr.bf16.mxu0 0
      %4704 = vmatmul.mubr.bf16.gmra.mrb[0].mxu0 %v4596
      %v4705 = vpop.f32.mrb[0].mxu0
      %v4706 = vadd.f32 0.0, %v4705
      %v4707 = vpop.f32.mrb[0].mxu0
      %v4708 = vpop.f32.mrb[0].mxu0
      %v4709 = vadd.f32 0.0, %v4708
      %v4710 = vpop.f32.mrb[0].mxu0
      %4711 = vmatprep.mubr.bf16.mxu0 0
      %4712 = vmatmul.mubr.bf16.gmra.mrb[0].mxu0 %v4599
      %v4713 = vpop.f32.mrb[0].mxu0
      %v4714 = vadd.f32 0.0, %v4713
      %v4715 = vpop.f32.mrb[0].mxu0
      %v4716 = vpop.f32.mrb[0].mxu0
      %v4717 = vadd.f32 0.0, %v4716
      %v4718 = vpop.f32.mrb[0].mxu0
      %4719 = vmatprep.mubr.bf16.mxu0 0
      %4720 = vmatmul.mubr.bf16.gmra.mrb[0].mxu0 %v4602
      %v4721 = vpop.f32.mrb[0].mxu0
      %v4722 = vadd.f32 0.0, %v4721
      %v4723 = vpop.f32.mrb[0].mxu0
      %v4724 = vpop.f32.mrb[0].mxu0
      %v4725 = vadd.f32 0.0, %v4724
      %v4726 = vpop.f32.mrb[0].mxu0
      %4727 = vmatprep.mubr.bf16.mxu0 0
      %4728 = vmatmul.mubr.bf16.gmra.mrb[0].mxu0 %v4605
      %v4729 = vpop.f32.mrb[0].mxu0
      %v4730 = vadd.f32 0.0, %v4729
      %v4731 = vpop.f32.mrb[0].mxu0
      %v4732 = vpop.f32.mrb[0].mxu0
      %v4733 = vadd.f32 0.0, %v4732
      %v4734 = vpop.f32.mrb[0].mxu0
      %4735 = vmatprep.mubr.bf16.mxu0 0
      %4736 = vmatmul.mubr.bf16.gmra.mrb[0].mxu0 %v4608
      %v4737 = vpop.f32.mrb[0].mxu0
      %v4738 = vadd.f32 0.0, %v4737
      %v4739 = vpop.f32.mrb[0].mxu0
      %v4740 = vpop.f32.mrb[0].mxu0
      %v4741 = vadd.f32 0.0, %v4740
      %v4742 = vpop.f32.mrb[0].mxu0
      %4743 = vmatprep.mubr.bf16.mxu0 0
      %4744 = vmatmul.mubr.bf16.gmra.mrb[0].mxu0 %v4611
      %v4745 = vpop.f32.mrb[0].mxu0
      %v4746 = vadd.f32 0.0, %v4745
      %v4747 = vpop.f32.mrb[0].mxu0
      %v4748 = vpop.f32.mrb[0].mxu0
      %v4749 = vadd.f32 0.0, %v4748
      %v4750 = vpop.f32.mrb[0].mxu0
      %4751 = vmatprep.mubr.bf16.mxu0 0
      %4752 = vmatmul.mubr.bf16.gmra.mrb[0].mxu0 %v4614
      %v4753 = vpop.f32.mrb[0].mxu0
      %v4754 = vadd.f32 0.0, %v4753
      %v4755 = vpop.f32.mrb[0].mxu0
      %v4756 = vpop.f32.mrb[0].mxu0
      %v4757 = vadd.f32 0.0, %v4756
      %v4758 = vpop.f32.mrb[0].mxu0
      %4759 = vmatprep.mubr.bf16.mxu0 0
      %4760 = vmatmul.mubr.bf16.gmra.mrb[0].mxu0 %v4617
      %v4761 = vpop.f32.mrb[0].mxu0
      %v4762 = vadd.f32 0.0, %v4761
      %v4763 = vpop.f32.mrb[0].mxu0
      %v4764 = vpop.f32.mrb[0].mxu0
      %v4765 = vadd.f32 0.0, %v4764
      %v4766 = vpop.f32.mrb[0].mxu0
      %4767 = vmatprep.mubr.bf16.mxu0 0
      %4768 = vmatmul.mubr.bf16.gmra.mrb[0].mxu0 %v4620
      %v4769 = vpop.f32.mrb[0].mxu0
      %v4770 = vadd.f32 0.0, %v4769
      %v4771 = vpop.f32.mrb[0].mxu0
      %v4772 = vpop.f32.mrb[0].mxu0
      %v4773 = vadd.f32 0.0, %v4772
      %v4774 = vpop.f32.mrb[0].mxu0
      %4775 = vmatprep.mubr.bf16.mxu0 0
      %4776 = vmatmul.mubr.bf16.gmra.mrb[0].mxu0 %v4623
      %v4777 = vpop.f32.mrb[0].mxu0
      %v4778 = vadd.f32 0.0, %v4777
      %v4779 = vpop.f32.mrb[0].mxu0
      %v4780 = vpop.f32.mrb[0].mxu0
      %v4781 = vadd.f32 0.0, %v4780
      %v4782 = vpop.f32.mrb[0].mxu0
      %4783 = vmatprep.mubr.bf16.mxu0 0
      %4784 = vmatmul.mubr.bf16.gmra.mrb[0].mxu0 %v4626
      %v4785 = vpop.f32.mrb[0].mxu0
      %v4786 = vadd.f32 0.0, %v4785
      %v4787 = vpop.f32.mrb[0].mxu0
      %v4788 = vpop.f32.mrb[0].mxu0
      %v4789 = vadd.f32 0.0, %v4788
      %v4790 = vpop.f32.mrb[0].mxu0
      %4791 = vdwg.mxu0
      %v4792 = vadd.f32 %v4322, %v4666
      %v4793 = vadd.f32 %v4323, %v4669
      %v4794 = vadd.f32 %v4324, %v4674
      %v4795 = vadd.f32 %v4325, %v4677
      %v4796 = vadd.f32 %v4326, %v4682
      %v4797 = vadd.f32 %v4327, %v4685
      %v4798 = vadd.f32 %v4328, %v4690
      %v4799 = vadd.f32 %v4329, %v4693
      %v4800 = vadd.f32 %v4330, %v4698
      %v4801 = vadd.f32 %v4331, %v4701
      %v4802 = vadd.f32 %v4332, %v4706
      %v4803 = vadd.f32 %v4333, %v4709
      %v4804 = vadd.f32 %v4334, %v4714
      %v4805 = vadd.f32 %v4335, %v4717
      %v4806 = vadd.f32 %v4336, %v4722
      %v4807 = vadd.f32 %v4337, %v4725
      %v4808 = vadd.f32 %v4338, %v4730
      %v4809 = vadd.f32 %v4339, %v4733
      %v4810 = vadd.f32 %v4340, %v4738
      %v4811 = vadd.f32 %v4341, %v4741
      %v4812 = vadd.f32 %v4342, %v4746
      %v4813 = vadd.f32 %v4343, %v4749
      %v4814 = vadd.f32 %v4344, %v4754
      %v4815 = vadd.f32 %v4345, %v4757
      %v4816 = vadd.f32 %v4346, %v4762
      %v4817 = vadd.f32 %v4347, %v4765
      %v4818 = vadd.f32 %v4348, %v4770
      %v4819 = vadd.f32 %v4349, %v4773
      %v4820 = vadd.f32 %v4350, %v4778
      %v4821 = vadd.f32 %v4351, %v4781
      %v4822 = vadd.f32 %v4352, %v4786
      %v4823 = vadd.f32 %v4353, %v4789
      %vm4824 = vcmask 64512
      %v4825 = vsel %vm4824, %v4792, 0.0
      %v4826 = vsel %vm4824, %v4793, 0.0
      %v4827 = vadd.f32 %v4825, %v4826
      %v4828 = vsel %vm4824, %v4794, 0.0
      %v4829 = vadd.f32 %v4827, %v4828
      %v4830 = vsel %vm4824, %v4795, 0.0
      %v4831 = vadd.f32 %v4829, %v4830
      %v4832 = vsel %vm4824, %v4796, 0.0
      %v4833 = vadd.f32 %v4831, %v4832
      %v4834 = vsel %vm4824, %v4797, 0.0
      %v4835 = vadd.f32 %v4833, %v4834
      %v4836 = vsel %vm4824, %v4798, 0.0
      %v4837 = vadd.f32 %v4835, %v4836
      %v4838 = vsel %vm4824, %v4799, 0.0
      %v4839 = vadd.f32 %v4837, %v4838
      %v4840 = vsel %vm4824, %v4800, 0.0
      %v4841 = vadd.f32 %v4839, %v4840
      %v4842 = vsel %vm4824, %v4801, 0.0
      %v4843 = vadd.f32 %v4841, %v4842
      %v4844 = vsel %vm4824, %v4802, 0.0
      %v4845 = vadd.f32 %v4843, %v4844
      %v4846 = vsel %vm4824, %v4803, 0.0
      %v4847 = vadd.f32 %v4845, %v4846
      %v4848 = vsel %vm4824, %v4804, 0.0
      %v4849 = vadd.f32 %v4847, %v4848
      %v4850 = vsel %vm4824, %v4805, 0.0
      %v4851 = vadd.f32 %v4849, %v4850
      %v4852 = vsel %vm4824, %v4806, 0.0
      %v4853 = vadd.f32 %v4851, %v4852
      %v4854 = vsel %vm4824, %v4807, 0.0
      %v4855 = vadd.f32 %v4853, %v4854
      %v4856 = vsel %vm4824, %v4808, 0.0
      %v4857 = vadd.f32 %v4855, %v4856
      %v4858 = vsel %vm4824, %v4809, 0.0
      %v4859 = vadd.f32 %v4857, %v4858
      %v4860 = vsel %vm4824, %v4810, 0.0
      %v4861 = vadd.f32 %v4859, %v4860
      %v4862 = vsel %vm4824, %v4811, 0.0
      %v4863 = vadd.f32 %v4861, %v4862
      %v4864 = vsel %vm4824, %v4812, 0.0
      %v4865 = vadd.f32 %v4863, %v4864
      %v4866 = vsel %vm4824, %v4813, 0.0
      %v4867 = vadd.f32 %v4865, %v4866
      %v4868 = vsel %vm4824, %v4814, 0.0
      %v4869 = vadd.f32 %v4867, %v4868
      %v4870 = vsel %vm4824, %v4815, 0.0
      %v4871 = vadd.f32 %v4869, %v4870
      %v4872 = vsel %vm4824, %v4816, 0.0
      %v4873 = vadd.f32 %v4871, %v4872
      %v4874 = vsel %vm4824, %v4817, 0.0
      %v4875 = vadd.f32 %v4873, %v4874
      %v4876 = vsel %vm4824, %v4818, 0.0
      %v4877 = vadd.f32 %v4875, %v4876
      %v4878 = vsel %vm4824, %v4819, 0.0
      %v4879 = vadd.f32 %v4877, %v4878
      %v4880 = vsel %vm4824, %v4820, 0.0
      %v4881 = vadd.f32 %v4879, %v4880
      %v4882 = vsel %vm4824, %v4821, 0.0
      %v4883 = vadd.f32 %v4881, %v4882
      %v4884 = vsel %vm4824, %v4822, 0.0
      %v4885 = vadd.f32 %v4883, %v4884
      %v4886 = vsel %vm4824, %v4823, 0.0
      %v4887 = vadd.f32 %v4885, %v4886
      %v4888 = vrot.slane %v4887, 4
      %v4889 = vadd.f32 %v4887, %v4888
      %v4890 = vrot.slane %v4889, 2
      %v4891 = vadd.f32 %v4889, %v4890
      %v4892 = vrot.slane %v4891, 1
      %v4893 = vadd.f32 %v4891, %v4892
      %v4894 = vmul.f32 %v4792, %v4792
      %v4895 = vmul.f32 %v4793, %v4793
      %v4896 = vmul.f32 %v4794, %v4794
      %v4897 = vmul.f32 %v4795, %v4795
      %v4898 = vmul.f32 %v4796, %v4796
      %v4899 = vmul.f32 %v4797, %v4797
      %v4900 = vmul.f32 %v4798, %v4798
      %v4901 = vmul.f32 %v4799, %v4799
      %v4902 = vmul.f32 %v4800, %v4800
      %v4903 = vmul.f32 %v4801, %v4801
      %v4904 = vmul.f32 %v4802, %v4802
      %v4905 = vmul.f32 %v4803, %v4803
      %v4906 = vmul.f32 %v4804, %v4804
      %v4907 = vmul.f32 %v4805, %v4805
      %v4908 = vmul.f32 %v4806, %v4806
      %v4909 = vmul.f32 %v4807, %v4807
      %v4910 = vmul.f32 %v4808, %v4808
      %v4911 = vmul.f32 %v4809, %v4809
      %v4912 = vmul.f32 %v4810, %v4810
      %v4913 = vmul.f32 %v4811, %v4811
      %v4914 = vmul.f32 %v4812, %v4812
      %v4915 = vmul.f32 %v4813, %v4813
      %v4916 = vmul.f32 %v4814, %v4814
      %v4917 = vmul.f32 %v4815, %v4815
      %v4918 = vmul.f32 %v4816, %v4816
      %v4919 = vmul.f32 %v4817, %v4817
      %v4920 = vmul.f32 %v4818, %v4818
      %v4921 = vmul.f32 %v4819, %v4819
      %v4922 = vmul.f32 %v4820, %v4820
      %v4923 = vmul.f32 %v4821, %v4821
      %v4924 = vmul.f32 %v4822, %v4822
      %v4925 = vmul.f32 %v4823, %v4823
      %v4926 = vsel %vm4824, %v4894, 0.0
      %v4927 = vsel %vm4824, %v4895, 0.0
      %v4928 = vadd.f32 %v4926, %v4927
      %v4929 = vsel %vm4824, %v4896, 0.0
      %v4930 = vadd.f32 %v4928, %v4929
      %v4931 = vsel %vm4824, %v4897, 0.0
      %v4932 = vadd.f32 %v4930, %v4931
      %v4933 = vsel %vm4824, %v4898, 0.0
      %v4934 = vadd.f32 %v4932, %v4933
      %v4935 = vsel %vm4824, %v4899, 0.0
      %v4936 = vadd.f32 %v4934, %v4935
      %v4937 = vsel %vm4824, %v4900, 0.0
      %v4938 = vadd.f32 %v4936, %v4937
      %v4939 = vsel %vm4824, %v4901, 0.0
      %v4940 = vadd.f32 %v4938, %v4939
      %v4941 = vsel %vm4824, %v4902, 0.0
      %v4942 = vadd.f32 %v4940, %v4941
      %v4943 = vsel %vm4824, %v4903, 0.0
      %v4944 = vadd.f32 %v4942, %v4943
      %v4945 = vsel %vm4824, %v4904, 0.0
      %v4946 = vadd.f32 %v4944, %v4945
      %v4947 = vsel %vm4824, %v4905, 0.0
      %v4948 = vadd.f32 %v4946, %v4947
      %v4949 = vsel %vm4824, %v4906, 0.0
      %v4950 = vadd.f32 %v4948, %v4949
      %v4951 = vsel %vm4824, %v4907, 0.0
      %v4952 = vadd.f32 %v4950, %v4951
      %v4953 = vsel %vm4824, %v4908, 0.0
      %v4954 = vadd.f32 %v4952, %v4953
      %v4955 = vsel %vm4824, %v4909, 0.0
      %v4956 = vadd.f32 %v4954, %v4955
      %v4957 = vsel %vm4824, %v4910, 0.0
      %v4958 = vadd.f32 %v4956, %v4957
      %v4959 = vsel %vm4824, %v4911, 0.0
      %v4960 = vadd.f32 %v4958, %v4959
      %v4961 = vsel %vm4824, %v4912, 0.0
      %v4962 = vadd.f32 %v4960, %v4961
      %v4963 = vsel %vm4824, %v4913, 0.0
      %v4964 = vadd.f32 %v4962, %v4963
      %v4965 = vsel %vm4824, %v4914, 0.0
      %v4966 = vadd.f32 %v4964, %v4965
      %v4967 = vsel %vm4824, %v4915, 0.0
      %v4968 = vadd.f32 %v4966, %v4967
      %v4969 = vsel %vm4824, %v4916, 0.0
      %v4970 = vadd.f32 %v4968, %v4969
      %v4971 = vsel %vm4824, %v4917, 0.0
      %v4972 = vadd.f32 %v4970, %v4971
      %v4973 = vsel %vm4824, %v4918, 0.0
      %v4974 = vadd.f32 %v4972, %v4973
      %v4975 = vsel %vm4824, %v4919, 0.0
      %v4976 = vadd.f32 %v4974, %v4975
      %v4977 = vsel %vm4824, %v4920, 0.0
      %v4978 = vadd.f32 %v4976, %v4977
      %v4979 = vsel %vm4824, %v4921, 0.0
      %v4980 = vadd.f32 %v4978, %v4979
      %v4981 = vsel %vm4824, %v4922, 0.0
      %v4982 = vadd.f32 %v4980, %v4981
      %v4983 = vsel %vm4824, %v4923, 0.0
      %v4984 = vadd.f32 %v4982, %v4983
      %v4985 = vsel %vm4824, %v4924, 0.0
      %v4986 = vadd.f32 %v4984, %v4985
      %v4987 = vsel %vm4824, %v4925, 0.0
      %v4988 = vadd.f32 %v4986, %v4987
      %v4989 = vrot.slane %v4988, 4
      %v4990 = vadd.f32 %v4988, %v4989
      %v4991 = vrot.slane %v4990, 2
      %v4992 = vadd.f32 %v4990, %v4991
      %v4993 = vrot.slane %v4992, 1
      %v4994 = vadd.f32 %v4992, %v4993
      %vm4995 = vcmask 57344
      %4996 = vst.msk [vmem:[%s247] sm:$0x1] %vm4995, %v4893
      %4997 = vst.msk [vmem:[%s253] sm:$0x1] %vm4995, %v4994
      %4998 = vxpose.xlu0.b32.start [1/16] %v4792, 128
      %4999 = vxpose.xlu0.b32.cont [2/16] %v4793, 128
      %5000 = vxpose.xlu0.b32.cont [3/16] %v4794, 128
      %5001 = vxpose.xlu0.b32.cont [4/16] %v4795, 128
      %5002 = vxpose.xlu0.b32.cont [5/16] %v4796, 128
      %5003 = vxpose.xlu0.b32.cont [6/16] %v4797, 128
      %5004 = vxpose.xlu0.b32.cont [7/16] %v4798, 128
      %5005 = vxpose.xlu0.b32.cont [8/16] %v4799, 128
      %5006 = vxpose.xlu0.b32.cont [9/16] %v4800, 128
      %5007 = vxpose.xlu0.b32.cont [10/16] %v4801, 128
      %5008 = vxpose.xlu0.b32.cont [11/16] %v4802, 128
      %5009 = vxpose.xlu0.b32.cont [12/16] %v4803, 128
      %5010 = vxpose.xlu0.b32.cont [13/16] %v4804, 128
      %5011 = vxpose.xlu0.b32.cont [14/16] %v4805, 128
      %5012 = vxpose.xlu0.b32.cont [15/16] %v4806, 128
      %5013 = vxpose.xlu0.b32.end [16/16] %v4807, 128
      %v5014 = vpop.trf.xlu0
      %v5015 = vpop.trf.xlu0
      %v5016 = vpop.trf.xlu0
      %v5017 = vpop.trf.xlu0
      %v5018 = vpop.trf.xlu0
      %v5019 = vpop.trf.xlu0
      %v5020 = vpop.trf.xlu0
      %v5021 = vpop.trf.xlu0
      %v5022 = vpop.trf.xlu0
      %v5023 = vpop.trf.xlu0
      %v5024 = vpop.trf.xlu0
      %v5025 = vpop.trf.xlu0
      %v5026 = vpop.trf.xlu0
      %v5027 = vpop.trf.xlu0
      %v5028 = vpop.trf.xlu0
      %v5029 = vpop.trf.xlu0
      %5030 = vxpose.xlu0.b32.start [1/16] %v4808, 128
      %5031 = vxpose.xlu0.b32.cont [2/16] %v4809, 128
      %5032 = vxpose.xlu0.b32.cont [3/16] %v4810, 128
      %5033 = vxpose.xlu0.b32.cont [4/16] %v4811, 128
      %5034 = vxpose.xlu0.b32.cont [5/16] %v4812, 128
      %5035 = vxpose.xlu0.b32.cont [6/16] %v4813, 128
      %5036 = vxpose.xlu0.b32.cont [7/16] %v4814, 128
      %5037 = vxpose.xlu0.b32.cont [8/16] %v4815, 128
      %5038 = vxpose.xlu0.b32.cont [9/16] %v4816, 128
      %5039 = vxpose.xlu0.b32.cont [10/16] %v4817, 128
      %5040 = vxpose.xlu0.b32.cont [11/16] %v4818, 128
      %5041 = vxpose.xlu0.b32.cont [12/16] %v4819, 128
      %5042 = vxpose.xlu0.b32.cont [13/16] %v4820, 128
      %5043 = vxpose.xlu0.b32.cont [14/16] %v4821, 128
      %5044 = vxpose.xlu0.b32.cont [15/16] %v4822, 128
      %5045 = vxpose.xlu0.b32.end [16/16] %v4823, 128
      %v5046 = vpop.trf.xlu0
      %v5047 = vpop.trf.xlu0
      %v5048 = vpop.trf.xlu0
      %v5049 = vpop.trf.xlu0
      %v5050 = vpop.trf.xlu0
      %v5051 = vpop.trf.xlu0
      %v5052 = vpop.trf.xlu0
      %v5053 = vpop.trf.xlu0
      %v5054 = vpop.trf.xlu0
      %v5055 = vpop.trf.xlu0
      %v5056 = vpop.trf.xlu0
      %v5057 = vpop.trf.xlu0
      %v5058 = vpop.trf.xlu0
      %v5059 = vpop.trf.xlu0
      %v5060 = vpop.trf.xlu0
      %v5061 = vpop.trf.xlu0
      %5062 = vst [vmem:[%s240] sm:$0xff] %v5014
      %5063 = vst [vmem:[%s240 + $0x8] sm:$0xff] %v5046
      %s5064 = smul.u32 2, %s21
      %p5065 = scmp.lt.s32.totalorder %s20, 1
      %s5066 = scalar_select %p5065, %s20, 1
      %p5067 = scmp.lt.s32.totalorder %s5064, 1
      %s5068 = scalar_select %p5067, %s5064, 1
      %s5069 = smul.addr %s5066, 2
      %s5070 = sadd.s32 %s5068, %s5069
      %s5071 = smul.addr %s5070, 8
      %s5072 = scalar_lea.vmem %s2, %s5071
      %p5073 = scmp.lt.s32.totalorder %s20, 1
      %s5074 = scalar_select %p5073, %s20, 1
      %p5075 = scmp.lt.s32.totalorder %s21, 0
      %s5076 = scalar_select %p5075, %s21, 0
      %s5077 = sadd.s32 %s5076, %s5074
      %s5078 = scalar_lea.vmem %s3, %s5077
      %p5079 = scmp.lt.s32.totalorder %s20, 1
      %s5080 = scalar_select %p5079, %s20, 1
      %p5081 = scmp.lt.s32.totalorder %s21, 0
      %s5082 = scalar_select %p5081, %s21, 0
      %s5083 = sadd.s32 %s5082, %s5080
      %s5084 = scalar_lea.vmem %s4, %s5083
      // Predicated region
      $region29: #{convolution_forward.2} parent=27 // pred_check
        %p5085 = pneg %p95
      $region30: #{convolution_forward.2} parent=27 // pred_check_branch
        %5087 = sbr.rel (%p5085) target = $region32
      $region31: #{convolution_forward.2} parent=27 // pred_region
        %s5088 = smul.u32 2, %s21
      $region32: #{convolution_forward.2} parent=27 // pred_fallthru
        _
      // Predicated region
      $region33: #{convolution_forward.2} parent=27 // pred_check
        %p5089 = pneg %p123
      $region34: #{convolution_forward.2} parent=27 // pred_check_branch
        %5091 = sbr.rel (%p5089) target = $region36
      $region35: #{convolution_forward.2} parent=27 // pred_region
        _
      $region36: #{convolution_forward.2} parent=27 // pred_fallthru
        _
      // Predicated region
      $region37: #{convolution_forward.2} parent=27 // pred_check
        %p5092 = pneg %p151
      $region38: #{convolution_forward.2} parent=27 // pred_check_branch
        %5094 = sbr.rel (%p5092) target = $region40
      $region39: #{convolution_forward.2} parent=27 // pred_region
        _
      $region40: #{convolution_forward.2} parent=27 // pred_fallthru
        _
    $region28: #{convolution_forward.2} parent=5 // pred_fallthru
      _
    %p5095 = scmp.le.s32.totalorder 2, %s11
    // Predicated region
    $region41: #{convolution_forward.2} parent=5 // pred_check
      %p5096 = pneg %p5095
    $region42: #{convolution_forward.2} parent=5 // pred_check_branch
      %5098 = sbr.rel (%p5096) target = $region44
    $region43: #{convolution_forward.2} parent=5 // pred_region
      %s5099 = ssub.s32 %s11, 2
      // Predicated region
      $region45: #{convolution_forward.2} parent=43 // pred_check
        %p5100 = pneg %p101
      $region46: #{convolution_forward.2} parent=43 // pred_check_branch
        %5102 = sbr.rel (%p5100) target = $region48
      $region47: #{convolution_forward.2} parent=43 // pred_region
        %s5103 = smul.u32 2, %s23
        %p5104 = scmp.lt.s32.totalorder %s22, 1
        %s5105 = scalar_select %p5104, %s22, 1
        %p5106 = scmp.lt.s32.totalorder %s5103, 1
        %s5107 = scalar_select %p5106, %s5103, 1
        %s5108 = smul.addr %s5105, 2
        %s5109 = sadd.s32 %s5107, %s5108
        %s5110 = smul.addr %s5109, 8
        %s5111 = scalar_lea.vmem %s2, %s5110
      $region48: #{convolution_forward.2} parent=43 // pred_fallthru
        _
      // Predicated region
      $region49: #{convolution_forward.2} parent=43 // pred_check
        %p5112 = pneg %p129
      $region50: #{convolution_forward.2} parent=43 // pred_check_branch
        %5114 = sbr.rel (%p5112) target = $region52
      $region51: #{convolution_forward.2} parent=43 // pred_region
        %p5115 = scmp.lt.s32.totalorder %s22, 1
        %s5116 = scalar_select %p5115, %s22, 1
        %p5117 = scmp.lt.s32.totalorder %s23, 0
        %s5118 = scalar_select %p5117, %s23, 0
        %s5119 = sadd.s32 %s5118, %s5116
        %s5120 = scalar_lea.vmem %s3, %s5119
      $region52: #{convolution_forward.2} parent=43 // pred_fallthru
        _
      // Predicated region
      $region53: #{convolution_forward.2} parent=43 // pred_check
        %p5121 = pneg %p157
      $region54: #{convolution_forward.2} parent=43 // pred_check_branch
        %5123 = sbr.rel (%p5121) target = $region56
      $region55: #{convolution_forward.2} parent=43 // pred_region
        %p5124 = scmp.lt.s32.totalorder %s22, 1
        %s5125 = scalar_select %p5124, %s22, 1
        %p5126 = scmp.lt.s32.totalorder %s23, 0
        %s5127 = scalar_select %p5126, %s23, 0
        %s5128 = sadd.s32 %s5127, %s5125
        %s5129 = scalar_lea.vmem %s4, %s5128
      $region56: #{convolution_forward.2} parent=43 // pred_fallthru
        _
    $region44: #{convolution_forward.2} parent=5 // pred_fallthru
      _
  $region6: #{convolution_forward.2} parent=0 // loop_footer
    %s15 = sadd.s32 1, %s11
  $region7: #{convolution_forward.2} parent=0 // loop_footer_branch
    %10 = sbr.rel target = $region3
  $region8: #{convolution_forward.2} parent=0 // loop_exit
    _

</llo_original>
